<compile_context>
chip_gen: v7x
topology: tpu7x:2x2x1
jax: 0.10.0
libtpu: 0.0.40
codegen_flags: <defaults>
</compile_context>

<pallas_src>
import numpy as np
import jax
import jax.numpy as jnp
from jax.experimental import pallas as pl
from jax.experimental.pallas import tpu as pltpu

# ----------------------------------------------------------------------------
# Hyper-parameters (small shapes consistent with the module's forward)
# ----------------------------------------------------------------------------
BATCH       = 8           # 8 -> full-sublane tiles throughout the recurrence
SEQ_LEN     = 8
HIDDEN_DIM  = 32          # 4*H = 128 -> full lane width for the LSTM gates
N_LAYERS    = 2           # fused kernel below is specialized to 2 layers
INIT_DIM    = 16
TERRAIN_HW  = 16          # terrain is (B, 16, 16)
TERRAIN_DIM = 8
CONV_CH     = 4           # synthetic encoder conv channels
CONV_HW     = TERRAIN_HW // 2          # 8
N_PATCH     = CONV_HW * CONV_HW        # 64 spatial positions after stride-2 conv
FEAT_DIM    = N_PATCH * CONV_CH        # 256 flattened conv features
INPUT_SIZE  = 2 + TERRAIN_DIM
OUTPUT_SIZE = 2

H = HIDDEN_DIM
G = 4 * HIDDEN_DIM        # 128 gate lanes

# ---- packed weight slab layout: (SLAB_ROWS, 128) f32, 8-aligned row sections --
R_WIH0T = 0      # ( 8,128) terrain rows of W_ih layer 0
R_WIH0S = 8      # ( 2,128) sequence rows of W_ih layer 0
R_WHH0  = 16     # (32,128) W_hh layer 0
R_B0    = 48     # ( 1,128) b_ih + b_hh layer 0
R_WIH1  = 56     # (32,128) W_ih layer 1
R_WHH1  = 88     # (32,128) W_hh layer 1
R_B1    = 120    # ( 1,128)
R_IW1   = 128    # (16, 32) init_net linear 1
R_IB1   = 144    # ( 1, 32)
R_IW2   = 152    # (32, 32) init_net linear 2
R_IB2   = 184    # ( 1, 32)
R_OW1   = 192    # (32, 32) out_net linear 1
R_OB1   = 224    # ( 1, 32)
R_OW2   = 232    # (32, 16) out_net linear 2
R_OB2   = 264    # ( 1, 16)
R_OW3   = 272    # (16,128) out_net linear 3, zero-padded from (16,2) -> lane-dense out
R_OB3   = 288    # ( 1,128) zero-padded from (2,)
R_EBF   = 296    # ( 1,  8) encoder final bias
SLAB_ROWS = 304

_VSPEC = pl.BlockSpec(memory_space=pltpu.MemorySpace.VMEM)
_SSPEC = pl.BlockSpec(memory_space=pltpu.MemorySpace.SMEM)


# ----------------------------------------------------------------------------
# Fused forward kernel (single grid point, everything VMEM resident)
# ----------------------------------------------------------------------------
def _fused_forward_kernel(scal_ref, patches_ref, seq_ref, init_ref, w_ref,
                          ewf_ref, out_ref, y_ref, gx_ref):
    f32 = jnp.float32
    B = init_ref.shape[0]
    TB = seq_ref.shape[0]
    T = TB // B

    def rows(r0, nr, nc=G):
        blk = w_ref[r0:r0 + nr, :]
        return blk if nc == G else blk[:, 0:nc]

    # ---- static views into the packed weight slab (one DMA for all of these) --
    wih0_t = rows(R_WIH0T, TERRAIN_DIM)
    wih0_s = rows(R_WIH0S, 2)
    whh0   = rows(R_WHH0, H)
    b0     = rows(R_B0, 1)
    wih1   = rows(R_WIH1, H)
    whh1   = rows(R_WHH1, H)
    b1     = rows(R_B1, 1)
    iw1    = rows(R_IW1, INIT_DIM, H)
    ib1    = rows(R_IB1, 1, H)
    iw2    = rows(R_IW2, H, H)
    ib2    = rows(R_IB2, 1, H)
    ow1    = rows(R_OW1, H, H)
    ob1    = rows(R_OB1, 1, H)
    ow2    = rows(R_OW2, H, H // 2)
    ob2    = rows(R_OB2, 1, H // 2)
    ow3    = rows(R_OW3, H // 2)            # zero-padded -> lane-dense final matmul
    ob3    = rows(R_OB3, 1)
    ebf    = rows(R_EBF, 1, TERRAIN_DIM)

    # ---- init_net: Linear -> Tanh -> Linear (same output reused for h0/c0, both layers)
    h0 = jnp.tanh(jnp.dot(init_ref[...], iw1, preferred_element_type=f32) + ib1)
    h0 = jnp.dot(h0, iw2, preferred_element_type=f32) + ib2                     # (B, H)
    c0 = h0

    # ---- terrain encoder: conv3x3/s2 channel-major as 36 scalar*(B,64) VPU FMAs,
    #      ReLU, then the (256,8) linear + tanh on the MXU. No kron, no relayout.
    p = patches_ref[...]                                                        # (B, 9*64), col = tap*64 + pos
    feat_blocks = []
    for c in range(CONV_CH):
        acc = jnp.zeros((B, N_PATCH), f32)
        for k in range(9):
            acc = acc + scal_ref[k, c] * p[:, k * N_PATCH:(k + 1) * N_PATCH]
        feat_blocks.append(jnp.maximum(acc + scal_ref[9, c], 0.0))
    feat = jnp.concatenate(feat_blocks, axis=1)                                 # (B, 256) channel-major
    enc = jnp.tanh(jnp.dot(feat, ewf_ref[...], preferred_element_type=f32) + ebf)  # (B, Td)

    # ---- hoisted gate projections: the serial loop keeps only h @ W_hh ----
    # time-invariant part (terrain + bias) folded into gx once, outside the loop.
    gbias0 = jnp.dot(enc, wih0_t, preferred_element_type=f32) + b0              # (B, 4H)
    gx_ref[...] = (jnp.dot(seq_ref[...], wih0_s, preferred_element_type=f32)
                   + jnp.concatenate([gbias0] * T, axis=0))                     # (T*B, 4H)

    # lane-dependent blend: tanh lanes (g gate) -> (1, 0); sigmoid lanes via
    # sigmoid(x) = 0.5*tanh(0.5*x) + 0.5 -> a single EUP push per step.
    lane = jax.lax.broadcasted_iota(jnp.int32, (B, G), 1)
    is_g = (lane >= 2 * H) & (lane < 3 * H)
    s_mul = jnp.where(is_g, 1.0, 0.5).astype(f32)
    s_add = jnp.where(is_g, 0.0, 0.5).astype(f32)

    def run_layer(whh, h, c):
        # T-step recurrence, statically unrolled (full scheduler visibility)
        for t in range(T):
            r0 = t * B
            gates = gx_ref[r0:r0 + B, :] + jnp.dot(h, whh,
                                                   preferred_element_type=f32)  # (B, 4H)
            act = s_mul * jnp.tanh(s_mul * gates) + s_add
            i_, f_ = act[:, 0:H], act[:, H:2 * H]
            g_, o_ = act[:, 2 * H:3 * H], act[:, 3 * H:4 * H]
            c = f_ * c + i_ * g_
            h = o_ * jnp.tanh(c)
            y_ref[r0:r0 + B, :] = h
        return h, c

    # ---- LSTM layer 0 ----
    hT0, cT0 = run_layer(whh0, h0, c0)

    # ---- LSTM layer 1: its input (layer-0 outputs) is fully available, so its
    #      projection (+ bias) is one batched matmul outside the loop ----
    gx_ref[...] = jnp.dot(y_ref[...], wih1, preferred_element_type=f32) + b1
    hT1, cT1 = run_layer(whh1, h0, c0)

    # ---- out_net: Linear -> Sigmoid -> Linear -> Sigmoid -> Linear (position-wise)
    # TODO(synk): Dropout(p=0.3) before out_net treated as identity (eval mode).
    yo = y_ref[...]                                                             # (T*B, H)
    o1 = jax.nn.sigmoid(jnp.dot(yo, ow1, preferred_element_type=f32) + ob1)
    o2 = jax.nn.sigmoid(jnp.dot(o1, ow2, preferred_element_type=f32) + ob2)

    # single lane-dense packed output slab:
    #   rows [0, T*B)      : out_net output (real data in lanes 0:2, rest zeros)
    #   rows [T*B, T*B + B): [h_n(l0) | h_n(l1) | c_n(l0) | c_n(l1)] along lanes
    out_ref[0:TB, :] = jnp.dot(o2, ow3, preferred_element_type=f32) + ob3
    out_ref[TB:TB + B, :] = jnp.concatenate([hT0, hT1, cT0, cT1], axis=1)


# ----------------------------------------------------------------------------
# One-time parameter packing (NOT in the per-call forward path)
# ----------------------------------------------------------------------------
def pack_params(params):
    f32 = jnp.float32
    slab = jnp.zeros((SLAB_ROWS, G), f32)

    def put(s, r, w):
        w = jnp.asarray(w, f32)
        if w.ndim == 1:
            w = w.reshape(1, -1)
        return s.at[r:r + w.shape[0], 0:w.shape[1]].set(w)

    wih0 = jnp.asarray(params["lstm_wih0"], f32)        # (10, 128): terrain rows, then seq rows
    slab = put(slab, R_WIH0T, wih0[0:TERRAIN_DIM])
    slab = put(slab, R_WIH0S, wih0[TERRAIN_DIM:TERRAIN_DIM + 2])
    slab = put(slab, R_WHH0, params["lstm_whh0"])
    slab = put(slab, R_B0,   params["lstm_b0"])
    slab = put(slab, R_WIH1, params["lstm_wih1"])
    slab = put(slab, R_WHH1, params["lstm_whh1"])
    slab = put(slab, R_B1,   params["lstm_b1"])
    slab = put(slab, R_IW1,  params["init_w1"])
    slab = put(slab, R_IB1,  params["init_b1"])
    slab = put(slab, R_IW2,  params["init_w2"])
    slab = put(slab, R_IB2,  params["init_b2"])
    slab = put(slab, R_OW1,  params["out_w1"])
    slab = put(slab, R_OB1,  params["out_b1"])
    slab = put(slab, R_OW2,  params["out_w2"])
    slab = put(slab, R_OB2,  params["out_b2"])
    slab = put(slab, R_OW3,  params["out_w3"])          # zero-padded to 128 lanes
    slab = put(slab, R_OB3,  params["out_b3"])
    slab = put(slab, R_EBF,  params["enc_bf"])

    # encoder linear with rows permuted to channel-major (c*64+p) feature order
    wf = jnp.asarray(params["enc_wf"], f32).reshape(N_PATCH, CONV_CH, TERRAIN_DIM)
    ewf_cm = jnp.transpose(wf, (1, 0, 2)).reshape(FEAT_DIM, TERRAIN_DIM)

    # conv weights/bias as a tiny SMEM scalar table: rows 0..8 = Wc (9,4), row 9 = bc
    conv_scal = jnp.concatenate(
        [jnp.asarray(params["enc_wc"], f32),
         jnp.asarray(params["enc_bc"], f32).reshape(1, CONV_CH)], axis=0)       # (10, 4)

    return {"wslab": slab, "ewf_cm": ewf_cm, "conv_scal": conv_scal}


# ----------------------------------------------------------------------------
# Glue (pure JAX): im2col for the 3x3/stride-2/pad-1 conv (tiny layout op)
# ----------------------------------------------------------------------------
def im2col_tap_major(x):
    # x: (B,1,H,W) -> (B, 9*Ho*Wo), column index = tap*(Ho*Wo) + (i*Wo + j)
    B, _, Hh, Ww = x.shape
    Ho, Wo = Hh // 2, Ww // 2
    xp = jnp.pad(x, ((0, 0), (0, 0), (1, 1), (1, 1)))
    taps = []
    for di in range(3):
        for dj in range(3):
            taps.append(xp[:, 0, di:di + 2 * Ho:2, dj:dj + 2 * Wo:2].reshape(B, Ho * Wo))
    return jnp.concatenate(taps, axis=1)                                        # (B, 576)


def im2col_3x3_s2(x):
    # reference layout: (B*Ho*Wo, 9), row index = b*Ho*Wo + (i*Wo + j)
    B, _, Hh, Ww = x.shape
    Ho, Wo = Hh // 2, Ww // 2
    xp = jnp.pad(x, ((0, 0), (0, 0), (1, 1), (1, 1)))
    cols = []
    for di in range(3):
        for dj in range(3):
            cols.append(xp[:, 0, di:di + 2 * Ho:2, dj:dj + 2 * Wo:2])           # (B,Ho,Wo)
    patches = jnp.stack(cols, axis=-1)                                          # (B,Ho,Wo,9)
    return patches.reshape(B * Ho * Wo, 9)


# ----------------------------------------------------------------------------
# Full forward pass: one fused pallas_call + tiny XLA-side layout prep
# ----------------------------------------------------------------------------
def model_forward(packed, sequence, terrain, init):
    assert N_LAYERS == 2, "fused kernel is specialized to 2 LSTM layers"
    B, T, _ = sequence.shape

    init2d = init.reshape(-1, init.shape[-1]).astype(jnp.float32)               # (B, init_dim)
    seq_tm = jnp.transpose(sequence.astype(jnp.float32), (1, 0, 2)).reshape(T * B, 2)
    x_nchw = terrain.reshape(B, 1, TERRAIN_HW, TERRAIN_HW).astype(jnp.float32)
    patches_tm = im2col_tap_major(x_nchw)                                       # (B, 576)

    out_slab = pl.pallas_call(
        _fused_forward_kernel,
        out_shape=jax.ShapeDtypeStruct((T * B + B, G), jnp.float32),
        in_specs=[_SSPEC, _VSPEC, _VSPEC, _VSPEC, _VSPEC, _VSPEC],
        out_specs=_VSPEC,
        scratch_shapes=[pltpu.VMEM((T * B, H), jnp.float32),    # layer outputs (time-major)
                        pltpu.VMEM((T * B, G), jnp.float32)],   # hoisted gate projections
    )(packed["conv_scal"], patches_tm, seq_tm, init2d,
      packed["wslab"], packed["ewf_cm"])

    out = jnp.transpose(out_slab[0:T * B, 0:OUTPUT_SIZE].reshape(T, B, OUTPUT_SIZE),
                        (1, 0, 2))                                              # (B, T, 2)
    hc = out_slab[T * B:T * B + B, :]
    h_n = jnp.stack([hc[:, 0:H], hc[:, H:2 * H]], axis=0)                       # (2, B, H)
    c_n = jnp.stack([hc[:, 2 * H:3 * H], hc[:, 3 * H:4 * H]], axis=0)           # (2, B, H)
    return out, (h_n, c_n)


# ----------------------------------------------------------------------------
# Pure-JAX reference (straightforward math, no Pallas) for a numerical check
# ----------------------------------------------------------------------------
def _dense_ref(x, w, b, act=None):
    y = jnp.dot(x, w, precision=jax.lax.Precision.HIGHEST) + b
    if act == "tanh":
        return jnp.tanh(y)
    if act == "sigmoid":
        return jax.nn.sigmoid(y)
    if act == "relu":
        return jnp.maximum(y, 0.0)
    return y


def _lstm_layer_ref(x_tm, h0, c0, w_ih, w_hh, b):
    T = x_tm.shape[0]
    Hh = h0.shape[-1]
    h, c = h0, c0
    ys = []
    for t in range(T):
        gates = (jnp.dot(x_tm[t], w_ih, precision=jax.lax.Precision.HIGHEST)
                 + jnp.dot(h, w_hh, precision=jax.lax.Precision.HIGHEST) + b)
        i = jax.nn.sigmoid(gates[:, 0:Hh])
        f = jax.nn.sigmoid(gates[:, Hh:2 * Hh])
        g = jnp.tanh(gates[:, 2 * Hh:3 * Hh])
        o = jax.nn.sigmoid(gates[:, 3 * Hh:4 * Hh])
        c = f * c + i * g
        h = o * jnp.tanh(c)
        ys.append(h)
    return jnp.stack(ys, 0), h, c


def reference_forward(params, sequence, terrain, init):
    B, T, _ = sequence.shape
    init2d = init.reshape(-1, init.shape[-1]).astype(jnp.float32)
    h0 = _dense_ref(_dense_ref(init2d, params["init_w1"], params["init_b1"], "tanh"),
                    params["init_w2"], params["init_b2"])
    c0 = h0
    x_nchw = terrain.reshape(B, 1, TERRAIN_HW, TERRAIN_HW).astype(jnp.float32)
    patches = im2col_3x3_s2(x_nchw)
    conv = _dense_ref(patches, params["enc_wc"], params["enc_bc"], "relu")
    feat = conv.reshape(B, -1)
    enc = _dense_ref(feat, params["enc_wf"], params["enc_bf"], "tanh")
    rnn_in = jnp.concatenate(
        [jnp.broadcast_to(enc[:, None, :], (B, T, TERRAIN_DIM)),
         sequence.astype(jnp.float32)], axis=-1)
    x_tm = jnp.transpose(rnn_in, (1, 0, 2))
    h_list, c_list = [], []
    for l in range(N_LAYERS):
        x_tm, hT, cT = _lstm_layer_ref(
            x_tm, h0, c0,
            params[f"lstm_wih{l}"], params[f"lstm_whh{l}"], params[f"lstm_b{l}"])
        h_list.append(hT)
        c_list.append(cT)
    out = jnp.transpose(x_tm, (1, 0, 2)).reshape(B * T, HIDDEN_DIM)
    h1 = _dense_ref(out, params["out_w1"], params["out_b1"], "sigmoid")
    h2 = _dense_ref(h1, params["out_w2"], params["out_b2"], "sigmoid")
    out = _dense_ref(h2, params["out_w3"], params["out_b3"]).reshape(B, T, OUTPUT_SIZE)
    return out, (jnp.stack(h_list, 0), jnp.stack(c_list, 0))


# ----------------------------------------------------------------------------
# Deterministic parameter initialization
# ----------------------------------------------------------------------------
def init_params(key):
    ks = jax.random.split(key, 16)

    def w(k, shape, scale=0.15):
        return (scale * jax.random.normal(k, shape)).astype(jnp.float32)

    p = {
        "init_w1": w(ks[0], (INIT_DIM, H)), "init_b1": w(ks[1], (H,)),
        "init_w2": w(ks[2], (H, H)),        "init_b2": w(ks[3], (H,)),
        "enc_wc": w(ks[4], (9, CONV_CH)),   "enc_bc": w(ks[5], (CONV_CH,)),
        "enc_wf": w(ks[6], (FEAT_DIM, TERRAIN_DIM)),
        "enc_bf": w(ks[7], (TERRAIN_DIM,)),
        "out_w1": w(ks[8], (H, H)),              "out_b1": w(ks[9], (H,)),
        "out_w2": w(ks[10], (H, H // 2)),        "out_b2": w(ks[11], (H // 2,)),
        "out_w3": w(ks[12], (H // 2, OUTPUT_SIZE)), "out_b3": w(ks[13], (OUTPUT_SIZE,)),
    }
    kl = jax.random.split(ks[14], 3 * N_LAYERS)
    for l in range(N_LAYERS):
        din = INPUT_SIZE if l == 0 else H
        p[f"lstm_wih{l}"] = w(kl[3 * l + 0], (din, 4 * H))
        p[f"lstm_whh{l}"] = w(kl[3 * l + 1], (H, 4 * H))
        p[f"lstm_b{l}"]   = w(kl[3 * l + 2], (4 * H,))
    return p


# ----------------------------------------------------------------------------
if __name__ == "__main__":
    key = jax.random.PRNGKey(0)
    kp, ks, kt, ki = jax.random.split(key, 4)
    params = init_params(kp)
    packed = pack_params(params)            # one-time packing, NOT per forward call

    sequence = jax.random.normal(ks, (BATCH, SEQ_LEN, 2), jnp.float32)
    terrain = jax.random.normal(kt, (BATCH, TERRAIN_HW, TERRAIN_HW), jnp.float32)
    init = jax.random.normal(ki, (1, BATCH, INIT_DIM), jnp.float32)

    fwd = jax.jit(model_forward)
    out, (h_n, c_n) = fwd(packed, sequence, terrain, init)
    jax.block_until_ready((out, h_n, c_n))

    # numerical sanity check against the pure-JAX reference
    out_ref, (h_ref, c_ref) = reference_forward(params, sequence, terrain, init)
    np.testing.assert_allclose(np.asarray(out), np.asarray(out_ref), rtol=1e-2, atol=1e-2)
    np.testing.assert_allclose(np.asarray(h_n), np.asarray(h_ref), rtol=1e-2, atol=1e-2)
    np.testing.assert_allclose(np.asarray(c_n), np.asarray(c_ref), rtol=1e-2, atol=1e-2)

    assert out.shape == (BATCH, SEQ_LEN, OUTPUT_SIZE)
    assert h_n.shape == (N_LAYERS, BATCH, HIDDEN_DIM)
    assert c_n.shape == (N_LAYERS, BATCH, HIDDEN_DIM)
    print("KERNEL_OK")
</pallas_src>

<mosaic_0001>
module attributes {stable_mosaic.version = 11 : i64} {
  func.func @_fused_forward_kernel(%arg0: memref<10x4xf32, #tpu.memory_space<smem>>, %arg1: memref<8x576xf32, #tpu.memory_space<vmem>>, %arg2: memref<64x2xf32, #tpu.memory_space<vmem>>, %arg3: memref<8x16xf32, #tpu.memory_space<vmem>>, %arg4: memref<304x128xf32, #tpu.memory_space<vmem>>, %arg5: memref<256x8xf32, #tpu.memory_space<vmem>>, %arg6: memref<72x128xf32, #tpu.memory_space<vmem>>, %arg7: memref<64x32xf32, #tpu.memory_space<vmem>>, %arg8: memref<64x128xf32, #tpu.memory_space<vmem>>) attributes {dimension_semantics = [], scalar_prefetch = 0 : i64, scratch_operands = 2 : i64, tpu.core_type = #tpu.core_type<tc>} {
    %c0 = arith.constant 0 : index
    %c0_0 = arith.constant 0 : index
    %0 = vector.load %arg4[%c0, %c0_0] : memref<304x128xf32, #tpu.memory_space<vmem>>, vector<8x128xf32>
    %c8 = arith.constant 8 : index
    %c0_1 = arith.constant 0 : index
    %1 = vector.load %arg4[%c8, %c0_1] : memref<304x128xf32, #tpu.memory_space<vmem>>, vector<2x128xf32>
    %c16 = arith.constant 16 : index
    %c0_2 = arith.constant 0 : index
    %2 = vector.load %arg4[%c16, %c0_2] : memref<304x128xf32, #tpu.memory_space<vmem>>, vector<32x128xf32>
    %c48 = arith.constant 48 : index
    %c0_3 = arith.constant 0 : index
    %3 = vector.load %arg4[%c48, %c0_3] : memref<304x128xf32, #tpu.memory_space<vmem>>, vector<1x128xf32>
    %c56 = arith.constant 56 : index
    %c0_4 = arith.constant 0 : index
    %4 = vector.load %arg4[%c56, %c0_4] : memref<304x128xf32, #tpu.memory_space<vmem>>, vector<32x128xf32>
    %c88 = arith.constant 88 : index
    %c0_5 = arith.constant 0 : index
    %5 = vector.load %arg4[%c88, %c0_5] : memref<304x128xf32, #tpu.memory_space<vmem>>, vector<32x128xf32>
    %c120 = arith.constant 120 : index
    %c0_6 = arith.constant 0 : index
    %6 = vector.load %arg4[%c120, %c0_6] : memref<304x128xf32, #tpu.memory_space<vmem>>, vector<1x128xf32>
    %c128 = arith.constant 128 : index
    %c0_7 = arith.constant 0 : index
    %7 = vector.load %arg4[%c128, %c0_7] : memref<304x128xf32, #tpu.memory_space<vmem>>, vector<16x128xf32>
    %8 = vector.extract_strided_slice %7 {offsets = [0, 0], sizes = [16, 32], strides = [1, 1]} : vector<16x128xf32> to vector<16x32xf32>
    %c144 = arith.constant 144 : index
    %c0_8 = arith.constant 0 : index
    %9 = vector.load %arg4[%c144, %c0_8] : memref<304x128xf32, #tpu.memory_space<vmem>>, vector<1x128xf32>
    %10 = vector.extract_strided_slice %9 {offsets = [0, 0], sizes = [1, 32], strides = [1, 1]} : vector<1x128xf32> to vector<1x32xf32>
    %c152 = arith.constant 152 : index
    %c0_9 = arith.constant 0 : index
    %11 = vector.load %arg4[%c152, %c0_9] : memref<304x128xf32, #tpu.memory_space<vmem>>, vector<32x128xf32>
    %12 = vector.extract_strided_slice %11 {offsets = [0, 0], sizes = [32, 32], strides = [1, 1]} : vector<32x128xf32> to vector<32x32xf32>
    %c184 = arith.constant 184 : index
    %c0_10 = arith.constant 0 : index
    %13 = vector.load %arg4[%c184, %c0_10] : memref<304x128xf32, #tpu.memory_space<vmem>>, vector<1x128xf32>
    %14 = vector.extract_strided_slice %13 {offsets = [0, 0], sizes = [1, 32], strides = [1, 1]} : vector<1x128xf32> to vector<1x32xf32>
    %c192 = arith.constant 192 : index
    %c0_11 = arith.constant 0 : index
    %15 = vector.load %arg4[%c192, %c0_11] : memref<304x128xf32, #tpu.memory_space<vmem>>, vector<32x128xf32>
    %16 = vector.extract_strided_slice %15 {offsets = [0, 0], sizes = [32, 32], strides = [1, 1]} : vector<32x128xf32> to vector<32x32xf32>
    %c224 = arith.constant 224 : index
    %c0_12 = arith.constant 0 : index
    %17 = vector.load %arg4[%c224, %c0_12] : memref<304x128xf32, #tpu.memory_space<vmem>>, vector<1x128xf32>
    %18 = vector.extract_strided_slice %17 {offsets = [0, 0], sizes = [1, 32], strides = [1, 1]} : vector<1x128xf32> to vector<1x32xf32>
    %c232 = arith.constant 232 : index
    %c0_13 = arith.constant 0 : index
    %19 = vector.load %arg4[%c232, %c0_13] : memref<304x128xf32, #tpu.memory_space<vmem>>, vector<32x128xf32>
    %20 = vector.extract_strided_slice %19 {offsets = [0, 0], sizes = [32, 16], strides = [1, 1]} : vector<32x128xf32> to vector<32x16xf32>
    %c264 = arith.constant 264 : index
    %c0_14 = arith.constant 0 : index
    %21 = vector.load %arg4[%c264, %c0_14] : memref<304x128xf32, #tpu.memory_space<vmem>>, vector<1x128xf32>
    %22 = vector.extract_strided_slice %21 {offsets = [0, 0], sizes = [1, 16], strides = [1, 1]} : vector<1x128xf32> to vector<1x16xf32>
    %c272 = arith.constant 272 : index
    %c0_15 = arith.constant 0 : index
    %23 = vector.load %arg4[%c272, %c0_15] : memref<304x128xf32, #tpu.memory_space<vmem>>, vector<16x128xf32>
    %c288 = arith.constant 288 : index
    %c0_16 = arith.constant 0 : index
    %24 = vector.load %arg4[%c288, %c0_16] : memref<304x128xf32, #tpu.memory_space<vmem>>, vector<1x128xf32>
    %c296 = arith.constant 296 : index
    %c0_17 = arith.constant 0 : index
    %25 = vector.load %arg4[%c296, %c0_17] : memref<304x128xf32, #tpu.memory_space<vmem>>, vector<1x128xf32>
    %26 = vector.extract_strided_slice %25 {offsets = [0, 0], sizes = [1, 8], strides = [1, 1]} : vector<1x128xf32> to vector<1x8xf32>
    %c0_18 = arith.constant 0 : index
    %c0_19 = arith.constant 0 : index
    %27 = vector.load %arg3[%c0_18, %c0_19] : memref<8x16xf32, #tpu.memory_space<vmem>>, vector<8x16xf32>
    %cst = arith.constant dense<0.000000e+00> : vector<8x32xf32>
    %28 = tpu.matmul %27, %8, %cst {dimension_numbers = #tpu.dot_dimension_numbers<[1], [0], [0], [1], [0, 0, 1, 1], [], []>} : vector<8x16xf32>, vector<16x32xf32>, vector<8x32xf32> -> vector<8x32xf32>
    %29 = vector.broadcast %10 : vector<1x32xf32> to vector<8x32xf32>
    %30 = arith.addf %28, %29 : vector<8x32xf32>
    %31 = math.tanh %30 : vector<8x32xf32>
    %cst_20 = arith.constant dense<0.000000e+00> : vector<8x32xf32>
    %32 = tpu.matmul %31, %12, %cst_20 {dimension_numbers = #tpu.dot_dimension_numbers<[1], [0], [0], [1], [0, 0, 1, 1], [], []>} : vector<8x32xf32>, vector<32x32xf32>, vector<8x32xf32> -> vector<8x32xf32>
    %33 = vector.broadcast %14 : vector<1x32xf32> to vector<8x32xf32>
    %34 = arith.addf %32, %33 : vector<8x32xf32>
    %c0_21 = arith.constant 0 : index
    %c0_22 = arith.constant 0 : index
    %35 = vector.load %arg1[%c0_21, %c0_22] : memref<8x576xf32, #tpu.memory_space<vmem>>, vector<8x576xf32>
    %cst_23 = arith.constant 0.000000e+00 : f32
    %36 = vector.broadcast %cst_23 : f32 to vector<8x64xf32>
    %c0_24 = arith.constant 0 : index
    %c0_25 = arith.constant 0 : index
    %37 = memref.load %arg0[%c0_24, %c0_25] : memref<10x4xf32, #tpu.memory_space<smem>>
    %38 = vector.extract_strided_slice %35 {offsets = [0, 0], sizes = [8, 64], strides = [1, 1]} : vector<8x576xf32> to vector<8x64xf32>
    %39 = vector.broadcast %37 : f32 to vector<8x64xf32>
    %40 = arith.mulf %39, %38 : vector<8x64xf32>
    %41 = arith.addf %36, %40 : vector<8x64xf32>
    %c1 = arith.constant 1 : index
    %c0_26 = arith.constant 0 : index
    %42 = memref.load %arg0[%c1, %c0_26] : memref<10x4xf32, #tpu.memory_space<smem>>
    %43 = vector.extract_strided_slice %35 {offsets = [0, 64], sizes = [8, 64], strides = [1, 1]} : vector<8x576xf32> to vector<8x64xf32>
    %44 = vector.broadcast %42 : f32 to vector<8x64xf32>
    %45 = arith.mulf %44, %43 : vector<8x64xf32>
    %46 = arith.addf %41, %45 : vector<8x64xf32>
    %c2 = arith.constant 2 : index
    %c0_27 = arith.constant 0 : index
    %47 = memref.load %arg0[%c2, %c0_27] : memref<10x4xf32, #tpu.memory_space<smem>>
    %48 = vector.extract_strided_slice %35 {offsets = [0, 128], sizes = [8, 64], strides = [1, 1]} : vector<8x576xf32> to vector<8x64xf32>
    %49 = vector.broadcast %47 : f32 to vector<8x64xf32>
    %50 = arith.mulf %49, %48 : vector<8x64xf32>
    %51 = arith.addf %46, %50 : vector<8x64xf32>
    %c3 = arith.constant 3 : index
    %c0_28 = arith.constant 0 : index
    %52 = memref.load %arg0[%c3, %c0_28] : memref<10x4xf32, #tpu.memory_space<smem>>
    %53 = vector.extract_strided_slice %35 {offsets = [0, 192], sizes = [8, 64], strides = [1, 1]} : vector<8x576xf32> to vector<8x64xf32>
    %54 = vector.broadcast %52 : f32 to vector<8x64xf32>
    %55 = arith.mulf %54, %53 : vector<8x64xf32>
    %56 = arith.addf %51, %55 : vector<8x64xf32>
    %c4 = arith.constant 4 : index
    %c0_29 = arith.constant 0 : index
    %57 = memref.load %arg0[%c4, %c0_29] : memref<10x4xf32, #tpu.memory_space<smem>>
    %58 = vector.extract_strided_slice %35 {offsets = [0, 256], sizes = [8, 64], strides = [1, 1]} : vector<8x576xf32> to vector<8x64xf32>
    %59 = vector.broadcast %57 : f32 to vector<8x64xf32>
    %60 = arith.mulf %59, %58 : vector<8x64xf32>
    %61 = arith.addf %56, %60 : vector<8x64xf32>
    %c5 = arith.constant 5 : index
    %c0_30 = arith.constant 0 : index
    %62 = memref.load %arg0[%c5, %c0_30] : memref<10x4xf32, #tpu.memory_space<smem>>
    %63 = vector.extract_strided_slice %35 {offsets = [0, 320], sizes = [8, 64], strides = [1, 1]} : vector<8x576xf32> to vector<8x64xf32>
    %64 = vector.broadcast %62 : f32 to vector<8x64xf32>
    %65 = arith.mulf %64, %63 : vector<8x64xf32>
    %66 = arith.addf %61, %65 : vector<8x64xf32>
    %c6 = arith.constant 6 : index
    %c0_31 = arith.constant 0 : index
    %67 = memref.load %arg0[%c6, %c0_31] : memref<10x4xf32, #tpu.memory_space<smem>>
    %68 = vector.extract_strided_slice %35 {offsets = [0, 384], sizes = [8, 64], strides = [1, 1]} : vector<8x576xf32> to vector<8x64xf32>
    %69 = vector.broadcast %67 : f32 to vector<8x64xf32>
    %70 = arith.mulf %69, %68 : vector<8x64xf32>
    %71 = arith.addf %66, %70 : vector<8x64xf32>
    %c7 = arith.constant 7 : index
    %c0_32 = arith.constant 0 : index
    %72 = memref.load %arg0[%c7, %c0_32] : memref<10x4xf32, #tpu.memory_space<smem>>
    %73 = vector.extract_strided_slice %35 {offsets = [0, 448], sizes = [8, 64], strides = [1, 1]} : vector<8x576xf32> to vector<8x64xf32>
    %74 = vector.broadcast %72 : f32 to vector<8x64xf32>
    %75 = arith.mulf %74, %73 : vector<8x64xf32>
    %76 = arith.addf %71, %75 : vector<8x64xf32>
    %c8_33 = arith.constant 8 : index
    %c0_34 = arith.constant 0 : index
    %77 = memref.load %arg0[%c8_33, %c0_34] : memref<10x4xf32, #tpu.memory_space<smem>>
    %78 = vector.extract_strided_slice %35 {offsets = [0, 512], sizes = [8, 64], strides = [1, 1]} : vector<8x576xf32> to vector<8x64xf32>
    %79 = vector.broadcast %77 : f32 to vector<8x64xf32>
    %80 = arith.mulf %79, %78 : vector<8x64xf32>
    %81 = arith.addf %76, %80 : vector<8x64xf32>
    %c9 = arith.constant 9 : index
    %c0_35 = arith.constant 0 : index
    %82 = memref.load %arg0[%c9, %c0_35] : memref<10x4xf32, #tpu.memory_space<smem>>
    %83 = vector.broadcast %82 : f32 to vector<8x64xf32>
    %84 = arith.addf %81, %83 : vector<8x64xf32>
    %cst_36 = arith.constant 0.000000e+00 : f32
    %85 = vector.broadcast %cst_36 : f32 to vector<8x64xf32>
    %86 = arith.maximumf %84, %85 : vector<8x64xf32>
    %cst_37 = arith.constant 0.000000e+00 : f32
    %87 = vector.broadcast %cst_37 : f32 to vector<8x64xf32>
    %c0_38 = arith.constant 0 : index
    %c1_39 = arith.constant 1 : index
    %88 = memref.load %arg0[%c0_38, %c1_39] : memref<10x4xf32, #tpu.memory_space<smem>>
    %89 = vector.extract_strided_slice %35 {offsets = [0, 0], sizes = [8, 64], strides = [1, 1]} : vector<8x576xf32> to vector<8x64xf32>
    %90 = vector.broadcast %88 : f32 to vector<8x64xf32>
    %91 = arith.mulf %90, %89 : vector<8x64xf32>
    %92 = arith.addf %87, %91 : vector<8x64xf32>
    %c1_40 = arith.constant 1 : index
    %c1_41 = arith.constant 1 : index
    %93 = memref.load %arg0[%c1_40, %c1_41] : memref<10x4xf32, #tpu.memory_space<smem>>
    %94 = vector.extract_strided_slice %35 {offsets = [0, 64], sizes = [8, 64], strides = [1, 1]} : vector<8x576xf32> to vector<8x64xf32>
    %95 = vector.broadcast %93 : f32 to vector<8x64xf32>
    %96 = arith.mulf %95, %94 : vector<8x64xf32>
    %97 = arith.addf %92, %96 : vector<8x64xf32>
    %c2_42 = arith.constant 2 : index
    %c1_43 = arith.constant 1 : index
    %98 = memref.load %arg0[%c2_42, %c1_43] : memref<10x4xf32, #tpu.memory_space<smem>>
    %99 = vector.extract_strided_slice %35 {offsets = [0, 128], sizes = [8, 64], strides = [1, 1]} : vector<8x576xf32> to vector<8x64xf32>
    %100 = vector.broadcast %98 : f32 to vector<8x64xf32>
    %101 = arith.mulf %100, %99 : vector<8x64xf32>
    %102 = arith.addf %97, %101 : vector<8x64xf32>
    %c3_44 = arith.constant 3 : index
    %c1_45 = arith.constant 1 : index
    %103 = memref.load %arg0[%c3_44, %c1_45] : memref<10x4xf32, #tpu.memory_space<smem>>
    %104 = vector.extract_strided_slice %35 {offsets = [0, 192], sizes = [8, 64], strides = [1, 1]} : vector<8x576xf32> to vector<8x64xf32>
    %105 = vector.broadcast %103 : f32 to vector<8x64xf32>
    %106 = arith.mulf %105, %104 : vector<8x64xf32>
    %107 = arith.addf %102, %106 : vector<8x64xf32>
    %c4_46 = arith.constant 4 : index
    %c1_47 = arith.constant 1 : index
    %108 = memref.load %arg0[%c4_46, %c1_47] : memref<10x4xf32, #tpu.memory_space<smem>>
    %109 = vector.extract_strided_slice %35 {offsets = [0, 256], sizes = [8, 64], strides = [1, 1]} : vector<8x576xf32> to vector<8x64xf32>
    %110 = vector.broadcast %108 : f32 to vector<8x64xf32>
    %111 = arith.mulf %110, %109 : vector<8x64xf32>
    %112 = arith.addf %107, %111 : vector<8x64xf32>
    %c5_48 = arith.constant 5 : index
    %c1_49 = arith.constant 1 : index
    %113 = memref.load %arg0[%c5_48, %c1_49] : memref<10x4xf32, #tpu.memory_space<smem>>
    %114 = vector.extract_strided_slice %35 {offsets = [0, 320], sizes = [8, 64], strides = [1, 1]} : vector<8x576xf32> to vector<8x64xf32>
    %115 = vector.broadcast %113 : f32 to vector<8x64xf32>
    %116 = arith.mulf %115, %114 : vector<8x64xf32>
    %117 = arith.addf %112, %116 : vector<8x64xf32>
    %c6_50 = arith.constant 6 : index
    %c1_51 = arith.constant 1 : index
    %118 = memref.load %arg0[%c6_50, %c1_51] : memref<10x4xf32, #tpu.memory_space<smem>>
    %119 = vector.extract_strided_slice %35 {offsets = [0, 384], sizes = [8, 64], strides = [1, 1]} : vector<8x576xf32> to vector<8x64xf32>
    %120 = vector.broadcast %118 : f32 to vector<8x64xf32>
    %121 = arith.mulf %120, %119 : vector<8x64xf32>
    %122 = arith.addf %117, %121 : vector<8x64xf32>
    %c7_52 = arith.constant 7 : index
    %c1_53 = arith.constant 1 : index
    %123 = memref.load %arg0[%c7_52, %c1_53] : memref<10x4xf32, #tpu.memory_space<smem>>
    %124 = vector.extract_strided_slice %35 {offsets = [0, 448], sizes = [8, 64], strides = [1, 1]} : vector<8x576xf32> to vector<8x64xf32>
    %125 = vector.broadcast %123 : f32 to vector<8x64xf32>
    %126 = arith.mulf %125, %124 : vector<8x64xf32>
    %127 = arith.addf %122, %126 : vector<8x64xf32>
    %c8_54 = arith.constant 8 : index
    %c1_55 = arith.constant 1 : index
    %128 = memref.load %arg0[%c8_54, %c1_55] : memref<10x4xf32, #tpu.memory_space<smem>>
    %129 = vector.extract_strided_slice %35 {offsets = [0, 512], sizes = [8, 64], strides = [1, 1]} : vector<8x576xf32> to vector<8x64xf32>
    %130 = vector.broadcast %128 : f32 to vector<8x64xf32>
    %131 = arith.mulf %130, %129 : vector<8x64xf32>
    %132 = arith.addf %127, %131 : vector<8x64xf32>
    %c9_56 = arith.constant 9 : index
    %c1_57 = arith.constant 1 : index
    %133 = memref.load %arg0[%c9_56, %c1_57] : memref<10x4xf32, #tpu.memory_space<smem>>
    %134 = vector.broadcast %133 : f32 to vector<8x64xf32>
    %135 = arith.addf %132, %134 : vector<8x64xf32>
    %cst_58 = arith.constant 0.000000e+00 : f32
    %136 = vector.broadcast %cst_58 : f32 to vector<8x64xf32>
    %137 = arith.maximumf %135, %136 : vector<8x64xf32>
    %cst_59 = arith.constant 0.000000e+00 : f32
    %138 = vector.broadcast %cst_59 : f32 to vector<8x64xf32>
    %c0_60 = arith.constant 0 : index
    %c2_61 = arith.constant 2 : index
    %139 = memref.load %arg0[%c0_60, %c2_61] : memref<10x4xf32, #tpu.memory_space<smem>>
    %140 = vector.extract_strided_slice %35 {offsets = [0, 0], sizes = [8, 64], strides = [1, 1]} : vector<8x576xf32> to vector<8x64xf32>
    %141 = vector.broadcast %139 : f32 to vector<8x64xf32>
    %142 = arith.mulf %141, %140 : vector<8x64xf32>
    %143 = arith.addf %138, %142 : vector<8x64xf32>
    %c1_62 = arith.constant 1 : index
    %c2_63 = arith.constant 2 : index
    %144 = memref.load %arg0[%c1_62, %c2_63] : memref<10x4xf32, #tpu.memory_space<smem>>
    %145 = vector.extract_strided_slice %35 {offsets = [0, 64], sizes = [8, 64], strides = [1, 1]} : vector<8x576xf32> to vector<8x64xf32>
    %146 = vector.broadcast %144 : f32 to vector<8x64xf32>
    %147 = arith.mulf %146, %145 : vector<8x64xf32>
    %148 = arith.addf %143, %147 : vector<8x64xf32>
    %c2_64 = arith.constant 2 : index
    %c2_65 = arith.constant 2 : index
    %149 = memref.load %arg0[%c2_64, %c2_65] : memref<10x4xf32, #tpu.memory_space<smem>>
    %150 = vector.extract_strided_slice %35 {offsets = [0, 128], sizes = [8, 64], strides = [1, 1]} : vector<8x576xf32> to vector<8x64xf32>
    %151 = vector.broadcast %149 : f32 to vector<8x64xf32>
    %152 = arith.mulf %151, %150 : vector<8x64xf32>
    %153 = arith.addf %148, %152 : vector<8x64xf32>
    %c3_66 = arith.constant 3 : index
    %c2_67 = arith.constant 2 : index
    %154 = memref.load %arg0[%c3_66, %c2_67] : memref<10x4xf32, #tpu.memory_space<smem>>
    %155 = vector.extract_strided_slice %35 {offsets = [0, 192], sizes = [8, 64], strides = [1, 1]} : vector<8x576xf32> to vector<8x64xf32>
    %156 = vector.broadcast %154 : f32 to vector<8x64xf32>
    %157 = arith.mulf %156, %155 : vector<8x64xf32>
    %158 = arith.addf %153, %157 : vector<8x64xf32>
    %c4_68 = arith.constant 4 : index
    %c2_69 = arith.constant 2 : index
    %159 = memref.load %arg0[%c4_68, %c2_69] : memref<10x4xf32, #tpu.memory_space<smem>>
    %160 = vector.extract_strided_slice %35 {offsets = [0, 256], sizes = [8, 64], strides = [1, 1]} : vector<8x576xf32> to vector<8x64xf32>
    %161 = vector.broadcast %159 : f32 to vector<8x64xf32>
    %162 = arith.mulf %161, %160 : vector<8x64xf32>
    %163 = arith.addf %158, %162 : vector<8x64xf32>
    %c5_70 = arith.constant 5 : index
    %c2_71 = arith.constant 2 : index
    %164 = memref.load %arg0[%c5_70, %c2_71] : memref<10x4xf32, #tpu.memory_space<smem>>
    %165 = vector.extract_strided_slice %35 {offsets = [0, 320], sizes = [8, 64], strides = [1, 1]} : vector<8x576xf32> to vector<8x64xf32>
    %166 = vector.broadcast %164 : f32 to vector<8x64xf32>
    %167 = arith.mulf %166, %165 : vector<8x64xf32>
    %168 = arith.addf %163, %167 : vector<8x64xf32>
    %c6_72 = arith.constant 6 : index
    %c2_73 = arith.constant 2 : index
    %169 = memref.load %arg0[%c6_72, %c2_73] : memref<10x4xf32, #tpu.memory_space<smem>>
    %170 = vector.extract_strided_slice %35 {offsets = [0, 384], sizes = [8, 64], strides = [1, 1]} : vector<8x576xf32> to vector<8x64xf32>
    %171 = vector.broadcast %169 : f32 to vector<8x64xf32>
    %172 = arith.mulf %171, %170 : vector<8x64xf32>
    %173 = arith.addf %168, %172 : vector<8x64xf32>
    %c7_74 = arith.constant 7 : index
    %c2_75 = arith.constant 2 : index
    %174 = memref.load %arg0[%c7_74, %c2_75] : memref<10x4xf32, #tpu.memory_space<smem>>
    %175 = vector.extract_strided_slice %35 {offsets = [0, 448], sizes = [8, 64], strides = [1, 1]} : vector<8x576xf32> to vector<8x64xf32>
    %176 = vector.broadcast %174 : f32 to vector<8x64xf32>
    %177 = arith.mulf %176, %175 : vector<8x64xf32>
    %178 = arith.addf %173, %177 : vector<8x64xf32>
    %c8_76 = arith.constant 8 : index
    %c2_77 = arith.constant 2 : index
    %179 = memref.load %arg0[%c8_76, %c2_77] : memref<10x4xf32, #tpu.memory_space<smem>>
    %180 = vector.extract_strided_slice %35 {offsets = [0, 512], sizes = [8, 64], strides = [1, 1]} : vector<8x576xf32> to vector<8x64xf32>
    %181 = vector.broadcast %179 : f32 to vector<8x64xf32>
    %182 = arith.mulf %181, %180 : vector<8x64xf32>
    %183 = arith.addf %178, %182 : vector<8x64xf32>
    %c9_78 = arith.constant 9 : index
    %c2_79 = arith.constant 2 : index
    %184 = memref.load %arg0[%c9_78, %c2_79] : memref<10x4xf32, #tpu.memory_space<smem>>
    %185 = vector.broadcast %184 : f32 to vector<8x64xf32>
    %186 = arith.addf %183, %185 : vector<8x64xf32>
    %cst_80 = arith.constant 0.000000e+00 : f32
    %187 = vector.broadcast %cst_80 : f32 to vector<8x64xf32>
    %188 = arith.maximumf %186, %187 : vector<8x64xf32>
    %cst_81 = arith.constant 0.000000e+00 : f32
    %189 = vector.broadcast %cst_81 : f32 to vector<8x64xf32>
    %c0_82 = arith.constant 0 : index
    %c3_83 = arith.constant 3 : index
    %190 = memref.load %arg0[%c0_82, %c3_83] : memref<10x4xf32, #tpu.memory_space<smem>>
    %191 = vector.extract_strided_slice %35 {offsets = [0, 0], sizes = [8, 64], strides = [1, 1]} : vector<8x576xf32> to vector<8x64xf32>
    %192 = vector.broadcast %190 : f32 to vector<8x64xf32>
    %193 = arith.mulf %192, %191 : vector<8x64xf32>
    %194 = arith.addf %189, %193 : vector<8x64xf32>
    %c1_84 = arith.constant 1 : index
    %c3_85 = arith.constant 3 : index
    %195 = memref.load %arg0[%c1_84, %c3_85] : memref<10x4xf32, #tpu.memory_space<smem>>
    %196 = vector.extract_strided_slice %35 {offsets = [0, 64], sizes = [8, 64], strides = [1, 1]} : vector<8x576xf32> to vector<8x64xf32>
    %197 = vector.broadcast %195 : f32 to vector<8x64xf32>
    %198 = arith.mulf %197, %196 : vector<8x64xf32>
    %199 = arith.addf %194, %198 : vector<8x64xf32>
    %c2_86 = arith.constant 2 : index
    %c3_87 = arith.constant 3 : index
    %200 = memref.load %arg0[%c2_86, %c3_87] : memref<10x4xf32, #tpu.memory_space<smem>>
    %201 = vector.extract_strided_slice %35 {offsets = [0, 128], sizes = [8, 64], strides = [1, 1]} : vector<8x576xf32> to vector<8x64xf32>
    %202 = vector.broadcast %200 : f32 to vector<8x64xf32>
    %203 = arith.mulf %202, %201 : vector<8x64xf32>
    %204 = arith.addf %199, %203 : vector<8x64xf32>
    %c3_88 = arith.constant 3 : index
    %c3_89 = arith.constant 3 : index
    %205 = memref.load %arg0[%c3_88, %c3_89] : memref<10x4xf32, #tpu.memory_space<smem>>
    %206 = vector.extract_strided_slice %35 {offsets = [0, 192], sizes = [8, 64], strides = [1, 1]} : vector<8x576xf32> to vector<8x64xf32>
    %207 = vector.broadcast %205 : f32 to vector<8x64xf32>
    %208 = arith.mulf %207, %206 : vector<8x64xf32>
    %209 = arith.addf %204, %208 : vector<8x64xf32>
    %c4_90 = arith.constant 4 : index
    %c3_91 = arith.constant 3 : index
    %210 = memref.load %arg0[%c4_90, %c3_91] : memref<10x4xf32, #tpu.memory_space<smem>>
    %211 = vector.extract_strided_slice %35 {offsets = [0, 256], sizes = [8, 64], strides = [1, 1]} : vector<8x576xf32> to vector<8x64xf32>
    %212 = vector.broadcast %210 : f32 to vector<8x64xf32>
    %213 = arith.mulf %212, %211 : vector<8x64xf32>
    %214 = arith.addf %209, %213 : vector<8x64xf32>
    %c5_92 = arith.constant 5 : index
    %c3_93 = arith.constant 3 : index
    %215 = memref.load %arg0[%c5_92, %c3_93] : memref<10x4xf32, #tpu.memory_space<smem>>
    %216 = vector.extract_strided_slice %35 {offsets = [0, 320], sizes = [8, 64], strides = [1, 1]} : vector<8x576xf32> to vector<8x64xf32>
    %217 = vector.broadcast %215 : f32 to vector<8x64xf32>
    %218 = arith.mulf %217, %216 : vector<8x64xf32>
    %219 = arith.addf %214, %218 : vector<8x64xf32>
    %c6_94 = arith.constant 6 : index
    %c3_95 = arith.constant 3 : index
    %220 = memref.load %arg0[%c6_94, %c3_95] : memref<10x4xf32, #tpu.memory_space<smem>>
    %221 = vector.extract_strided_slice %35 {offsets = [0, 384], sizes = [8, 64], strides = [1, 1]} : vector<8x576xf32> to vector<8x64xf32>
    %222 = vector.broadcast %220 : f32 to vector<8x64xf32>
    %223 = arith.mulf %222, %221 : vector<8x64xf32>
    %224 = arith.addf %219, %223 : vector<8x64xf32>
    %c7_96 = arith.constant 7 : index
    %c3_97 = arith.constant 3 : index
    %225 = memref.load %arg0[%c7_96, %c3_97] : memref<10x4xf32, #tpu.memory_space<smem>>
    %226 = vector.extract_strided_slice %35 {offsets = [0, 448], sizes = [8, 64], strides = [1, 1]} : vector<8x576xf32> to vector<8x64xf32>
    %227 = vector.broadcast %225 : f32 to vector<8x64xf32>
    %228 = arith.mulf %227, %226 : vector<8x64xf32>
    %229 = arith.addf %224, %228 : vector<8x64xf32>
    %c8_98 = arith.constant 8 : index
    %c3_99 = arith.constant 3 : index
    %230 = memref.load %arg0[%c8_98, %c3_99] : memref<10x4xf32, #tpu.memory_space<smem>>
    %231 = vector.extract_strided_slice %35 {offsets = [0, 512], sizes = [8, 64], strides = [1, 1]} : vector<8x576xf32> to vector<8x64xf32>
    %232 = vector.broadcast %230 : f32 to vector<8x64xf32>
    %233 = arith.mulf %232, %231 : vector<8x64xf32>
    %234 = arith.addf %229, %233 : vector<8x64xf32>
    %c9_100 = arith.constant 9 : index
    %c3_101 = arith.constant 3 : index
    %235 = memref.load %arg0[%c9_100, %c3_101] : memref<10x4xf32, #tpu.memory_space<smem>>
    %236 = vector.broadcast %235 : f32 to vector<8x64xf32>
    %237 = arith.addf %234, %236 : vector<8x64xf32>
    %cst_102 = arith.constant 0.000000e+00 : f32
    %238 = vector.broadcast %cst_102 : f32 to vector<8x64xf32>
    %239 = arith.maximumf %237, %238 : vector<8x64xf32>
    %240 = tpu.concatenate %86, %137, %188, %239 in 1 : vector<8x64xf32>, vector<8x64xf32>, vector<8x64xf32>, vector<8x64xf32> -> vector<8x256xf32>
    %c0_103 = arith.constant 0 : index
    %c0_104 = arith.constant 0 : index
    %241 = vector.load %arg5[%c0_103, %c0_104] : memref<256x8xf32, #tpu.memory_space<vmem>>, vector<256x8xf32>
    %cst_105 = arith.constant dense<0.000000e+00> : vector<8x8xf32>
    %242 = tpu.matmul %240, %241, %cst_105 {dimension_numbers = #tpu.dot_dimension_numbers<[1], [0], [0], [1], [0, 0, 1, 1], [], []>} : vector<8x256xf32>, vector<256x8xf32>, vector<8x8xf32> -> vector<8x8xf32>
    %243 = vector.broadcast %26 : vector<1x8xf32> to vector<8x8xf32>
    %244 = arith.addf %242, %243 : vector<8x8xf32>
    %245 = math.tanh %244 : vector<8x8xf32>
    %cst_106 = arith.constant dense<0.000000e+00> : vector<8x128xf32>
    %246 = tpu.matmul %245, %0, %cst_106 {dimension_numbers = #tpu.dot_dimension_numbers<[1], [0], [0], [1], [0, 0, 1, 1], [], []>} : vector<8x8xf32>, vector<8x128xf32>, vector<8x128xf32> -> vector<8x128xf32>
    %247 = vector.broadcast %3 : vector<1x128xf32> to vector<8x128xf32>
    %248 = arith.addf %246, %247 : vector<8x128xf32>
    %c0_107 = arith.constant 0 : index
    %c0_108 = arith.constant 0 : index
    %249 = vector.load %arg2[%c0_107, %c0_108] : memref<64x2xf32, #tpu.memory_space<vmem>>, vector<64x2xf32>
    %cst_109 = arith.constant dense<0.000000e+00> : vector<64x128xf32>
    %250 = tpu.matmul %249, %1, %cst_109 {dimension_numbers = #tpu.dot_dimension_numbers<[1], [0], [0], [1], [0, 0, 1, 1], [], []>} : vector<64x2xf32>, vector<2x128xf32>, vector<64x128xf32> -> vector<64x128xf32>
    %251 = tpu.concatenate %248, %248, %248, %248, %248, %248, %248, %248 in 0 : vector<8x128xf32>, vector<8x128xf32>, vector<8x128xf32>, vector<8x128xf32>, vector<8x128xf32>, vector<8x128xf32>, vector<8x128xf32>, vector<8x128xf32> -> vector<64x128xf32>
    %252 = arith.addf %250, %251 : vector<64x128xf32>
    %c0_110 = arith.constant 0 : index
    %c0_111 = arith.constant 0 : index
    %253 = vector.load %arg8[%c0_110, %c0_111] : memref<64x128xf32, #tpu.memory_space<vmem>>, vector<64x128xf32>
    tpu.vector_store %arg8[%c0_110, %c0_111], %252 {strides = array<i32>} : memref<64x128xf32, #tpu.memory_space<vmem>>, vector<64x128xf32>,
    %254 = tpu.iota {dimensions = array<i32: 1>} : vector<8x128xi32>
    %c64_i32 = arith.constant 64 : i32
    %255 = vector.broadcast %c64_i32 : i32 to vector<8x128xi32>
    %256 = arith.cmpi sge, %254, %255 : vector<8x128xi32>
    %c96_i32 = arith.constant 96 : i32
    %257 = vector.broadcast %c96_i32 : i32 to vector<8x128xi32>
    %258 = arith.cmpi slt, %254, %257 : vector<8x128xi32>
    %259 = arith.andi %256, %258 : vector<8x128xi1>
    %cst_112 = arith.constant 1.000000e+00 : f32
    %cst_113 = arith.constant 5.000000e-01 : f32
    %260 = vector.broadcast %cst_112 : f32 to vector<8x128xf32>
    %261 = vector.broadcast %cst_113 : f32 to vector<8x128xf32>
    %262 = arith.select %259, %260, %261 : vector<8x128xi1>, vector<8x128xf32>
    %cst_114 = arith.constant 0.000000e+00 : f32
    %cst_115 = arith.constant 5.000000e-01 : f32
    %263 = vector.broadcast %cst_114 : f32 to vector<8x128xf32>
    %264 = vector.broadcast %cst_115 : f32 to vector<8x128xf32>
    %265 = arith.select %259, %263, %264 : vector<8x128xi1>, vector<8x128xf32>
    %c0_116 = arith.constant 0 : index
    %c0_117 = arith.constant 0 : index
    %266 = vector.load %arg8[%c0_116, %c0_117] : memref<64x128xf32, #tpu.memory_space<vmem>>, vector<8x128xf32>
    %cst_118 = arith.constant dense<0.000000e+00> : vector<8x128xf32>
    %267 = tpu.matmul %34, %2, %cst_118 {dimension_numbers = #tpu.dot_dimension_numbers<[1], [0], [0], [1], [0, 0, 1, 1], [], []>} : vector<8x32xf32>, vector<32x128xf32>, vector<8x128xf32> -> vector<8x128xf32>
    %268 = arith.addf %266, %267 : vector<8x128xf32>
    %269 = arith.mulf %262, %268 : vector<8x128xf32>
    %270 = math.tanh %269 : vector<8x128xf32>
    %271 = arith.mulf %262, %270 : vector<8x128xf32>
    %272 = arith.addf %271, %265 : vector<8x128xf32>
    %273 = vector.extract_strided_slice %272 {offsets = [0, 0], sizes = [8, 32], strides = [1, 1]} : vector<8x128xf32> to vector<8x32xf32>
    %274 = vector.extract_strided_slice %272 {offsets = [0, 32], sizes = [8, 32], strides = [1, 1]} : vector<8x128xf32> to vector<8x32xf32>
    %275 = vector.extract_strided_slice %272 {offsets = [0, 64], sizes = [8, 32], strides = [1, 1]} : vector<8x128xf32> to vector<8x32xf32>
    %276 = vector.extract_strided_slice %272 {offsets = [0, 96], sizes = [8, 32], strides = [1, 1]} : vector<8x128xf32> to vector<8x32xf32>
    %277 = arith.mulf %274, %34 : vector<8x32xf32>
    %278 = arith.mulf %273, %275 : vector<8x32xf32>
    %279 = arith.addf %277, %278 : vector<8x32xf32>
    %280 = math.tanh %279 : vector<8x32xf32>
    %281 = arith.mulf %276, %280 : vector<8x32xf32>
    %c0_119 = arith.constant 0 : index
    %c0_120 = arith.constant 0 : index
    %282 = vector.load %arg7[%c0_119, %c0_120] : memref<64x32xf32, #tpu.memory_space<vmem>>, vector<8x32xf32>
    tpu.vector_store %arg7[%c0_119, %c0_120], %281 {strides = array<i32>} : memref<64x32xf32, #tpu.memory_space<vmem>>, vector<8x32xf32>,
    %c8_121 = arith.constant 8 : index
    %c0_122 = arith.constant 0 : index
    %283 = vector.load %arg8[%c8_121, %c0_122] : memref<64x128xf32, #tpu.memory_space<vmem>>, vector<8x128xf32>
    %cst_123 = arith.constant dense<0.000000e+00> : vector<8x128xf32>
    %284 = tpu.matmul %281, %2, %cst_123 {dimension_numbers = #tpu.dot_dimension_numbers<[1], [0], [0], [1], [0, 0, 1, 1], [], []>} : vector<8x32xf32>, vector<32x128xf32>, vector<8x128xf32> -> vector<8x128xf32>
    %285 = arith.addf %283, %284 : vector<8x128xf32>
    %286 = arith.mulf %262, %285 : vector<8x128xf32>
    %287 = math.tanh %286 : vector<8x128xf32>
    %288 = arith.mulf %262, %287 : vector<8x128xf32>
    %289 = arith.addf %288, %265 : vector<8x128xf32>
    %290 = vector.extract_strided_slice %289 {offsets = [0, 0], sizes = [8, 32], strides = [1, 1]} : vector<8x128xf32> to vector<8x32xf32>
    %291 = vector.extract_strided_slice %289 {offsets = [0, 32], sizes = [8, 32], strides = [1, 1]} : vector<8x128xf32> to vector<8x32xf32>
    %292 = vector.extract_strided_slice %289 {offsets = [0, 64], sizes = [8, 32], strides = [1, 1]} : vector<8x128xf32> to vector<8x32xf32>
    %293 = vector.extract_strided_slice %289 {offsets = [0, 96], sizes = [8, 32], strides = [1, 1]} : vector<8x128xf32> to vector<8x32xf32>
    %294 = arith.mulf %291, %279 : vector<8x32xf32>
    %295 = arith.mulf %290, %292 : vector<8x32xf32>
    %296 = arith.addf %294, %295 : vector<8x32xf32>
    %297 = math.tanh %296 : vector<8x32xf32>
    %298 = arith.mulf %293, %297 : vector<8x32xf32>
    %c8_124 = arith.constant 8 : index
    %c0_125 = arith.constant 0 : index
    %299 = vector.load %arg7[%c8_124, %c0_125] : memref<64x32xf32, #tpu.memory_space<vmem>>, vector<8x32xf32>
    tpu.vector_store %arg7[%c8_124, %c0_125], %298 {strides = array<i32>} : memref<64x32xf32, #tpu.memory_space<vmem>>, vector<8x32xf32>,
    %c16_126 = arith.constant 16 : index
    %c0_127 = arith.constant 0 : index
    %300 = vector.load %arg8[%c16_126, %c0_127] : memref<64x128xf32, #tpu.memory_space<vmem>>, vector<8x128xf32>
    %cst_128 = arith.constant dense<0.000000e+00> : vector<8x128xf32>
    %301 = tpu.matmul %298, %2, %cst_128 {dimension_numbers = #tpu.dot_dimension_numbers<[1], [0], [0], [1], [0, 0, 1, 1], [], []>} : vector<8x32xf32>, vector<32x128xf32>, vector<8x128xf32> -> vector<8x128xf32>
    %302 = arith.addf %300, %301 : vector<8x128xf32>
    %303 = arith.mulf %262, %302 : vector<8x128xf32>
    %304 = math.tanh %303 : vector<8x128xf32>
    %305 = arith.mulf %262, %304 : vector<8x128xf32>
    %306 = arith.addf %305, %265 : vector<8x128xf32>
    %307 = vector.extract_strided_slice %306 {offsets = [0, 0], sizes = [8, 32], strides = [1, 1]} : vector<8x128xf32> to vector<8x32xf32>
    %308 = vector.extract_strided_slice %306 {offsets = [0, 32], sizes = [8, 32], strides = [1, 1]} : vector<8x128xf32> to vector<8x32xf32>
    %309 = vector.extract_strided_slice %306 {offsets = [0, 64], sizes = [8, 32], strides = [1, 1]} : vector<8x128xf32> to vector<8x32xf32>
    %310 = vector.extract_strided_slice %306 {offsets = [0, 96], sizes = [8, 32], strides = [1, 1]} : vector<8x128xf32> to vector<8x32xf32>
    %311 = arith.mulf %308, %296 : vector<8x32xf32>
    %312 = arith.mulf %307, %309 : vector<8x32xf32>
    %313 = arith.addf %311, %312 : vector<8x32xf32>
    %314 = math.tanh %313 : vector<8x32xf32>
    %315 = arith.mulf %310, %314 : vector<8x32xf32>
    %c16_129 = arith.constant 16 : index
    %c0_130 = arith.constant 0 : index
    %316 = vector.load %arg7[%c16_129, %c0_130] : memref<64x32xf32, #tpu.memory_space<vmem>>, vector<8x32xf32>
    tpu.vector_store %arg7[%c16_129, %c0_130], %315 {strides = array<i32>} : memref<64x32xf32, #tpu.memory_space<vmem>>, vector<8x32xf32>,
    %c24 = arith.constant 24 : index
    %c0_131 = arith.constant 0 : index
    %317 = vector.load %arg8[%c24, %c0_131] : memref<64x128xf32, #tpu.memory_space<vmem>>, vector<8x128xf32>
    %cst_132 = arith.constant dense<0.000000e+00> : vector<8x128xf32>
    %318 = tpu.matmul %315, %2, %cst_132 {dimension_numbers = #tpu.dot_dimension_numbers<[1], [0], [0], [1], [0, 0, 1, 1], [], []>} : vector<8x32xf32>, vector<32x128xf32>, vector<8x128xf32> -> vector<8x128xf32>
    %319 = arith.addf %317, %318 : vector<8x128xf32>
    %320 = arith.mulf %262, %319 : vector<8x128xf32>
    %321 = math.tanh %320 : vector<8x128xf32>
    %322 = arith.mulf %262, %321 : vector<8x128xf32>
    %323 = arith.addf %322, %265 : vector<8x128xf32>
    %324 = vector.extract_strided_slice %323 {offsets = [0, 0], sizes = [8, 32], strides = [1, 1]} : vector<8x128xf32> to vector<8x32xf32>
    %325 = vector.extract_strided_slice %323 {offsets = [0, 32], sizes = [8, 32], strides = [1, 1]} : vector<8x128xf32> to vector<8x32xf32>
    %326 = vector.extract_strided_slice %323 {offsets = [0, 64], sizes = [8, 32], strides = [1, 1]} : vector<8x128xf32> to vector<8x32xf32>
    %327 = vector.extract_strided_slice %323 {offsets = [0, 96], sizes = [8, 32], strides = [1, 1]} : vector<8x128xf32> to vector<8x32xf32>
    %328 = arith.mulf %325, %313 : vector<8x32xf32>
    %329 = arith.mulf %324, %326 : vector<8x32xf32>
    %330 = arith.addf %328, %329 : vector<8x32xf32>
    %331 = math.tanh %330 : vector<8x32xf32>
    %332 = arith.mulf %327, %331 : vector<8x32xf32>
    %c24_133 = arith.constant 24 : index
    %c0_134 = arith.constant 0 : index
    %333 = vector.load %arg7[%c24_133, %c0_134] : memref<64x32xf32, #tpu.memory_space<vmem>>, vector<8x32xf32>
    tpu.vector_store %arg7[%c24_133, %c0_134], %332 {strides = array<i32>} : memref<64x32xf32, #tpu.memory_space<vmem>>, vector<8x32xf32>,
    %c32 = arith.constant 32 : index
    %c0_135 = arith.constant 0 : index
    %334 = vector.load %arg8[%c32, %c0_135] : memref<64x128xf32, #tpu.memory_space<vmem>>, vector<8x128xf32>
    %cst_136 = arith.constant dense<0.000000e+00> : vector<8x128xf32>
    %335 = tpu.matmul %332, %2, %cst_136 {dimension_numbers = #tpu.dot_dimension_numbers<[1], [0], [0], [1], [0, 0, 1, 1], [], []>} : vector<8x32xf32>, vector<32x128xf32>, vector<8x128xf32> -> vector<8x128xf32>
    %336 = arith.addf %334, %335 : vector<8x128xf32>
    %337 = arith.mulf %262, %336 : vector<8x128xf32>
    %338 = math.tanh %337 : vector<8x128xf32>
    %339 = arith.mulf %262, %338 : vector<8x128xf32>
    %340 = arith.addf %339, %265 : vector<8x128xf32>
    %341 = vector.extract_strided_slice %340 {offsets = [0, 0], sizes = [8, 32], strides = [1, 1]} : vector<8x128xf32> to vector<8x32xf32>
    %342 = vector.extract_strided_slice %340 {offsets = [0, 32], sizes = [8, 32], strides = [1, 1]} : vector<8x128xf32> to vector<8x32xf32>
    %343 = vector.extract_strided_slice %340 {offsets = [0, 64], sizes = [8, 32], strides = [1, 1]} : vector<8x128xf32> to vector<8x32xf32>
    %344 = vector.extract_strided_slice %340 {offsets = [0, 96], sizes = [8, 32], strides = [1, 1]} : vector<8x128xf32> to vector<8x32xf32>
    %345 = arith.mulf %342, %330 : vector<8x32xf32>
    %346 = arith.mulf %341, %343 : vector<8x32xf32>
    %347 = arith.addf %345, %346 : vector<8x32xf32>
    %348 = math.tanh %347 : vector<8x32xf32>
    %349 = arith.mulf %344, %348 : vector<8x32xf32>
    %c32_137 = arith.constant 32 : index
    %c0_138 = arith.constant 0 : index
    %350 = vector.load %arg7[%c32_137, %c0_138] : memref<64x32xf32, #tpu.memory_space<vmem>>, vector<8x32xf32>
    tpu.vector_store %arg7[%c32_137, %c0_138], %349 {strides = array<i32>} : memref<64x32xf32, #tpu.memory_space<vmem>>, vector<8x32xf32>,
    %c40 = arith.constant 40 : index
    %c0_139 = arith.constant 0 : index
    %351 = vector.load %arg8[%c40, %c0_139] : memref<64x128xf32, #tpu.memory_space<vmem>>, vector<8x128xf32>
    %cst_140 = arith.constant dense<0.000000e+00> : vector<8x128xf32>
    %352 = tpu.matmul %349, %2, %cst_140 {dimension_numbers = #tpu.dot_dimension_numbers<[1], [0], [0], [1], [0, 0, 1, 1], [], []>} : vector<8x32xf32>, vector<32x128xf32>, vector<8x128xf32> -> vector<8x128xf32>
    %353 = arith.addf %351, %352 : vector<8x128xf32>
    %354 = arith.mulf %262, %353 : vector<8x128xf32>
    %355 = math.tanh %354 : vector<8x128xf32>
    %356 = arith.mulf %262, %355 : vector<8x128xf32>
    %357 = arith.addf %356, %265 : vector<8x128xf32>
    %358 = vector.extract_strided_slice %357 {offsets = [0, 0], sizes = [8, 32], strides = [1, 1]} : vector<8x128xf32> to vector<8x32xf32>
    %359 = vector.extract_strided_slice %357 {offsets = [0, 32], sizes = [8, 32], strides = [1, 1]} : vector<8x128xf32> to vector<8x32xf32>
    %360 = vector.extract_strided_slice %357 {offsets = [0, 64], sizes = [8, 32], strides = [1, 1]} : vector<8x128xf32> to vector<8x32xf32>
    %361 = vector.extract_strided_slice %357 {offsets = [0, 96], sizes = [8, 32], strides = [1, 1]} : vector<8x128xf32> to vector<8x32xf32>
    %362 = arith.mulf %359, %347 : vector<8x32xf32>
    %363 = arith.mulf %358, %360 : vector<8x32xf32>
    %364 = arith.addf %362, %363 : vector<8x32xf32>
    %365 = math.tanh %364 : vector<8x32xf32>
    %366 = arith.mulf %361, %365 : vector<8x32xf32>
    %c40_141 = arith.constant 40 : index
    %c0_142 = arith.constant 0 : index
    %367 = vector.load %arg7[%c40_141, %c0_142] : memref<64x32xf32, #tpu.memory_space<vmem>>, vector<8x32xf32>
    tpu.vector_store %arg7[%c40_141, %c0_142], %366 {strides = array<i32>} : memref<64x32xf32, #tpu.memory_space<vmem>>, vector<8x32xf32>,
    %c48_143 = arith.constant 48 : index
    %c0_144 = arith.constant 0 : index
    %368 = vector.load %arg8[%c48_143, %c0_144] : memref<64x128xf32, #tpu.memory_space<vmem>>, vector<8x128xf32>
    %cst_145 = arith.constant dense<0.000000e+00> : vector<8x128xf32>
    %369 = tpu.matmul %366, %2, %cst_145 {dimension_numbers = #tpu.dot_dimension_numbers<[1], [0], [0], [1], [0, 0, 1, 1], [], []>} : vector<8x32xf32>, vector<32x128xf32>, vector<8x128xf32> -> vector<8x128xf32>
    %370 = arith.addf %368, %369 : vector<8x128xf32>
    %371 = arith.mulf %262, %370 : vector<8x128xf32>
    %372 = math.tanh %371 : vector<8x128xf32>
    %373 = arith.mulf %262, %372 : vector<8x128xf32>
    %374 = arith.addf %373, %265 : vector<8x128xf32>
    %375 = vector.extract_strided_slice %374 {offsets = [0, 0], sizes = [8, 32], strides = [1, 1]} : vector<8x128xf32> to vector<8x32xf32>
    %376 = vector.extract_strided_slice %374 {offsets = [0, 32], sizes = [8, 32], strides = [1, 1]} : vector<8x128xf32> to vector<8x32xf32>
    %377 = vector.extract_strided_slice %374 {offsets = [0, 64], sizes = [8, 32], strides = [1, 1]} : vector<8x128xf32> to vector<8x32xf32>
    %378 = vector.extract_strided_slice %374 {offsets = [0, 96], sizes = [8, 32], strides = [1, 1]} : vector<8x128xf32> to vector<8x32xf32>
    %379 = arith.mulf %376, %364 : vector<8x32xf32>
    %380 = arith.mulf %375, %377 : vector<8x32xf32>
    %381 = arith.addf %379, %380 : vector<8x32xf32>
    %382 = math.tanh %381 : vector<8x32xf32>
    %383 = arith.mulf %378, %382 : vector<8x32xf32>
    %c48_146 = arith.constant 48 : index
    %c0_147 = arith.constant 0 : index
    %384 = vector.load %arg7[%c48_146, %c0_147] : memref<64x32xf32, #tpu.memory_space<vmem>>, vector<8x32xf32>
    tpu.vector_store %arg7[%c48_146, %c0_147], %383 {strides = array<i32>} : memref<64x32xf32, #tpu.memory_space<vmem>>, vector<8x32xf32>,
    %c56_148 = arith.constant 56 : index
    %c0_149 = arith.constant 0 : index
    %385 = vector.load %arg8[%c56_148, %c0_149] : memref<64x128xf32, #tpu.memory_space<vmem>>, vector<8x128xf32>
    %cst_150 = arith.constant dense<0.000000e+00> : vector<8x128xf32>
    %386 = tpu.matmul %383, %2, %cst_150 {dimension_numbers = #tpu.dot_dimension_numbers<[1], [0], [0], [1], [0, 0, 1, 1], [], []>} : vector<8x32xf32>, vector<32x128xf32>, vector<8x128xf32> -> vector<8x128xf32>
    %387 = arith.addf %385, %386 : vector<8x128xf32>
    %388 = arith.mulf %262, %387 : vector<8x128xf32>
    %389 = math.tanh %388 : vector<8x128xf32>
    %390 = arith.mulf %262, %389 : vector<8x128xf32>
    %391 = arith.addf %390, %265 : vector<8x128xf32>
    %392 = vector.extract_strided_slice %391 {offsets = [0, 0], sizes = [8, 32], strides = [1, 1]} : vector<8x128xf32> to vector<8x32xf32>
    %393 = vector.extract_strided_slice %391 {offsets = [0, 32], sizes = [8, 32], strides = [1, 1]} : vector<8x128xf32> to vector<8x32xf32>
    %394 = vector.extract_strided_slice %391 {offsets = [0, 64], sizes = [8, 32], strides = [1, 1]} : vector<8x128xf32> to vector<8x32xf32>
    %395 = vector.extract_strided_slice %391 {offsets = [0, 96], sizes = [8, 32], strides = [1, 1]} : vector<8x128xf32> to vector<8x32xf32>
    %396 = arith.mulf %393, %381 : vector<8x32xf32>
    %397 = arith.mulf %392, %394 : vector<8x32xf32>
    %398 = arith.addf %396, %397 : vector<8x32xf32>
    %399 = math.tanh %398 : vector<8x32xf32>
    %400 = arith.mulf %395, %399 : vector<8x32xf32>
    %c56_151 = arith.constant 56 : index
    %c0_152 = arith.constant 0 : index
    %401 = vector.load %arg7[%c56_151, %c0_152] : memref<64x32xf32, #tpu.memory_space<vmem>>, vector<8x32xf32>
    tpu.vector_store %arg7[%c56_151, %c0_152], %400 {strides = array<i32>} : memref<64x32xf32, #tpu.memory_space<vmem>>, vector<8x32xf32>,
    %c0_153 = arith.constant 0 : index
    %c0_154 = arith.constant 0 : index
    %402 = vector.load %arg7[%c0_153, %c0_154] : memref<64x32xf32, #tpu.memory_space<vmem>>, vector<64x32xf32>
    %cst_155 = arith.constant dense<0.000000e+00> : vector<64x128xf32>
    %403 = tpu.matmul %402, %4, %cst_155 {dimension_numbers = #tpu.dot_dimension_numbers<[1], [0], [0], [1], [0, 0, 1, 1], [], []>} : vector<64x32xf32>, vector<32x128xf32>, vector<64x128xf32> -> vector<64x128xf32>
    %404 = vector.broadcast %6 : vector<1x128xf32> to vector<64x128xf32>
    %405 = arith.addf %403, %404 : vector<64x128xf32>
    %c0_156 = arith.constant 0 : index
    %c0_157 = arith.constant 0 : index
    %406 = vector.load %arg8[%c0_156, %c0_157] : memref<64x128xf32, #tpu.memory_space<vmem>>, vector<64x128xf32>
    tpu.vector_store %arg8[%c0_156, %c0_157], %405 {strides = array<i32>} : memref<64x128xf32, #tpu.memory_space<vmem>>, vector<64x128xf32>,
    %c0_158 = arith.constant 0 : index
    %c0_159 = arith.constant 0 : index
    %407 = vector.load %arg8[%c0_158, %c0_159] : memref<64x128xf32, #tpu.memory_space<vmem>>, vector<8x128xf32>
    %cst_160 = arith.constant dense<0.000000e+00> : vector<8x128xf32>
    %408 = tpu.matmul %34, %5, %cst_160 {dimension_numbers = #tpu.dot_dimension_numbers<[1], [0], [0], [1], [0, 0, 1, 1], [], []>} : vector<8x32xf32>, vector<32x128xf32>, vector<8x128xf32> -> vector<8x128xf32>
    %409 = arith.addf %407, %408 : vector<8x128xf32>
    %410 = arith.mulf %262, %409 : vector<8x128xf32>
    %411 = math.tanh %410 : vector<8x128xf32>
    %412 = arith.mulf %262, %411 : vector<8x128xf32>
    %413 = arith.addf %412, %265 : vector<8x128xf32>
    %414 = vector.extract_strided_slice %413 {offsets = [0, 0], sizes = [8, 32], strides = [1, 1]} : vector<8x128xf32> to vector<8x32xf32>
    %415 = vector.extract_strided_slice %413 {offsets = [0, 32], sizes = [8, 32], strides = [1, 1]} : vector<8x128xf32> to vector<8x32xf32>
    %416 = vector.extract_strided_slice %413 {offsets = [0, 64], sizes = [8, 32], strides = [1, 1]} : vector<8x128xf32> to vector<8x32xf32>
    %417 = vector.extract_strided_slice %413 {offsets = [0, 96], sizes = [8, 32], strides = [1, 1]} : vector<8x128xf32> to vector<8x32xf32>
    %418 = arith.mulf %415, %34 : vector<8x32xf32>
    %419 = arith.mulf %414, %416 : vector<8x32xf32>
    %420 = arith.addf %418, %419 : vector<8x32xf32>
    %421 = math.tanh %420 : vector<8x32xf32>
    %422 = arith.mulf %417, %421 : vector<8x32xf32>
    %c0_161 = arith.constant 0 : index
    %c0_162 = arith.constant 0 : index
    %423 = vector.load %arg7[%c0_161, %c0_162] : memref<64x32xf32, #tpu.memory_space<vmem>>, vector<8x32xf32>
    tpu.vector_store %arg7[%c0_161, %c0_162], %422 {strides = array<i32>} : memref<64x32xf32, #tpu.memory_space<vmem>>, vector<8x32xf32>,
    %c8_163 = arith.constant 8 : index
    %c0_164 = arith.constant 0 : index
    %424 = vector.load %arg8[%c8_163, %c0_164] : memref<64x128xf32, #tpu.memory_space<vmem>>, vector<8x128xf32>
    %cst_165 = arith.constant dense<0.000000e+00> : vector<8x128xf32>
    %425 = tpu.matmul %422, %5, %cst_165 {dimension_numbers = #tpu.dot_dimension_numbers<[1], [0], [0], [1], [0, 0, 1, 1], [], []>} : vector<8x32xf32>, vector<32x128xf32>, vector<8x128xf32> -> vector<8x128xf32>
    %426 = arith.addf %424, %425 : vector<8x128xf32>
    %427 = arith.mulf %262, %426 : vector<8x128xf32>
    %428 = math.tanh %427 : vector<8x128xf32>
    %429 = arith.mulf %262, %428 : vector<8x128xf32>
    %430 = arith.addf %429, %265 : vector<8x128xf32>
    %431 = vector.extract_strided_slice %430 {offsets = [0, 0], sizes = [8, 32], strides = [1, 1]} : vector<8x128xf32> to vector<8x32xf32>
    %432 = vector.extract_strided_slice %430 {offsets = [0, 32], sizes = [8, 32], strides = [1, 1]} : vector<8x128xf32> to vector<8x32xf32>
    %433 = vector.extract_strided_slice %430 {offsets = [0, 64], sizes = [8, 32], strides = [1, 1]} : vector<8x128xf32> to vector<8x32xf32>
    %434 = vector.extract_strided_slice %430 {offsets = [0, 96], sizes = [8, 32], strides = [1, 1]} : vector<8x128xf32> to vector<8x32xf32>
    %435 = arith.mulf %432, %420 : vector<8x32xf32>
    %436 = arith.mulf %431, %433 : vector<8x32xf32>
    %437 = arith.addf %435, %436 : vector<8x32xf32>
    %438 = math.tanh %437 : vector<8x32xf32>
    %439 = arith.mulf %434, %438 : vector<8x32xf32>
    %c8_166 = arith.constant 8 : index
    %c0_167 = arith.constant 0 : index
    %440 = vector.load %arg7[%c8_166, %c0_167] : memref<64x32xf32, #tpu.memory_space<vmem>>, vector<8x32xf32>
    tpu.vector_store %arg7[%c8_166, %c0_167], %439 {strides = array<i32>} : memref<64x32xf32, #tpu.memory_space<vmem>>, vector<8x32xf32>,
    %c16_168 = arith.constant 16 : index
    %c0_169 = arith.constant 0 : index
    %441 = vector.load %arg8[%c16_168, %c0_169] : memref<64x128xf32, #tpu.memory_space<vmem>>, vector<8x128xf32>
    %cst_170 = arith.constant dense<0.000000e+00> : vector<8x128xf32>
    %442 = tpu.matmul %439, %5, %cst_170 {dimension_numbers = #tpu.dot_dimension_numbers<[1], [0], [0], [1], [0, 0, 1, 1], [], []>} : vector<8x32xf32>, vector<32x128xf32>, vector<8x128xf32> -> vector<8x128xf32>
    %443 = arith.addf %441, %442 : vector<8x128xf32>
    %444 = arith.mulf %262, %443 : vector<8x128xf32>
    %445 = math.tanh %444 : vector<8x128xf32>
    %446 = arith.mulf %262, %445 : vector<8x128xf32>
    %447 = arith.addf %446, %265 : vector<8x128xf32>
    %448 = vector.extract_strided_slice %447 {offsets = [0, 0], sizes = [8, 32], strides = [1, 1]} : vector<8x128xf32> to vector<8x32xf32>
    %449 = vector.extract_strided_slice %447 {offsets = [0, 32], sizes = [8, 32], strides = [1, 1]} : vector<8x128xf32> to vector<8x32xf32>
    %450 = vector.extract_strided_slice %447 {offsets = [0, 64], sizes = [8, 32], strides = [1, 1]} : vector<8x128xf32> to vector<8x32xf32>
    %451 = vector.extract_strided_slice %447 {offsets = [0, 96], sizes = [8, 32], strides = [1, 1]} : vector<8x128xf32> to vector<8x32xf32>
    %452 = arith.mulf %449, %437 : vector<8x32xf32>
    %453 = arith.mulf %448, %450 : vector<8x32xf32>
    %454 = arith.addf %452, %453 : vector<8x32xf32>
    %455 = math.tanh %454 : vector<8x32xf32>
    %456 = arith.mulf %451, %455 : vector<8x32xf32>
    %c16_171 = arith.constant 16 : index
    %c0_172 = arith.constant 0 : index
    %457 = vector.load %arg7[%c16_171, %c0_172] : memref<64x32xf32, #tpu.memory_space<vmem>>, vector<8x32xf32>
    tpu.vector_store %arg7[%c16_171, %c0_172], %456 {strides = array<i32>} : memref<64x32xf32, #tpu.memory_space<vmem>>, vector<8x32xf32>,
    %c24_173 = arith.constant 24 : index
    %c0_174 = arith.constant 0 : index
    %458 = vector.load %arg8[%c24_173, %c0_174] : memref<64x128xf32, #tpu.memory_space<vmem>>, vector<8x128xf32>
    %cst_175 = arith.constant dense<0.000000e+00> : vector<8x128xf32>
    %459 = tpu.matmul %456, %5, %cst_175 {dimension_numbers = #tpu.dot_dimension_numbers<[1], [0], [0], [1], [0, 0, 1, 1], [], []>} : vector<8x32xf32>, vector<32x128xf32>, vector<8x128xf32> -> vector<8x128xf32>
    %460 = arith.addf %458, %459 : vector<8x128xf32>
    %461 = arith.mulf %262, %460 : vector<8x128xf32>
    %462 = math.tanh %461 : vector<8x128xf32>
    %463 = arith.mulf %262, %462 : vector<8x128xf32>
    %464 = arith.addf %463, %265 : vector<8x128xf32>
    %465 = vector.extract_strided_slice %464 {offsets = [0, 0], sizes = [8, 32], strides = [1, 1]} : vector<8x128xf32> to vector<8x32xf32>
    %466 = vector.extract_strided_slice %464 {offsets = [0, 32], sizes = [8, 32], strides = [1, 1]} : vector<8x128xf32> to vector<8x32xf32>
    %467 = vector.extract_strided_slice %464 {offsets = [0, 64], sizes = [8, 32], strides = [1, 1]} : vector<8x128xf32> to vector<8x32xf32>
    %468 = vector.extract_strided_slice %464 {offsets = [0, 96], sizes = [8, 32], strides = [1, 1]} : vector<8x128xf32> to vector<8x32xf32>
    %469 = arith.mulf %466, %454 : vector<8x32xf32>
    %470 = arith.mulf %465, %467 : vector<8x32xf32>
    %471 = arith.addf %469, %470 : vector<8x32xf32>
    %472 = math.tanh %471 : vector<8x32xf32>
    %473 = arith.mulf %468, %472 : vector<8x32xf32>
    %c24_176 = arith.constant 24 : index
    %c0_177 = arith.constant 0 : index
    %474 = vector.load %arg7[%c24_176, %c0_177] : memref<64x32xf32, #tpu.memory_space<vmem>>, vector<8x32xf32>
    tpu.vector_store %arg7[%c24_176, %c0_177], %473 {strides = array<i32>} : memref<64x32xf32, #tpu.memory_space<vmem>>, vector<8x32xf32>,
    %c32_178 = arith.constant 32 : index
    %c0_179 = arith.constant 0 : index
    %475 = vector.load %arg8[%c32_178, %c0_179] : memref<64x128xf32, #tpu.memory_space<vmem>>, vector<8x128xf32>
    %cst_180 = arith.constant dense<0.000000e+00> : vector<8x128xf32>
    %476 = tpu.matmul %473, %5, %cst_180 {dimension_numbers = #tpu.dot_dimension_numbers<[1], [0], [0], [1], [0, 0, 1, 1], [], []>} : vector<8x32xf32>, vector<32x128xf32>, vector<8x128xf32> -> vector<8x128xf32>
    %477 = arith.addf %475, %476 : vector<8x128xf32>
    %478 = arith.mulf %262, %477 : vector<8x128xf32>
    %479 = math.tanh %478 : vector<8x128xf32>
    %480 = arith.mulf %262, %479 : vector<8x128xf32>
    %481 = arith.addf %480, %265 : vector<8x128xf32>
    %482 = vector.extract_strided_slice %481 {offsets = [0, 0], sizes = [8, 32], strides = [1, 1]} : vector<8x128xf32> to vector<8x32xf32>
    %483 = vector.extract_strided_slice %481 {offsets = [0, 32], sizes = [8, 32], strides = [1, 1]} : vector<8x128xf32> to vector<8x32xf32>
    %484 = vector.extract_strided_slice %481 {offsets = [0, 64], sizes = [8, 32], strides = [1, 1]} : vector<8x128xf32> to vector<8x32xf32>
    %485 = vector.extract_strided_slice %481 {offsets = [0, 96], sizes = [8, 32], strides = [1, 1]} : vector<8x128xf32> to vector<8x32xf32>
    %486 = arith.mulf %483, %471 : vector<8x32xf32>
    %487 = arith.mulf %482, %484 : vector<8x32xf32>
    %488 = arith.addf %486, %487 : vector<8x32xf32>
    %489 = math.tanh %488 : vector<8x32xf32>
    %490 = arith.mulf %485, %489 : vector<8x32xf32>
    %c32_181 = arith.constant 32 : index
    %c0_182 = arith.constant 0 : index
    %491 = vector.load %arg7[%c32_181, %c0_182] : memref<64x32xf32, #tpu.memory_space<vmem>>, vector<8x32xf32>
    tpu.vector_store %arg7[%c32_181, %c0_182], %490 {strides = array<i32>} : memref<64x32xf32, #tpu.memory_space<vmem>>, vector<8x32xf32>,
    %c40_183 = arith.constant 40 : index
    %c0_184 = arith.constant 0 : index
    %492 = vector.load %arg8[%c40_183, %c0_184] : memref<64x128xf32, #tpu.memory_space<vmem>>, vector<8x128xf32>
    %cst_185 = arith.constant dense<0.000000e+00> : vector<8x128xf32>
    %493 = tpu.matmul %490, %5, %cst_185 {dimension_numbers = #tpu.dot_dimension_numbers<[1], [0], [0], [1], [0, 0, 1, 1], [], []>} : vector<8x32xf32>, vector<32x128xf32>, vector<8x128xf32> -> vector<8x128xf32>
    %494 = arith.addf %492, %493 : vector<8x128xf32>
    %495 = arith.mulf %262, %494 : vector<8x128xf32>
    %496 = math.tanh %495 : vector<8x128xf32>
    %497 = arith.mulf %262, %496 : vector<8x128xf32>
    %498 = arith.addf %497, %265 : vector<8x128xf32>
    %499 = vector.extract_strided_slice %498 {offsets = [0, 0], sizes = [8, 32], strides = [1, 1]} : vector<8x128xf32> to vector<8x32xf32>
    %500 = vector.extract_strided_slice %498 {offsets = [0, 32], sizes = [8, 32], strides = [1, 1]} : vector<8x128xf32> to vector<8x32xf32>
    %501 = vector.extract_strided_slice %498 {offsets = [0, 64], sizes = [8, 32], strides = [1, 1]} : vector<8x128xf32> to vector<8x32xf32>
    %502 = vector.extract_strided_slice %498 {offsets = [0, 96], sizes = [8, 32], strides = [1, 1]} : vector<8x128xf32> to vector<8x32xf32>
    %503 = arith.mulf %500, %488 : vector<8x32xf32>
    %504 = arith.mulf %499, %501 : vector<8x32xf32>
    %505 = arith.addf %503, %504 : vector<8x32xf32>
    %506 = math.tanh %505 : vector<8x32xf32>
    %507 = arith.mulf %502, %506 : vector<8x32xf32>
    %c40_186 = arith.constant 40 : index
    %c0_187 = arith.constant 0 : index
    %508 = vector.load %arg7[%c40_186, %c0_187] : memref<64x32xf32, #tpu.memory_space<vmem>>, vector<8x32xf32>
    tpu.vector_store %arg7[%c40_186, %c0_187], %507 {strides = array<i32>} : memref<64x32xf32, #tpu.memory_space<vmem>>, vector<8x32xf32>,
    %c48_188 = arith.constant 48 : index
    %c0_189 = arith.constant 0 : index
    %509 = vector.load %arg8[%c48_188, %c0_189] : memref<64x128xf32, #tpu.memory_space<vmem>>, vector<8x128xf32>
    %cst_190 = arith.constant dense<0.000000e+00> : vector<8x128xf32>
    %510 = tpu.matmul %507, %5, %cst_190 {dimension_numbers = #tpu.dot_dimension_numbers<[1], [0], [0], [1], [0, 0, 1, 1], [], []>} : vector<8x32xf32>, vector<32x128xf32>, vector<8x128xf32> -> vector<8x128xf32>
    %511 = arith.addf %509, %510 : vector<8x128xf32>
    %512 = arith.mulf %262, %511 : vector<8x128xf32>
    %513 = math.tanh %512 : vector<8x128xf32>
    %514 = arith.mulf %262, %513 : vector<8x128xf32>
    %515 = arith.addf %514, %265 : vector<8x128xf32>
    %516 = vector.extract_strided_slice %515 {offsets = [0, 0], sizes = [8, 32], strides = [1, 1]} : vector<8x128xf32> to vector<8x32xf32>
    %517 = vector.extract_strided_slice %515 {offsets = [0, 32], sizes = [8, 32], strides = [1, 1]} : vector<8x128xf32> to vector<8x32xf32>
    %518 = vector.extract_strided_slice %515 {offsets = [0, 64], sizes = [8, 32], strides = [1, 1]} : vector<8x128xf32> to vector<8x32xf32>
    %519 = vector.extract_strided_slice %515 {offsets = [0, 96], sizes = [8, 32], strides = [1, 1]} : vector<8x128xf32> to vector<8x32xf32>
    %520 = arith.mulf %517, %505 : vector<8x32xf32>
    %521 = arith.mulf %516, %518 : vector<8x32xf32>
    %522 = arith.addf %520, %521 : vector<8x32xf32>
    %523 = math.tanh %522 : vector<8x32xf32>
    %524 = arith.mulf %519, %523 : vector<8x32xf32>
    %c48_191 = arith.constant 48 : index
    %c0_192 = arith.constant 0 : index
    %525 = vector.load %arg7[%c48_191, %c0_192] : memref<64x32xf32, #tpu.memory_space<vmem>>, vector<8x32xf32>
    tpu.vector_store %arg7[%c48_191, %c0_192], %524 {strides = array<i32>} : memref<64x32xf32, #tpu.memory_space<vmem>>, vector<8x32xf32>,
    %c56_193 = arith.constant 56 : index
    %c0_194 = arith.constant 0 : index
    %526 = vector.load %arg8[%c56_193, %c0_194] : memref<64x128xf32, #tpu.memory_space<vmem>>, vector<8x128xf32>
    %cst_195 = arith.constant dense<0.000000e+00> : vector<8x128xf32>
    %527 = tpu.matmul %524, %5, %cst_195 {dimension_numbers = #tpu.dot_dimension_numbers<[1], [0], [0], [1], [0, 0, 1, 1], [], []>} : vector<8x32xf32>, vector<32x128xf32>, vector<8x128xf32> -> vector<8x128xf32>
    %528 = arith.addf %526, %527 : vector<8x128xf32>
    %529 = arith.mulf %262, %528 : vector<8x128xf32>
    %530 = math.tanh %529 : vector<8x128xf32>
    %531 = arith.mulf %262, %530 : vector<8x128xf32>
    %532 = arith.addf %531, %265 : vector<8x128xf32>
    %533 = vector.extract_strided_slice %532 {offsets = [0, 0], sizes = [8, 32], strides = [1, 1]} : vector<8x128xf32> to vector<8x32xf32>
    %534 = vector.extract_strided_slice %532 {offsets = [0, 32], sizes = [8, 32], strides = [1, 1]} : vector<8x128xf32> to vector<8x32xf32>
    %535 = vector.extract_strided_slice %532 {offsets = [0, 64], sizes = [8, 32], strides = [1, 1]} : vector<8x128xf32> to vector<8x32xf32>
    %536 = vector.extract_strided_slice %532 {offsets = [0, 96], sizes = [8, 32], strides = [1, 1]} : vector<8x128xf32> to vector<8x32xf32>
    %537 = arith.mulf %534, %522 : vector<8x32xf32>
    %538 = arith.mulf %533, %535 : vector<8x32xf32>
    %539 = arith.addf %537, %538 : vector<8x32xf32>
    %540 = math.tanh %539 : vector<8x32xf32>
    %541 = arith.mulf %536, %540 : vector<8x32xf32>
    %c56_196 = arith.constant 56 : index
    %c0_197 = arith.constant 0 : index
    %542 = vector.load %arg7[%c56_196, %c0_197] : memref<64x32xf32, #tpu.memory_space<vmem>>, vector<8x32xf32>
    tpu.vector_store %arg7[%c56_196, %c0_197], %541 {strides = array<i32>} : memref<64x32xf32, #tpu.memory_space<vmem>>, vector<8x32xf32>,
    %c0_198 = arith.constant 0 : index
    %c0_199 = arith.constant 0 : index
    %543 = vector.load %arg7[%c0_198, %c0_199] : memref<64x32xf32, #tpu.memory_space<vmem>>, vector<64x32xf32>
    %cst_200 = arith.constant dense<0.000000e+00> : vector<64x32xf32>
    %544 = tpu.matmul %543, %16, %cst_200 {dimension_numbers = #tpu.dot_dimension_numbers<[1], [0], [0], [1], [0, 0, 1, 1], [], []>} : vector<64x32xf32>, vector<32x32xf32>, vector<64x32xf32> -> vector<64x32xf32>
    %545 = vector.broadcast %18 : vector<1x32xf32> to vector<64x32xf32>
    %546 = arith.addf %544, %545 : vector<64x32xf32>
    %547 = arith.negf %546 : vector<64x32xf32>
    %548 = math.exp %547 : vector<64x32xf32>
    %cst_201 = arith.constant 1.000000e+00 : f32
    %549 = vector.broadcast %cst_201 : f32 to vector<64x32xf32>
    %550 = arith.addf %549, %548 : vector<64x32xf32>
    %551 = arith.divf %549, %550 : vector<64x32xf32>
    %cst_202 = arith.constant dense<0.000000e+00> : vector<64x16xf32>
    %552 = tpu.matmul %551, %20, %cst_202 {dimension_numbers = #tpu.dot_dimension_numbers<[1], [0], [0], [1], [0, 0, 1, 1], [], []>} : vector<64x32xf32>, vector<32x16xf32>, vector<64x16xf32> -> vector<64x16xf32>
    %553 = vector.broadcast %22 : vector<1x16xf32> to vector<64x16xf32>
    %554 = arith.addf %552, %553 : vector<64x16xf32>
    %555 = arith.negf %554 : vector<64x16xf32>
    %556 = math.exp %555 : vector<64x16xf32>
    %cst_203 = arith.constant 1.000000e+00 : f32
    %557 = vector.broadcast %cst_203 : f32 to vector<64x16xf32>
    %558 = arith.addf %557, %556 : vector<64x16xf32>
    %559 = arith.divf %557, %558 : vector<64x16xf32>
    %cst_204 = arith.constant dense<0.000000e+00> : vector<64x128xf32>
    %560 = tpu.matmul %559, %23, %cst_204 {dimension_numbers = #tpu.dot_dimension_numbers<[1], [0], [0], [1], [0, 0, 1, 1], [], []>} : vector<64x16xf32>, vector<16x128xf32>, vector<64x128xf32> -> vector<64x128xf32>
    %561 = vector.broadcast %24 : vector<1x128xf32> to vector<64x128xf32>
    %562 = arith.addf %560, %561 : vector<64x128xf32>
    %c0_205 = arith.constant 0 : index
    %c0_206 = arith.constant 0 : index
    %563 = vector.load %arg6[%c0_205, %c0_206] : memref<72x128xf32, #tpu.memory_space<vmem>>, vector<64x128xf32>
    tpu.vector_store %arg6[%c0_205, %c0_206], %562 {strides = array<i32>} : memref<72x128xf32, #tpu.memory_space<vmem>>, vector<64x128xf32>,
    %564 = tpu.concatenate %400, %541, %398, %539 in 1 : vector<8x32xf32>, vector<8x32xf32>, vector<8x32xf32>, vector<8x32xf32> -> vector<8x128xf32>
    %c64 = arith.constant 64 : index
    %c0_207 = arith.constant 0 : index
    %565 = vector.load %arg6[%c64, %c0_207] : memref<72x128xf32, #tpu.memory_space<vmem>>, vector<8x128xf32>
    tpu.vector_store %arg6[%c64, %c0_207], %564 {strides = array<i32>} : memref<72x128xf32, #tpu.memory_space<vmem>>, vector<8x128xf32>,
    return
  }
}

</mosaic_0001>

<llo_original>
// kernel: squeeze.10
$region0: #{squeeze.10}
  %s0 = inlined_call_operand.vmem [shape: f32[8,1,8,8], index: 0, kind: input, shape index: {}]
  %s1 = inlined_call_operand.vmem [shape: f32[8,64], index: 1, kind: output, shape index: {}]
  %v2 = vld [vmem:[%s0] ss:$8 sm:$0xf]
  %v3 = vld [vmem:[%s0] ss:$8 sm:$0xf0]
  %vm4 = vcmask 1047556
  %v5 = vsel %vm4, %v3, %v2
  %vm6 = vcmask 64512
  %7 = vst.msk [vmem:[%s1] sm:$0xff] %vm6, %v5
  %s8 = scalar_lea.vmem %s0, 7
  %v9 = vld [vmem:[%s8] ss:$8 sm:$0xf]
  %s10 = scalar_lea.vmem %s0, 7
  %v11 = vld [vmem:[%s10] ss:$8 sm:$0xf0]
  %vm12 = vcmask 1047556
  %v13 = vsel %vm12, %v11, %v9
  %14 = vrot.lane.b32.xlu0 %v13, 56
  %v15 = vpop.permute.xlu0 %14
  %vm16 = vcmask 523712
  %17 = vst.msk [vmem:[%s1] sm:$0xff] %vm16, %v15
  %s18 = scalar_lea.vmem %s0, 6
  %v19 = vld [vmem:[%s18] ss:$8 sm:$0xf]
  %s20 = scalar_lea.vmem %s0, 6
  %v21 = vld [vmem:[%s20] ss:$8 sm:$0xf0]
  %vm22 = vcmask 1047556
  %v23 = vsel %vm22, %v21, %v19
  %24 = vrot.lane.b32.xlu0 %v23, 48
  %v25 = vpop.permute.xlu0 %24
  %vm26 = vcmask 458112
  %27 = vst.msk [vmem:[%s1] sm:$0xff] %vm26, %v25
  %s28 = scalar_lea.vmem %s0, 5
  %v29 = vld [vmem:[%s28] ss:$8 sm:$0xf]
  %s30 = scalar_lea.vmem %s0, 5
  %v31 = vld [vmem:[%s30] ss:$8 sm:$0xf0]
  %vm32 = vcmask 1047556
  %v33 = vsel %vm32, %v31, %v29
  %34 = vrot.lane.b32.xlu0 %v33, 40
  %v35 = vpop.permute.xlu0 %34
  %vm36 = vcmask 392512
  %37 = vst.msk [vmem:[%s1] sm:$0xff] %vm36, %v35
  %s38 = scalar_lea.vmem %s0, 4
  %v39 = vld [vmem:[%s38] ss:$8 sm:$0xf]
  %s40 = scalar_lea.vmem %s0, 4
  %v41 = vld [vmem:[%s40] ss:$8 sm:$0xf0]
  %vm42 = vcmask 1047556
  %v43 = vsel %vm42, %v41, %v39
  %44 = vrot.lane.b32.xlu0 %v43, 32
  %v45 = vpop.permute.xlu0 %44
  %vm46 = vcmask 326912
  %47 = vst.msk [vmem:[%s1] sm:$0xff] %vm46, %v45
  %s48 = scalar_lea.vmem %s0, 3
  %v49 = vld [vmem:[%s48] ss:$8 sm:$0xf]
  %s50 = scalar_lea.vmem %s0, 3
  %v51 = vld [vmem:[%s50] ss:$8 sm:$0xf0]
  %vm52 = vcmask 1047556
  %v53 = vsel %vm52, %v51, %v49
  %54 = vrot.lane.b32.xlu0 %v53, 24
  %v55 = vpop.permute.xlu0 %54
  %vm56 = vcmask 261312
  %57 = vst.msk [vmem:[%s1] sm:$0xff] %vm56, %v55
  %s58 = scalar_lea.vmem %s0, 2
  %v59 = vld [vmem:[%s58] ss:$8 sm:$0xf]
  %s60 = scalar_lea.vmem %s0, 2
  %v61 = vld [vmem:[%s60] ss:$8 sm:$0xf0]
  %vm62 = vcmask 1047556
  %v63 = vsel %vm62, %v61, %v59
  %64 = vrot.lane.b32.xlu0 %v63, 16
  %v65 = vpop.permute.xlu0 %64
  %vm66 = vcmask 195712
  %67 = vst.msk [vmem:[%s1] sm:$0xff] %vm66, %v65
  %s68 = scalar_lea.vmem %s0, 1
  %v69 = vld [vmem:[%s68] ss:$8 sm:$0xf]
  %s70 = scalar_lea.vmem %s0, 1
  %v71 = vld [vmem:[%s70] ss:$8 sm:$0xf0]
  %vm72 = vcmask 1047556
  %v73 = vsel %vm72, %v71, %v69
  %74 = vrot.lane.b32.xlu0 %v73, 8
  %v75 = vpop.permute.xlu0 %74
  %vm76 = vcmask 130112
  %77 = vst.msk [vmem:[%s1] sm:$0xff] %vm76, %v75

// kernel: model_forward.1
$region0: #{model_forward.1}
  #allocation0 [shape = 'u32[]', space=smem, size = 0x4, offset = 0x4, fixed_abs, tag = 'smem constant byte address 0x4 - core index']
  #allocation1 [shape = 'u32[144,128]{1,0:T(1,128)}', space=vmem, size = 0x12000, scoped, tag = 'internal scratch']
  #allocation2 [shape = 'f32[64,32]{1,0:T(8,128)}', space=vmem, size = 0x8000, scoped, tag = 'scratch operand']
  #allocation3 [shape = 'f32[64,128]{1,0:T(8,128)}', space=vmem, size = 0x8000, scoped, tag = 'scratch operand']
  %s0 = inlined_call_operand.vmem [shape: f32[10,4], index: 0, kind: input, shape index: {}]
  %s1 = inlined_call_operand.vmem [shape: f32[8,576], index: 1, kind: input, shape index: {}]
  %s2 = inlined_call_operand.vmem [shape: f32[64,2], index: 2, kind: input, shape index: {}]
  %s3 = inlined_call_operand.vmem [shape: f32[8,16], index: 3, kind: input, shape index: {}]
  %s4 = inlined_call_operand.vmem [shape: f32[304,128], index: 4, kind: input, shape index: {}]
  %s5 = inlined_call_operand.vmem [shape: f32[256,8], index: 5, kind: input, shape index: {}]
  %s6 = inlined_call_operand.vmem [shape: f32[72,128], index: 6, kind: output, shape index: {}]
  %s7 = sld [smem:[#allocation0]]
  $region38: #{model_forward.1} parent=0
    _
  %s9 = ssub.s32 1, %s7
  %s10 = scalar_select 0, %s9, %s7
  $region1: #{model_forward.1} parent=0
    #allocation4 [shape = 'u8[8192]{0}', space=smem, size = 0x2000, scoped, tag = 'input window, operand 0, single buffered']
    #allocation5 [shape = 's32[1]{0}', space=sflag, size = 0x4, scoped, tag = 'scoped memory for model_forward.1']
    %11 = vsyncpa [#allocation5], 0
    // Predicated region
    $region2: #{model_forward.1} parent=1 // pred_check
      _
    $region3: #{model_forward.1} parent=1 // pred_check_branch
      %13 = sbr.rel (0) target = $region5
    $region4: #{model_forward.1} parent=1 // pred_region
      %s15 = ssub.s32 256, 256
      %16 = vsyncadd [#allocation5], %s15
      %s17 = sshll.u32 %s0, 4
      %s18 = int_to_ptr.vmem [resolvable:$true] %s17
      %23 = dma.vmem_to_smem %s18, 256, [#allocation4], [#allocation5], 128, 128, 8
    $region5: #{model_forward.1} parent=1 // pred_fallthru
      _
    // Predicated region
    $region6: #{model_forward.1} parent=1 // pred_check
      _
    $region7: #{model_forward.1} parent=1 // pred_check_branch
      %25 = sbr.rel (0) target = $region9
    $region8: #{model_forward.1} parent=1 // pred_region
      _
    $region9: #{model_forward.1} parent=1 // pred_fallthru
      _
    // Predicated region
    $region10: #{model_forward.1} parent=1 // pred_check
      _
    $region11: #{model_forward.1} parent=1 // pred_check_branch
      %27 = sbr.rel (0) target = $region13
    $region12: #{model_forward.1} parent=1 // pred_region
      _
    $region13: #{model_forward.1} parent=1 // pred_fallthru
      _
    // Predicated region
    $region14: #{model_forward.1} parent=1 // pred_check
      _
    $region15: #{model_forward.1} parent=1 // pred_check_branch
      %29 = sbr.rel (0) target = $region17
    $region16: #{model_forward.1} parent=1 // pred_region
      _
    $region17: #{model_forward.1} parent=1 // pred_fallthru
      _
    // Predicated region
    $region18: #{model_forward.1} parent=1 // pred_check
      _
    $region19: #{model_forward.1} parent=1 // pred_check_branch
      %31 = sbr.rel (0) target = $region21
    $region20: #{model_forward.1} parent=1 // pred_region
      _
    $region21: #{model_forward.1} parent=1 // pred_fallthru
      _
    // Predicated region
    $region22: #{model_forward.1} parent=1 // pred_check
      _
    $region23: #{model_forward.1} parent=1 // pred_check_branch
      %33 = sbr.rel (0) target = $region25
    $region24: #{model_forward.1} parent=1 // pred_region
      _
    $region25: #{model_forward.1} parent=1 // pred_fallthru
      _
    // Predicated region
    $region26: #{model_forward.1} parent=1 // pred_check
      _
    $region27: #{model_forward.1} parent=1 // pred_check_branch
      %35 = sbr.rel (0) target = $region29
    $region28: #{model_forward.1} parent=1 // pred_region
      %36 = dma.done [#allocation5], 256
    $region29: #{model_forward.1} parent=1 // pred_fallthru
      _
    %37 = sfence
    %v38 = vld [vmem:[%s4] sm:$0xff]
    %v39 = vld [vmem:[%s4 + $0x8] sm:$0x3]
    %v40 = vld [vmem:[%s4 + $0x10] sm:$0xff]
    %v41 = vld [vmem:[%s4 + $0x18] sm:$0xff]
    %v42 = vld [vmem:[%s4 + $0x20] sm:$0xff]
    %v43 = vld [vmem:[%s4 + $0x28] sm:$0xff]
    %v44 = vld [vmem:[%s4 + $0x30] sm:$0x1]
    %v45 = vld [vmem:[%s4 + $0x38] sm:$0xff]
    %v46 = vld [vmem:[%s4 + $0x40] sm:$0xff]
    %v47 = vld [vmem:[%s4 + $0x48] sm:$0xff]
    %v48 = vld [vmem:[%s4 + $0x50] sm:$0xff]
    %v49 = vld [vmem:[%s4 + $0x58] sm:$0xff]
    %v50 = vld [vmem:[%s4 + $0x60] sm:$0xff]
    %v51 = vld [vmem:[%s4 + $0x68] sm:$0xff]
    %v52 = vld [vmem:[%s4 + $0x70] sm:$0xff]
    %v53 = vld [vmem:[%s4 + $0x78] sm:$0x1]
    %v54 = vld [vmem:[%s4 + $0x80] sm:$0xff]
    %v55 = vld [vmem:[%s4 + $0x88] sm:$0xff]
    %v56 = vld [vmem:[%s4 + $0x90] sm:$0x1]
    %v57 = vld [vmem:[%s4 + $0x98] sm:$0xff]
    %v58 = vld [vmem:[%s4 + $0xa0] sm:$0xff]
    %v59 = vld [vmem:[%s4 + $0xa8] sm:$0xff]
    %v60 = vld [vmem:[%s4 + $0xb0] sm:$0xff]
    %v61 = vld [vmem:[%s4 + $0xb8] sm:$0x1]
    %v62 = vld [vmem:[%s4 + $0xc0] sm:$0xff]
    %v63 = vld [vmem:[%s4 + $0xc8] sm:$0xff]
    %v64 = vld [vmem:[%s4 + $0xd0] sm:$0xff]
    %v65 = vld [vmem:[%s4 + $0xd8] sm:$0xff]
    %v66 = vld [vmem:[%s4 + $0xe0] sm:$0x1]
    %v67 = vld [vmem:[%s4 + $0xe8] sm:$0xff]
    %v68 = vld [vmem:[%s4 + $0xf0] sm:$0xff]
    %v69 = vld [vmem:[%s4 + $0xf8] sm:$0xff]
    %v70 = vld [vmem:[%s4 + $0x100] sm:$0xff]
    %v71 = vld [vmem:[%s4 + $0x108] sm:$0x1]
    %v72 = vld [vmem:[%s4 + $0x110] sm:$0xff]
    %v73 = vld [vmem:[%s4 + $0x118] sm:$0xff]
    %v74 = vld [vmem:[%s4 + $0x120] sm:$0x1]
    %v75 = vld [vmem:[%s4 + $0x128] sm:$0x1]
    %v76 = vld [vmem:[%s3] sm:$0xff]
    %v77 = vlaneseq
    %v78 = vshrl.u32 %v77, 7
    %v79 = vsub.s32 0, %v78
    %v80 = vrot.slane %v56, %v79
    %vm81 = vcmask 130048
    %v83 = vsel %vm81, %v76, 0
    %85 = vmatprep.subr.mxu0 0.0
    %86 = vmatpush1.msra.mxu0 %v54
    %87 = vmatprep.subr.mxu0 0.0
    %88 = vmatpush1.msra.mxu0 %v55
    %89 = vmatprep.subr.mxu0 0.0
    %90 = vmatpush1.msra.mxu0 0.0
    %91 = vmatprep.subr.mxu0 0.0
    %92 = vmatpush1.msra.mxu0 0.0
    %93 = vmatprep.subr.mxu0 0.0
    %94 = vmatpush1.msra.mxu0 0.0
    %95 = vmatprep.subr.mxu0 0.0
    %96 = vmatpush1.msra.mxu0 0.0
    %97 = vmatprep.subr.mxu0 0.0
    %98 = vmatpush1.msra.mxu0 0.0
    %99 = vmatprep.subr.mxu0 0.0
    %100 = vmatpush1.msra.mxu0 0.0
    %101 = vmatprep.subr.mxu0 0.0
    %102 = vmatpush1.msra.mxu0 0.0
    %103 = vmatprep.subr.mxu0 0.0
    %104 = vmatpush1.msra.mxu0 0.0
    %105 = vmatprep.subr.mxu0 0.0
    %106 = vmatpush1.msra.mxu0 0.0
    %107 = vmatprep.subr.mxu0 0.0
    %108 = vmatpush1.msra.mxu0 0.0
    %109 = vmatprep.subr.mxu0 0.0
    %110 = vmatpush1.msra.mxu0 0.0
    %111 = vmatprep.subr.mxu0 0.0
    %112 = vmatpush1.msra.mxu0 0.0
    %113 = vmatprep.subr.mxu0 0.0
    %114 = vmatpush1.msra.mxu0 0.0
    %115 = vmatprep.subr.mxu0 0.0
    %116 = vmatpush1.msra.mxu0 0.0
    %117 = vmatprep.subr.mxu0 0.0
    %118 = vmatpush1.msra.mxu0 0.0
    %119 = vmatprep.subr.mxu0 0.0
    %120 = vmatpush1.msra.mxu0 0.0
    %121 = vmatprep.subr.mxu0 0.0
    %122 = vmatpush1.msra.mxu0 0.0
    %123 = vmatprep.subr.mxu0 0.0
    %124 = vmatpush1.msra.mxu0 0.0
    %125 = vmatprep.subr.mxu0 0.0
    %126 = vmatpush1.msra.mxu0 0.0
    %127 = vmatprep.subr.mxu0 0.0
    %128 = vmatpush1.msra.mxu0 0.0
    %129 = vmatprep.subr.mxu0 0.0
    %130 = vmatpush1.msra.mxu0 0.0
    %131 = vmatprep.subr.mxu0 0.0
    %132 = vmatpush1.msra.mxu0 0.0
    %133 = vmatprep.subr.mxu0 0.0
    %134 = vmatpush1.msra.mxu0 0.0
    %135 = vmatprep.subr.mxu0 0.0
    %136 = vmatpush1.msra.mxu0 0.0
    %137 = vmatprep.subr.mxu0 0.0
    %138 = vmatpush1.msra.mxu0 0.0
    %139 = vmatprep.subr.mxu0 0.0
    %140 = vmatpush1.msra.mxu0 0.0
    %141 = vmatprep.subr.mxu0 0.0
    %142 = vmatpush1.msra.mxu0 0.0
    %143 = vmatprep.subr.mxu0 0.0
    %144 = vmatpush1.msra.mxu0 0.0
    %145 = vmatprep.subr.mxu0 0.0
    %146 = vmatpush1.msra.mxu0 0.0
    %147 = vmatprep.subr.mxu0 0.0
    %148 = vmatpush1.msra.mxu0 0.0
    %149 = vmatprep.mubr.f32.mxu0 0.0
    %150 = vmatmul.mubr.f32.gmra.mrb[0].mxu0 %v83
    %v151 = vpop.f32.mrb[0].mxu0
    %v152 = vadd.f32 %v80, %v151
    %v153 = vpop.f32.mrb[0].mxu0
    %154 = vdwg.mxu0
    %v155 = vtanh.pop %v152
    %v156 = vlaneseq
    %v157 = vshrl.u32 %v156, 7
    %v158 = vsub.s32 0, %v157
    %v159 = vrot.slane %v61, %v158
    %vm160 = vcmask 261120
    %v162 = vsel %vm160, %v155, 0
    %164 = vmatprep.subr.mxu0 0.0
    %165 = vmatpush1.msra.mxu0 %v57
    %166 = vmatprep.subr.mxu0 0.0
    %167 = vmatpush1.msra.mxu0 %v58
    %168 = vmatprep.subr.mxu0 0.0
    %169 = vmatpush1.msra.mxu0 %v59
    %170 = vmatprep.subr.mxu0 0.0
    %171 = vmatpush1.msra.mxu0 %v60
    %172 = vmatprep.subr.mxu0 0.0
    %173 = vmatpush1.msra.mxu0 0.0
    %174 = vmatprep.subr.mxu0 0.0
    %175 = vmatpush1.msra.mxu0 0.0
    %176 = vmatprep.subr.mxu0 0.0
    %177 = vmatpush1.msra.mxu0 0.0
    %178 = vmatprep.subr.mxu0 0.0
    %179 = vmatpush1.msra.mxu0 0.0
    %180 = vmatprep.subr.mxu0 0.0
    %181 = vmatpush1.msra.mxu0 0.0
    %182 = vmatprep.subr.mxu0 0.0
    %183 = vmatpush1.msra.mxu0 0.0
    %184 = vmatprep.subr.mxu0 0.0
    %185 = vmatpush1.msra.mxu0 0.0
    %186 = vmatprep.subr.mxu0 0.0
    %187 = vmatpush1.msra.mxu0 0.0
    %188 = vmatprep.subr.mxu0 0.0
    %189 = vmatpush1.msra.mxu0 0.0
    %190 = vmatprep.subr.mxu0 0.0
    %191 = vmatpush1.msra.mxu0 0.0
    %192 = vmatprep.subr.mxu0 0.0
    %193 = vmatpush1.msra.mxu0 0.0
    %194 = vmatprep.subr.mxu0 0.0
    %195 = vmatpush1.msra.mxu0 0.0
    %196 = vmatprep.subr.mxu0 0.0
    %197 = vmatpush1.msra.mxu0 0.0
    %198 = vmatprep.subr.mxu0 0.0
    %199 = vmatpush1.msra.mxu0 0.0
    %200 = vmatprep.subr.mxu0 0.0
    %201 = vmatpush1.msra.mxu0 0.0
    %202 = vmatprep.subr.mxu0 0.0
    %203 = vmatpush1.msra.mxu0 0.0
    %204 = vmatprep.subr.mxu0 0.0
    %205 = vmatpush1.msra.mxu0 0.0
    %206 = vmatprep.subr.mxu0 0.0
    %207 = vmatpush1.msra.mxu0 0.0
    %208 = vmatprep.subr.mxu0 0.0
    %209 = vmatpush1.msra.mxu0 0.0
    %210 = vmatprep.subr.mxu0 0.0
    %211 = vmatpush1.msra.mxu0 0.0
    %212 = vmatprep.subr.mxu0 0.0
    %213 = vmatpush1.msra.mxu0 0.0
    %214 = vmatprep.subr.mxu0 0.0
    %215 = vmatpush1.msra.mxu0 0.0
    %216 = vmatprep.subr.mxu0 0.0
    %217 = vmatpush1.msra.mxu0 0.0
    %218 = vmatprep.subr.mxu0 0.0
    %219 = vmatpush1.msra.mxu0 0.0
    %220 = vmatprep.subr.mxu0 0.0
    %221 = vmatpush1.msra.mxu0 0.0
    %222 = vmatprep.subr.mxu0 0.0
    %223 = vmatpush1.msra.mxu0 0.0
    %224 = vmatprep.subr.mxu0 0.0
    %225 = vmatpush1.msra.mxu0 0.0
    %226 = vmatprep.subr.mxu0 0.0
    %227 = vmatpush1.msra.mxu0 0.0
    %228 = vmatprep.mubr.f32.mxu0 0.0
    %229 = vmatmul.mubr.f32.gmra.mrb[0].mxu0 %v162
    %v230 = vpop.f32.mrb[0].mxu0
    %v231 = vadd.f32 %v159, %v230
    %v232 = vpop.f32.mrb[0].mxu0
    %233 = vdwg.mxu0
    %v234 = vld [vmem:[%s1] sm:$0xff]
    %v235 = vld [vmem:[%s1 + $0x8] sm:$0xff]
    %v236 = vld [vmem:[%s1 + $0x10] sm:$0xff]
    %v237 = vld [vmem:[%s1 + $0x18] sm:$0xff]
    %v238 = vld [vmem:[%s1 + $0x20] sm:$0xff]
    %s239 = sld [smem:[#allocation4]]
    %v240 = vstv %s239
    %v241 = vmul.f32 %v240, %v234
    %v242 = vadd.f32 %v241, 0.0
    %s243 = sld [smem:[#allocation4 + $0x80]]
    %v244 = vstv %s243
    %v245 = vmul.f32 %v244, %v234
    %247 = vrot.lane.b32.xlu0 %v245, 64
    %v248 = vpop.permute.xlu0 %247
    %v250 = vadd.f32 %v242, %v248
    %s251 = sld [smem:[#allocation4 + $0x100]]
    %v252 = vstv %s251
    %v253 = vmul.f32 %v252, %v235
    %v254 = vadd.f32 %v250, %v253
    %s255 = sld [smem:[#allocation4 + $0x180]]
    %v256 = vstv %s255
    %v257 = vmul.f32 %v256, %v235
    %259 = vrot.lane.b32.xlu0 %v257, 64
    %v260 = vpop.permute.xlu0 %259
    %v262 = vadd.f32 %v254, %v260
    %s263 = sld [smem:[#allocation4 + $0x200]]
    %v264 = vstv %s263
    %v265 = vmul.f32 %v264, %v236
    %v266 = vadd.f32 %v262, %v265
    %s267 = sld [smem:[#allocation4 + $0x280]]
    %v268 = vstv %s267
    %v269 = vmul.f32 %v268, %v236
    %271 = vrot.lane.b32.xlu0 %v269, 64
    %v272 = vpop.permute.xlu0 %271
    %v274 = vadd.f32 %v266, %v272
    %s275 = sld [smem:[#allocation4 + $0x300]]
    %v276 = vstv %s275
    %v277 = vmul.f32 %v276, %v237
    %v278 = vadd.f32 %v274, %v277
    %s279 = sld [smem:[#allocation4 + $0x380]]
    %v280 = vstv %s279
    %v281 = vmul.f32 %v280, %v237
    %283 = vrot.lane.b32.xlu0 %v281, 64
    %v284 = vpop.permute.xlu0 %283
    %v286 = vadd.f32 %v278, %v284
    %s287 = sld [smem:[#allocation4 + $0x400]]
    %v288 = vstv %s287
    %v289 = vmul.f32 %v288, %v238
    %v290 = vadd.f32 %v286, %v289
    %s291 = sld [smem:[#allocation4 + $0x480]]
    %v292 = vstv %s291
    %v293 = vadd.f32 %v290, %v292
    %v294 = vmax.f32 %v293, 0.0
    %s295 = sld [smem:[#allocation4 + $0x1]]
    %v296 = vstv %s295
    %v297 = vmul.f32 %v296, %v234
    %v298 = vadd.f32 %v297, 0.0
    %s299 = sld [smem:[#allocation4 + $0x81]]
    %v300 = vstv %s299
    %v301 = vmul.f32 %v300, %v234
    %303 = vrot.lane.b32.xlu0 %v301, 64
    %v304 = vpop.permute.xlu0 %303
    %v306 = vadd.f32 %v298, %v304
    %s307 = sld [smem:[#allocation4 + $0x101]]
    %v308 = vstv %s307
    %v309 = vmul.f32 %v308, %v235
    %v310 = vadd.f32 %v306, %v309
    %s311 = sld [smem:[#allocation4 + $0x181]]
    %v312 = vstv %s311
    %v313 = vmul.f32 %v312, %v235
    %315 = vrot.lane.b32.xlu0 %v313, 64
    %v316 = vpop.permute.xlu0 %315
    %v318 = vadd.f32 %v310, %v316
    %s319 = sld [smem:[#allocation4 + $0x201]]
    %v320 = vstv %s319
    %v321 = vmul.f32 %v320, %v236
    %v322 = vadd.f32 %v318, %v321
    %s323 = sld [smem:[#allocation4 + $0x281]]
    %v324 = vstv %s323
    %v325 = vmul.f32 %v324, %v236
    %327 = vrot.lane.b32.xlu0 %v325, 64
    %v328 = vpop.permute.xlu0 %327
    %v330 = vadd.f32 %v322, %v328
    %s331 = sld [smem:[#allocation4 + $0x301]]
    %v332 = vstv %s331
    %v333 = vmul.f32 %v332, %v237
    %v334 = vadd.f32 %v330, %v333
    %s335 = sld [smem:[#allocation4 + $0x381]]
    %v336 = vstv %s335
    %v337 = vmul.f32 %v336, %v237
    %339 = vrot.lane.b32.xlu0 %v337, 64
    %v340 = vpop.permute.xlu0 %339
    %v342 = vadd.f32 %v334, %v340
    %s343 = sld [smem:[#allocation4 + $0x401]]
    %v344 = vstv %s343
    %v345 = vmul.f32 %v344, %v238
    %v346 = vadd.f32 %v342, %v345
    %s347 = sld [smem:[#allocation4 + $0x481]]
    %v348 = vstv %s347
    %v349 = vadd.f32 %v346, %v348
    %v350 = vmax.f32 %v349, 0.0
    %s351 = sld [smem:[#allocation4 + $0x2]]
    %v352 = vstv %s351
    %v353 = vmul.f32 %v352, %v234
    %v354 = vadd.f32 %v353, 0.0
    %s355 = sld [smem:[#allocation4 + $0x82]]
    %v356 = vstv %s355
    %v357 = vmul.f32 %v356, %v234
    %359 = vrot.lane.b32.xlu0 %v357, 64
    %v360 = vpop.permute.xlu0 %359
    %v362 = vadd.f32 %v354, %v360
    %s363 = sld [smem:[#allocation4 + $0x102]]
    %v364 = vstv %s363
    %v365 = vmul.f32 %v364, %v235
    %v366 = vadd.f32 %v362, %v365
    %s367 = sld [smem:[#allocation4 + $0x182]]
    %v368 = vstv %s367
    %v369 = vmul.f32 %v368, %v235
    %371 = vrot.lane.b32.xlu0 %v369, 64
    %v372 = vpop.permute.xlu0 %371
    %v374 = vadd.f32 %v366, %v372
    %s375 = sld [smem:[#allocation4 + $0x202]]
    %v376 = vstv %s375
    %v377 = vmul.f32 %v376, %v236
    %v378 = vadd.f32 %v374, %v377
    %s379 = sld [smem:[#allocation4 + $0x282]]
    %v380 = vstv %s379
    %v381 = vmul.f32 %v380, %v236
    %383 = vrot.lane.b32.xlu0 %v381, 64
    %v384 = vpop.permute.xlu0 %383
    %v386 = vadd.f32 %v378, %v384
    %s387 = sld [smem:[#allocation4 + $0x302]]
    %v388 = vstv %s387
    %v389 = vmul.f32 %v388, %v237
    %v390 = vadd.f32 %v386, %v389
    %s391 = sld [smem:[#allocation4 + $0x382]]
    %v392 = vstv %s391
    %v393 = vmul.f32 %v392, %v237
    %395 = vrot.lane.b32.xlu0 %v393, 64
    %v396 = vpop.permute.xlu0 %395
    %v398 = vadd.f32 %v390, %v396
    %s399 = sld [smem:[#allocation4 + $0x402]]
    %v400 = vstv %s399
    %v401 = vmul.f32 %v400, %v238
    %v402 = vadd.f32 %v398, %v401
    %s403 = sld [smem:[#allocation4 + $0x482]]
    %v404 = vstv %s403
    %v405 = vadd.f32 %v402, %v404
    %v406 = vmax.f32 %v405, 0.0
    %s407 = sld [smem:[#allocation4 + $0x3]]
    %v408 = vstv %s407
    %v409 = vmul.f32 %v408, %v234
    %v410 = vadd.f32 %v409, 0.0
    %s411 = sld [smem:[#allocation4 + $0x83]]
    %v412 = vstv %s411
    %v413 = vmul.f32 %v412, %v234
    %415 = vrot.lane.b32.xlu0 %v413, 64
    %v416 = vpop.permute.xlu0 %415
    %v418 = vadd.f32 %v410, %v416
    %s419 = sld [smem:[#allocation4 + $0x103]]
    %v420 = vstv %s419
    %v421 = vmul.f32 %v420, %v235
    %v422 = vadd.f32 %v418, %v421
    %s423 = sld [smem:[#allocation4 + $0x183]]
    %v424 = vstv %s423
    %v425 = vmul.f32 %v424, %v235
    %427 = vrot.lane.b32.xlu0 %v425, 64
    %v428 = vpop.permute.xlu0 %427
    %v430 = vadd.f32 %v422, %v428
    %s431 = sld [smem:[#allocation4 + $0x203]]
    %v432 = vstv %s431
    %v433 = vmul.f32 %v432, %v236
    %v434 = vadd.f32 %v430, %v433
    %s435 = sld [smem:[#allocation4 + $0x283]]
    %v436 = vstv %s435
    %v437 = vmul.f32 %v436, %v236
    %439 = vrot.lane.b32.xlu0 %v437, 64
    %v440 = vpop.permute.xlu0 %439
    %v442 = vadd.f32 %v434, %v440
    %s443 = sld [smem:[#allocation4 + $0x303]]
    %v444 = vstv %s443
    %v445 = vmul.f32 %v444, %v237
    %v446 = vadd.f32 %v442, %v445
    %s447 = sld [smem:[#allocation4 + $0x383]]
    %v448 = vstv %s447
    %v449 = vmul.f32 %v448, %v237
    %451 = vrot.lane.b32.xlu0 %v449, 64
    %v452 = vpop.permute.xlu0 %451
    %v454 = vadd.f32 %v446, %v452
    %s455 = sld [smem:[#allocation4 + $0x403]]
    %v456 = vstv %s455
    %v457 = vmul.f32 %v456, %v238
    %v458 = vadd.f32 %v454, %v457
    %s459 = sld [smem:[#allocation4 + $0x483]]
    %v460 = vstv %s459
    %v461 = vadd.f32 %v458, %v460
    %v462 = vmax.f32 %v461, 0.0
    %464 = vrot.lane.b32.xlu0 %v350, 64
    %v465 = vpop.permute.xlu0 %464
    %468 = vrot.lane.b32.xlu0 %v462, 64
    %v469 = vpop.permute.xlu0 %468
    %vm471 = vcmask 523264
    %v472 = vsel %vm471, %v294, %v465
    %v473 = vsel %vm471, %v406, %v469
    %v474 = vld [vmem:[%s5] sm:$0xff]
    %v475 = vld [vmem:[%s5 + $0x8] sm:$0xff]
    %v476 = vld [vmem:[%s5 + $0x10] sm:$0xff]
    %v477 = vld [vmem:[%s5 + $0x18] sm:$0xff]
    %v478 = vld [vmem:[%s5 + $0x20] sm:$0xff]
    %v479 = vld [vmem:[%s5 + $0x28] sm:$0xff]
    %v480 = vld [vmem:[%s5 + $0x30] sm:$0xff]
    %v481 = vld [vmem:[%s5 + $0x38] sm:$0xff]
    %v482 = vld [vmem:[%s5 + $0x40] sm:$0xff]
    %v483 = vld [vmem:[%s5 + $0x48] sm:$0xff]
    %v484 = vld [vmem:[%s5 + $0x50] sm:$0xff]
    %v485 = vld [vmem:[%s5 + $0x58] sm:$0xff]
    %v486 = vld [vmem:[%s5 + $0x60] sm:$0xff]
    %v487 = vld [vmem:[%s5 + $0x68] sm:$0xff]
    %v488 = vld [vmem:[%s5 + $0x70] sm:$0xff]
    %v489 = vld [vmem:[%s5 + $0x78] sm:$0xff]
    %v490 = vld [vmem:[%s5 + $0x80] sm:$0xff]
    %v491 = vld [vmem:[%s5 + $0x88] sm:$0xff]
    %v492 = vld [vmem:[%s5 + $0x90] sm:$0xff]
    %v493 = vld [vmem:[%s5 + $0x98] sm:$0xff]
    %v494 = vld [vmem:[%s5 + $0xa0] sm:$0xff]
    %v495 = vld [vmem:[%s5 + $0xa8] sm:$0xff]
    %v496 = vld [vmem:[%s5 + $0xb0] sm:$0xff]
    %v497 = vld [vmem:[%s5 + $0xb8] sm:$0xff]
    %v498 = vld [vmem:[%s5 + $0xc0] sm:$0xff]
    %v499 = vld [vmem:[%s5 + $0xc8] sm:$0xff]
    %v500 = vld [vmem:[%s5 + $0xd0] sm:$0xff]
    %v501 = vld [vmem:[%s5 + $0xd8] sm:$0xff]
    %v502 = vld [vmem:[%s5 + $0xe0] sm:$0xff]
    %v503 = vld [vmem:[%s5 + $0xe8] sm:$0xff]
    %v504 = vld [vmem:[%s5 + $0xf0] sm:$0xff]
    %v505 = vld [vmem:[%s5 + $0xf8] sm:$0xff]
    %v506 = vlaneseq
    %v507 = vshrl.u32 %v506, 7
    %v508 = vsub.s32 0, %v507
    %v509 = vrot.slane %v75, %v508
    %510 = vmatprep.subr.mxu0 0.0
    %511 = vmatpush1.msra.mxu0 %v474
    %512 = vmatprep.subr.mxu0 0.0
    %513 = vmatpush1.msra.mxu0 %v475
    %514 = vmatprep.subr.mxu0 0.0
    %515 = vmatpush1.msra.mxu0 %v476
    %516 = vmatprep.subr.mxu0 0.0
    %517 = vmatpush1.msra.mxu0 %v477
    %518 = vmatprep.subr.mxu0 0.0
    %519 = vmatpush1.msra.mxu0 %v478
    %520 = vmatprep.subr.mxu0 0.0
    %521 = vmatpush1.msra.mxu0 %v479
    %522 = vmatprep.subr.mxu0 0.0
    %523 = vmatpush1.msra.mxu0 %v480
    %524 = vmatprep.subr.mxu0 0.0
    %525 = vmatpush1.msra.mxu0 %v481
    %526 = vmatprep.subr.mxu0 0.0
    %527 = vmatpush1.msra.mxu0 %v482
    %528 = vmatprep.subr.mxu0 0.0
    %529 = vmatpush1.msra.mxu0 %v483
    %530 = vmatprep.subr.mxu0 0.0
    %531 = vmatpush1.msra.mxu0 %v484
    %532 = vmatprep.subr.mxu0 0.0
    %533 = vmatpush1.msra.mxu0 %v485
    %534 = vmatprep.subr.mxu0 0.0
    %535 = vmatpush1.msra.mxu0 %v486
    %536 = vmatprep.subr.mxu0 0.0
    %537 = vmatpush1.msra.mxu0 %v487
    %538 = vmatprep.subr.mxu0 0.0
    %539 = vmatpush1.msra.mxu0 %v488
    %540 = vmatprep.subr.mxu0 0.0
    %541 = vmatpush1.msra.mxu0 %v489
    %542 = vmatprep.subr.mxu0 0.0
    %543 = vmatpush1.msra.mxu0 %v490
    %544 = vmatprep.subr.mxu0 0.0
    %545 = vmatpush1.msra.mxu0 %v491
    %546 = vmatprep.subr.mxu0 0.0
    %547 = vmatpush1.msra.mxu0 %v492
    %548 = vmatprep.subr.mxu0 0.0
    %549 = vmatpush1.msra.mxu0 %v493
    %550 = vmatprep.subr.mxu0 0.0
    %551 = vmatpush1.msra.mxu0 %v494
    %552 = vmatprep.subr.mxu0 0.0
    %553 = vmatpush1.msra.mxu0 %v495
    %554 = vmatprep.subr.mxu0 0.0
    %555 = vmatpush1.msra.mxu0 %v496
    %556 = vmatprep.subr.mxu0 0.0
    %557 = vmatpush1.msra.mxu0 %v497
    %558 = vmatprep.subr.mxu0 0.0
    %559 = vmatpush1.msra.mxu0 %v498
    %560 = vmatprep.subr.mxu0 0.0
    %561 = vmatpush1.msra.mxu0 %v499
    %562 = vmatprep.subr.mxu0 0.0
    %563 = vmatpush1.msra.mxu0 %v500
    %564 = vmatprep.subr.mxu0 0.0
    %565 = vmatpush1.msra.mxu0 %v501
    %566 = vmatprep.subr.mxu0 0.0
    %567 = vmatpush1.msra.mxu0 %v502
    %568 = vmatprep.subr.mxu0 0.0
    %569 = vmatpush1.msra.mxu0 %v503
    %570 = vmatprep.subr.mxu0 0.0
    %571 = vmatpush1.msra.mxu0 %v504
    %572 = vmatprep.subr.mxu0 0.0
    %573 = vmatpush1.msra.mxu0 %v505
    %574 = vmatprep.mubr.f32.mxu0 %v473
    %575 = vmatmul.mubr.f32.gmra.mrb[0].mxu0 %v472
    %v576 = vpop.f32.mrb[0].mxu0
    %v577 = vadd.f32 %v509, %v576
    %v578 = vpop.f32.mrb[0].mxu0
    %579 = vdwg.mxu0
    %v580 = vtanh.pop %v577
    %v581 = vlaneseq
    %v582 = vshrl.u32 %v581, 7
    %v583 = vsub.s32 0, %v582
    %v584 = vrot.slane %v44, %v583
    %vm585 = vcmask 64512
    %v587 = vsel %vm585, %v580, 0
    %589 = vmatprep.subr.mxu0 0.0
    %590 = vmatpush1.msra.mxu0 %v38
    %591 = vmatprep.subr.mxu0 0.0
    %592 = vmatpush1.msra.mxu0 0.0
    %593 = vmatprep.subr.mxu0 0.0
    %594 = vmatpush1.msra.mxu0 0.0
    %595 = vmatprep.subr.mxu0 0.0
    %596 = vmatpush1.msra.mxu0 0.0
    %597 = vmatprep.subr.mxu0 0.0
    %598 = vmatpush1.msra.mxu0 0.0
    %599 = vmatprep.subr.mxu0 0.0
    %600 = vmatpush1.msra.mxu0 0.0
    %601 = vmatprep.subr.mxu0 0.0
    %602 = vmatpush1.msra.mxu0 0.0
    %603 = vmatprep.subr.mxu0 0.0
    %604 = vmatpush1.msra.mxu0 0.0
    %605 = vmatprep.subr.mxu0 0.0
    %606 = vmatpush1.msra.mxu0 0.0
    %607 = vmatprep.subr.mxu0 0.0
    %608 = vmatpush1.msra.mxu0 0.0
    %609 = vmatprep.subr.mxu0 0.0
    %610 = vmatpush1.msra.mxu0 0.0
    %611 = vmatprep.subr.mxu0 0.0
    %612 = vmatpush1.msra.mxu0 0.0
    %613 = vmatprep.subr.mxu0 0.0
    %614 = vmatpush1.msra.mxu0 0.0
    %615 = vmatprep.subr.mxu0 0.0
    %616 = vmatpush1.msra.mxu0 0.0
    %617 = vmatprep.subr.mxu0 0.0
    %618 = vmatpush1.msra.mxu0 0.0
    %619 = vmatprep.subr.mxu0 0.0
    %620 = vmatpush1.msra.mxu0 0.0
    %621 = vmatprep.subr.mxu0 0.0
    %622 = vmatpush1.msra.mxu0 0.0
    %623 = vmatprep.subr.mxu0 0.0
    %624 = vmatpush1.msra.mxu0 0.0
    %625 = vmatprep.subr.mxu0 0.0
    %626 = vmatpush1.msra.mxu0 0.0
    %627 = vmatprep.subr.mxu0 0.0
    %628 = vmatpush1.msra.mxu0 0.0
    %629 = vmatprep.subr.mxu0 0.0
    %630 = vmatpush1.msra.mxu0 0.0
    %631 = vmatprep.subr.mxu0 0.0
    %632 = vmatpush1.msra.mxu0 0.0
    %633 = vmatprep.subr.mxu0 0.0
    %634 = vmatpush1.msra.mxu0 0.0
    %635 = vmatprep.subr.mxu0 0.0
    %636 = vmatpush1.msra.mxu0 0.0
    %637 = vmatprep.subr.mxu0 0.0
    %638 = vmatpush1.msra.mxu0 0.0
    %639 = vmatprep.subr.mxu0 0.0
    %640 = vmatpush1.msra.mxu0 0.0
    %641 = vmatprep.subr.mxu0 0.0
    %642 = vmatpush1.msra.mxu0 0.0
    %643 = vmatprep.subr.mxu0 0.0
    %644 = vmatpush1.msra.mxu0 0.0
    %645 = vmatprep.subr.mxu0 0.0
    %646 = vmatpush1.msra.mxu0 0.0
    %647 = vmatprep.subr.mxu0 0.0
    %648 = vmatpush1.msra.mxu0 0.0
    %649 = vmatprep.subr.mxu0 0.0
    %650 = vmatpush1.msra.mxu0 0.0
    %651 = vmatprep.subr.mxu0 0.0
    %652 = vmatpush1.msra.mxu0 0.0
    %653 = vmatprep.mubr.f32.mxu0 0.0
    %654 = vmatmul.mubr.f32.gmra.mrb[0].mxu0 %v587
    %v655 = vpop.f32.mrb[0].mxu0
    %v656 = vadd.f32 %v584, %v655
    %v657 = vpop.f32.mrb[0].mxu0
    %658 = vdwg.mxu0
    %v659 = vld [vmem:[%s2] sm:$0xff]
    %v660 = vld [vmem:[%s2 + $0x8] sm:$0xff]
    %v661 = vld [vmem:[%s2 + $0x10] sm:$0xff]
    %v662 = vld [vmem:[%s2 + $0x18] sm:$0xff]
    %v663 = vld [vmem:[%s2 + $0x20] sm:$0xff]
    %v664 = vld [vmem:[%s2 + $0x28] sm:$0xff]
    %v665 = vld [vmem:[%s2 + $0x30] sm:$0xff]
    %v666 = vld [vmem:[%s2 + $0x38] sm:$0xff]
    %vm667 = vcmask 15360
    %v669 = vsel %vm667, %v659, 0
    %v672 = vsel %vm667, %v660, 0
    %v675 = vsel %vm667, %v661, 0
    %v678 = vsel %vm667, %v662, 0
    %v681 = vsel %vm667, %v663, 0
    %v684 = vsel %vm667, %v664, 0
    %v687 = vsel %vm667, %v665, 0
    %v690 = vsel %vm667, %v666, 0
    %vm692 = vcmask 1041408
    %v694 = vsel %vm692, %v39, 0
    %696 = vmatprep.subr.mxu0 0.0
    %697 = vmatpush1.msra.mxu0 %v694
    %698 = vmatprep.subr.mxu0 0.0
    %699 = vmatpush1.msra.mxu0 0.0
    %700 = vmatprep.subr.mxu0 0.0
    %701 = vmatpush1.msra.mxu0 0.0
    %702 = vmatprep.subr.mxu0 0.0
    %703 = vmatpush1.msra.mxu0 0.0
    %704 = vmatprep.subr.mxu0 0.0
    %705 = vmatpush1.msra.mxu0 0.0
    %706 = vmatprep.subr.mxu0 0.0
    %707 = vmatpush1.msra.mxu0 0.0
    %708 = vmatprep.subr.mxu0 0.0
    %709 = vmatpush1.msra.mxu0 0.0
    %710 = vmatprep.subr.mxu0 0.0
    %711 = vmatpush1.msra.mxu0 0.0
    %712 = vmatprep.subr.mxu0 0.0
    %713 = vmatpush1.msra.mxu0 0.0
    %714 = vmatprep.subr.mxu0 0.0
    %715 = vmatpush1.msra.mxu0 0.0
    %716 = vmatprep.subr.mxu0 0.0
    %717 = vmatpush1.msra.mxu0 0.0
    %718 = vmatprep.subr.mxu0 0.0
    %719 = vmatpush1.msra.mxu0 0.0
    %720 = vmatprep.subr.mxu0 0.0
    %721 = vmatpush1.msra.mxu0 0.0
    %722 = vmatprep.subr.mxu0 0.0
    %723 = vmatpush1.msra.mxu0 0.0
    %724 = vmatprep.subr.mxu0 0.0
    %725 = vmatpush1.msra.mxu0 0.0
    %726 = vmatprep.subr.mxu0 0.0
    %727 = vmatpush1.msra.mxu0 0.0
    %728 = vmatprep.subr.mxu0 0.0
    %729 = vmatpush1.msra.mxu0 0.0
    %730 = vmatprep.subr.mxu0 0.0
    %731 = vmatpush1.msra.mxu0 0.0
    %732 = vmatprep.subr.mxu0 0.0
    %733 = vmatpush1.msra.mxu0 0.0
    %734 = vmatprep.subr.mxu0 0.0
    %735 = vmatpush1.msra.mxu0 0.0
    %736 = vmatprep.subr.mxu0 0.0
    %737 = vmatpush1.msra.mxu0 0.0
    %738 = vmatprep.subr.mxu0 0.0
    %739 = vmatpush1.msra.mxu0 0.0
    %740 = vmatprep.subr.mxu0 0.0
    %741 = vmatpush1.msra.mxu0 0.0
    %742 = vmatprep.subr.mxu0 0.0
    %743 = vmatpush1.msra.mxu0 0.0
    %744 = vmatprep.subr.mxu0 0.0
    %745 = vmatpush1.msra.mxu0 0.0
    %746 = vmatprep.subr.mxu0 0.0
    %747 = vmatpush1.msra.mxu0 0.0
    %748 = vmatprep.subr.mxu0 0.0
    %749 = vmatpush1.msra.mxu0 0.0
    %750 = vmatprep.subr.mxu0 0.0
    %751 = vmatpush1.msra.mxu0 0.0
    %752 = vmatprep.subr.mxu0 0.0
    %753 = vmatpush1.msra.mxu0 0.0
    %754 = vmatprep.subr.mxu0 0.0
    %755 = vmatpush1.msra.mxu0 0.0
    %756 = vmatprep.subr.mxu0 0.0
    %757 = vmatpush1.msra.mxu0 0.0
    %758 = vmatprep.subr.mxu0 0.0
    %759 = vmatpush1.msra.mxu0 0.0
    %760 = vmatprep.mubr.f32.mxu0 0.0
    %761 = vmatmul.mubr.f32.gmra.mrb[0].mxu0 %v669
    %v762 = vpop.f32.mrb[0].mxu0
    %v763 = vadd.f32 %v656, %v762
    %v764 = vpop.f32.mrb[0].mxu0
    %765 = vmatprep.mubr.f32.mxu0 0.0
    %766 = vmatmul.mubr.f32.gmra.mrb[0].mxu0 %v672
    %v767 = vpop.f32.mrb[0].mxu0
    %v768 = vadd.f32 %v656, %v767
    %v769 = vpop.f32.mrb[0].mxu0
    %770 = vmatprep.mubr.f32.mxu0 0.0
    %771 = vmatmul.mubr.f32.gmra.mrb[0].mxu0 %v675
    %v772 = vpop.f32.mrb[0].mxu0
    %v773 = vadd.f32 %v656, %v772
    %v774 = vpop.f32.mrb[0].mxu0
    %775 = vmatprep.mubr.f32.mxu0 0.0
    %776 = vmatmul.mubr.f32.gmra.mrb[0].mxu0 %v678
    %v777 = vpop.f32.mrb[0].mxu0
    %v778 = vadd.f32 %v656, %v777
    %v779 = vpop.f32.mrb[0].mxu0
    %780 = vmatprep.mubr.f32.mxu0 0.0
    %781 = vmatmul.mubr.f32.gmra.mrb[0].mxu0 %v681
    %v782 = vpop.f32.mrb[0].mxu0
    %v783 = vadd.f32 %v656, %v782
    %v784 = vpop.f32.mrb[0].mxu0
    %785 = vmatprep.mubr.f32.mxu0 0.0
    %786 = vmatmul.mubr.f32.gmra.mrb[0].mxu0 %v684
    %v787 = vpop.f32.mrb[0].mxu0
    %v788 = vadd.f32 %v656, %v787
    %v789 = vpop.f32.mrb[0].mxu0
    %790 = vmatprep.mubr.f32.mxu0 0.0
    %791 = vmatmul.mubr.f32.gmra.mrb[0].mxu0 %v687
    %v792 = vpop.f32.mrb[0].mxu0
    %v793 = vadd.f32 %v656, %v792
    %v794 = vpop.f32.mrb[0].mxu0
    %795 = vmatprep.mubr.f32.mxu0 0.0
    %796 = vmatmul.mubr.f32.gmra.mrb[0].mxu0 %v690
    %v797 = vpop.f32.mrb[0].mxu0
    %v798 = vadd.f32 %v656, %v797
    %v799 = vpop.f32.mrb[0].mxu0
    %800 = vdwg.mxu0
    %801 = vst [vmem:[#allocation3] sm:$0xff] %v763
    %802 = vst [vmem:[#allocation3 + $0x8] sm:$0xff] %v768
    %803 = vst [vmem:[#allocation3 + $0x10] sm:$0xff] %v773
    %804 = vst [vmem:[#allocation3 + $0x18] sm:$0xff] %v778
    %805 = vst [vmem:[#allocation3 + $0x20] sm:$0xff] %v783
    %806 = vst [vmem:[#allocation3 + $0x28] sm:$0xff] %v788
    %807 = vst [vmem:[#allocation3 + $0x30] sm:$0xff] %v793
    %808 = vst [vmem:[#allocation3 + $0x38] sm:$0xff] %v798
    %v809 = vlaneseq
    %v810 = vand.u32 %v809, 127
    %vm811 = vcmp.ge.s32.totalorder %v810, 64
    %vm812 = vcmp.lt.s32.totalorder %v810, 96
    %vm813 = vmand %vm811, %vm812
    %v814 = vsel %vm813, 1.0, 0.5
    %v815 = vsel %vm813, 0.0, 0.5
    %v816 = vld [vmem:[#allocation3] sm:$0xff]
    %v818 = vsel %vm160, %v231, 0
    %820 = vmatprep.subr.mxu0 0.0
    %821 = vmatpush1.msra.mxu0 %v40
    %822 = vmatprep.subr.mxu0 0.0
    %823 = vmatpush1.msra.mxu0 %v41
    %824 = vmatprep.subr.mxu0 0.0
    %825 = vmatpush1.msra.mxu0 %v42
    %826 = vmatprep.subr.mxu0 0.0
    %827 = vmatpush1.msra.mxu0 %v43
    %828 = vmatprep.subr.mxu0 0.0
    %829 = vmatpush1.msra.mxu0 0.0
    %830 = vmatprep.subr.mxu0 0.0
    %831 = vmatpush1.msra.mxu0 0.0
    %832 = vmatprep.subr.mxu0 0.0
    %833 = vmatpush1.msra.mxu0 0.0
    %834 = vmatprep.subr.mxu0 0.0
    %835 = vmatpush1.msra.mxu0 0.0
    %836 = vmatprep.subr.mxu0 0.0
    %837 = vmatpush1.msra.mxu0 0.0
    %838 = vmatprep.subr.mxu0 0.0
    %839 = vmatpush1.msra.mxu0 0.0
    %840 = vmatprep.subr.mxu0 0.0
    %841 = vmatpush1.msra.mxu0 0.0
    %842 = vmatprep.subr.mxu0 0.0
    %843 = vmatpush1.msra.mxu0 0.0
    %844 = vmatprep.subr.mxu0 0.0
    %845 = vmatpush1.msra.mxu0 0.0
    %846 = vmatprep.subr.mxu0 0.0
    %847 = vmatpush1.msra.mxu0 0.0
    %848 = vmatprep.subr.mxu0 0.0
    %849 = vmatpush1.msra.mxu0 0.0
    %850 = vmatprep.subr.mxu0 0.0
    %851 = vmatpush1.msra.mxu0 0.0
    %852 = vmatprep.subr.mxu0 0.0
    %853 = vmatpush1.msra.mxu0 0.0
    %854 = vmatprep.subr.mxu0 0.0
    %855 = vmatpush1.msra.mxu0 0.0
    %856 = vmatprep.subr.mxu0 0.0
    %857 = vmatpush1.msra.mxu0 0.0
    %858 = vmatprep.subr.mxu0 0.0
    %859 = vmatpush1.msra.mxu0 0.0
    %860 = vmatprep.subr.mxu0 0.0
    %861 = vmatpush1.msra.mxu0 0.0
    %862 = vmatprep.subr.mxu0 0.0
    %863 = vmatpush1.msra.mxu0 0.0
    %864 = vmatprep.subr.mxu0 0.0
    %865 = vmatpush1.msra.mxu0 0.0
    %866 = vmatprep.subr.mxu0 0.0
    %867 = vmatpush1.msra.mxu0 0.0
    %868 = vmatprep.subr.mxu0 0.0
    %869 = vmatpush1.msra.mxu0 0.0
    %870 = vmatprep.subr.mxu0 0.0
    %871 = vmatpush1.msra.mxu0 0.0
    %872 = vmatprep.subr.mxu0 0.0
    %873 = vmatpush1.msra.mxu0 0.0
    %874 = vmatprep.subr.mxu0 0.0
    %875 = vmatpush1.msra.mxu0 0.0
    %876 = vmatprep.subr.mxu0 0.0
    %877 = vmatpush1.msra.mxu0 0.0
    %878 = vmatprep.subr.mxu0 0.0
    %879 = vmatpush1.msra.mxu0 0.0
    %880 = vmatprep.subr.mxu0 0.0
    %881 = vmatpush1.msra.mxu0 0.0
    %882 = vmatprep.subr.mxu0 0.0
    %883 = vmatpush1.msra.mxu0 0.0
    %884 = vmatprep.mubr.f32.mxu0 0.0
    %885 = vmatmul.mubr.f32.gmra.mrb[0].mxu0 %v818
    %v886 = vpop.f32.mrb[0].mxu0
    %v887 = vadd.f32 0.0, %v886
    %v888 = vpop.f32.mrb[0].mxu0
    %889 = vdwg.mxu0
    %v890 = vadd.f32 %v816, %v887
    %v891 = vmul.f32 %v814, %v890
    %v892 = vtanh.pop %v891
    %v893 = vmul.f32 %v814, %v892
    %v894 = vadd.f32 %v893, %v815
    %895 = vrot.lane.b32.xlu0 %v231, 32
    %v896 = vpop.permute.xlu0 %895
    %v898 = vmul.f32 %v894, %v896
    %900 = vrot.lane.b32.xlu0 %v894, 64
    %v901 = vpop.permute.xlu0 %900
    %v903 = vmul.f32 %v894, %v901
    %905 = vrot.lane.b32.xlu0 %v903, 32
    %v906 = vpop.permute.xlu0 %905
    %v908 = vadd.f32 %v898, %v906
    %v909 = vtanh.pop %v908
    %911 = vrot.lane.b32.xlu0 %v909, 64
    %v912 = vpop.permute.xlu0 %911
    %v914 = vmul.f32 %v894, %v912
    %916 = vrot.lane.b32.xlu0 %v914, 32
    %v917 = vpop.permute.xlu0 %916
    %919 = vst.msk [vmem:[#allocation2] sm:$0xff] %vm160, %v917
    %v920 = vld [vmem:[#allocation3 + $0x8] sm:$0xff]
    %v921 = vsel %vm160, %v917, 0
    %923 = vmatprep.subr.mxu0 0.0
    %924 = vmatpush1.msra.mxu0 %v40
    %925 = vmatprep.subr.mxu0 0.0
    %926 = vmatpush1.msra.mxu0 %v41
    %927 = vmatprep.subr.mxu0 0.0
    %928 = vmatpush1.msra.mxu0 %v42
    %929 = vmatprep.subr.mxu0 0.0
    %930 = vmatpush1.msra.mxu0 %v43
    %931 = vmatprep.subr.mxu0 0.0
    %932 = vmatpush1.msra.mxu0 0.0
    %933 = vmatprep.subr.mxu0 0.0
    %934 = vmatpush1.msra.mxu0 0.0
    %935 = vmatprep.subr.mxu0 0.0
    %936 = vmatpush1.msra.mxu0 0.0
    %937 = vmatprep.subr.mxu0 0.0
    %938 = vmatpush1.msra.mxu0 0.0
    %939 = vmatprep.subr.mxu0 0.0
    %940 = vmatpush1.msra.mxu0 0.0
    %941 = vmatprep.subr.mxu0 0.0
    %942 = vmatpush1.msra.mxu0 0.0
    %943 = vmatprep.subr.mxu0 0.0
    %944 = vmatpush1.msra.mxu0 0.0
    %945 = vmatprep.subr.mxu0 0.0
    %946 = vmatpush1.msra.mxu0 0.0
    %947 = vmatprep.subr.mxu0 0.0
    %948 = vmatpush1.msra.mxu0 0.0
    %949 = vmatprep.subr.mxu0 0.0
    %950 = vmatpush1.msra.mxu0 0.0
    %951 = vmatprep.subr.mxu0 0.0
    %952 = vmatpush1.msra.mxu0 0.0
    %953 = vmatprep.subr.mxu0 0.0
    %954 = vmatpush1.msra.mxu0 0.0
    %955 = vmatprep.subr.mxu0 0.0
    %956 = vmatpush1.msra.mxu0 0.0
    %957 = vmatprep.subr.mxu0 0.0
    %958 = vmatpush1.msra.mxu0 0.0
    %959 = vmatprep.subr.mxu0 0.0
    %960 = vmatpush1.msra.mxu0 0.0
    %961 = vmatprep.subr.mxu0 0.0
    %962 = vmatpush1.msra.mxu0 0.0
    %963 = vmatprep.subr.mxu0 0.0
    %964 = vmatpush1.msra.mxu0 0.0
    %965 = vmatprep.subr.mxu0 0.0
    %966 = vmatpush1.msra.mxu0 0.0
    %967 = vmatprep.subr.mxu0 0.0
    %968 = vmatpush1.msra.mxu0 0.0
    %969 = vmatprep.subr.mxu0 0.0
    %970 = vmatpush1.msra.mxu0 0.0
    %971 = vmatprep.subr.mxu0 0.0
    %972 = vmatpush1.msra.mxu0 0.0
    %973 = vmatprep.subr.mxu0 0.0
    %974 = vmatpush1.msra.mxu0 0.0
    %975 = vmatprep.subr.mxu0 0.0
    %976 = vmatpush1.msra.mxu0 0.0
    %977 = vmatprep.subr.mxu0 0.0
    %978 = vmatpush1.msra.mxu0 0.0
    %979 = vmatprep.subr.mxu0 0.0
    %980 = vmatpush1.msra.mxu0 0.0
    %981 = vmatprep.subr.mxu0 0.0
    %982 = vmatpush1.msra.mxu0 0.0
    %983 = vmatprep.subr.mxu0 0.0
    %984 = vmatpush1.msra.mxu0 0.0
    %985 = vmatprep.subr.mxu0 0.0
    %986 = vmatpush1.msra.mxu0 0.0
    %987 = vmatprep.mubr.f32.mxu0 0.0
    %988 = vmatmul.mubr.f32.gmra.mrb[0].mxu0 %v921
    %v989 = vpop.f32.mrb[0].mxu0
    %v990 = vadd.f32 0.0, %v989
    %v991 = vpop.f32.mrb[0].mxu0
    %992 = vdwg.mxu0
    %v993 = vadd.f32 %v920, %v990
    %v994 = vmul.f32 %v814, %v993
    %v995 = vtanh.pop %v994
    %v996 = vmul.f32 %v814, %v995
    %v997 = vadd.f32 %v996, %v815
    %v998 = vmul.f32 %v997, %v908
    %1000 = vrot.lane.b32.xlu0 %v997, 64
    %v1001 = vpop.permute.xlu0 %1000
    %v1003 = vmul.f32 %v997, %v1001
    %1005 = vrot.lane.b32.xlu0 %v1003, 32
    %v1006 = vpop.permute.xlu0 %1005
    %v1008 = vadd.f32 %v998, %v1006
    %v1009 = vtanh.pop %v1008
    %1011 = vrot.lane.b32.xlu0 %v1009, 64
    %v1012 = vpop.permute.xlu0 %1011
    %v1014 = vmul.f32 %v997, %v1012
    %1016 = vrot.lane.b32.xlu0 %v1014, 32
    %v1017 = vpop.permute.xlu0 %1016
    %1019 = vst.msk [vmem:[#allocation2 + $0x8] sm:$0xff] %vm160, %v1017
    %v1020 = vld [vmem:[#allocation3 + $0x10] sm:$0xff]
    %v1021 = vsel %vm160, %v1017, 0
    %1023 = vmatprep.subr.mxu0 0.0
    %1024 = vmatpush1.msra.mxu0 %v40
    %1025 = vmatprep.subr.mxu0 0.0
    %1026 = vmatpush1.msra.mxu0 %v41
    %1027 = vmatprep.subr.mxu0 0.0
    %1028 = vmatpush1.msra.mxu0 %v42
    %1029 = vmatprep.subr.mxu0 0.0
    %1030 = vmatpush1.msra.mxu0 %v43
    %1031 = vmatprep.subr.mxu0 0.0
    %1032 = vmatpush1.msra.mxu0 0.0
    %1033 = vmatprep.subr.mxu0 0.0
    %1034 = vmatpush1.msra.mxu0 0.0
    %1035 = vmatprep.subr.mxu0 0.0
    %1036 = vmatpush1.msra.mxu0 0.0
    %1037 = vmatprep.subr.mxu0 0.0
    %1038 = vmatpush1.msra.mxu0 0.0
    %1039 = vmatprep.subr.mxu0 0.0
    %1040 = vmatpush1.msra.mxu0 0.0
    %1041 = vmatprep.subr.mxu0 0.0
    %1042 = vmatpush1.msra.mxu0 0.0
    %1043 = vmatprep.subr.mxu0 0.0
    %1044 = vmatpush1.msra.mxu0 0.0
    %1045 = vmatprep.subr.mxu0 0.0
    %1046 = vmatpush1.msra.mxu0 0.0
    %1047 = vmatprep.subr.mxu0 0.0
    %1048 = vmatpush1.msra.mxu0 0.0
    %1049 = vmatprep.subr.mxu0 0.0
    %1050 = vmatpush1.msra.mxu0 0.0
    %1051 = vmatprep.subr.mxu0 0.0
    %1052 = vmatpush1.msra.mxu0 0.0
    %1053 = vmatprep.subr.mxu0 0.0
    %1054 = vmatpush1.msra.mxu0 0.0
    %1055 = vmatprep.subr.mxu0 0.0
    %1056 = vmatpush1.msra.mxu0 0.0
    %1057 = vmatprep.subr.mxu0 0.0
    %1058 = vmatpush1.msra.mxu0 0.0
    %1059 = vmatprep.subr.mxu0 0.0
    %1060 = vmatpush1.msra.mxu0 0.0
    %1061 = vmatprep.subr.mxu0 0.0
    %1062 = vmatpush1.msra.mxu0 0.0
    %1063 = vmatprep.subr.mxu0 0.0
    %1064 = vmatpush1.msra.mxu0 0.0
    %1065 = vmatprep.subr.mxu0 0.0
    %1066 = vmatpush1.msra.mxu0 0.0
    %1067 = vmatprep.subr.mxu0 0.0
    %1068 = vmatpush1.msra.mxu0 0.0
    %1069 = vmatprep.subr.mxu0 0.0
    %1070 = vmatpush1.msra.mxu0 0.0
    %1071 = vmatprep.subr.mxu0 0.0
    %1072 = vmatpush1.msra.mxu0 0.0
    %1073 = vmatprep.subr.mxu0 0.0
    %1074 = vmatpush1.msra.mxu0 0.0
    %1075 = vmatprep.subr.mxu0 0.0
    %1076 = vmatpush1.msra.mxu0 0.0
    %1077 = vmatprep.subr.mxu0 0.0
    %1078 = vmatpush1.msra.mxu0 0.0
    %1079 = vmatprep.subr.mxu0 0.0
    %1080 = vmatpush1.msra.mxu0 0.0
    %1081 = vmatprep.subr.mxu0 0.0
    %1082 = vmatpush1.msra.mxu0 0.0
    %1083 = vmatprep.subr.mxu0 0.0
    %1084 = vmatpush1.msra.mxu0 0.0
    %1085 = vmatprep.subr.mxu0 0.0
    %1086 = vmatpush1.msra.mxu0 0.0
    %1087 = vmatprep.mubr.f32.mxu0 0.0
    %1088 = vmatmul.mubr.f32.gmra.mrb[0].mxu0 %v1021
    %v1089 = vpop.f32.mrb[0].mxu0
    %v1090 = vadd.f32 0.0, %v1089
    %v1091 = vpop.f32.mrb[0].mxu0
    %1092 = vdwg.mxu0
    %v1093 = vadd.f32 %v1020, %v1090
    %v1094 = vmul.f32 %v814, %v1093
    %v1095 = vtanh.pop %v1094
    %v1096 = vmul.f32 %v814, %v1095
    %v1097 = vadd.f32 %v1096, %v815
    %v1098 = vmul.f32 %v1097, %v1008
    %1100 = vrot.lane.b32.xlu0 %v1097, 64
    %v1101 = vpop.permute.xlu0 %1100
    %v1103 = vmul.f32 %v1097, %v1101
    %1105 = vrot.lane.b32.xlu0 %v1103, 32
    %v1106 = vpop.permute.xlu0 %1105
    %v1108 = vadd.f32 %v1098, %v1106
    %v1109 = vtanh.pop %v1108
    %1111 = vrot.lane.b32.xlu0 %v1109, 64
    %v1112 = vpop.permute.xlu0 %1111
    %v1114 = vmul.f32 %v1097, %v1112
    %1116 = vrot.lane.b32.xlu0 %v1114, 32
    %v1117 = vpop.permute.xlu0 %1116
    %1119 = vst.msk [vmem:[#allocation2 + $0x10] sm:$0xff] %vm160, %v1117
    %v1120 = vld [vmem:[#allocation3 + $0x18] sm:$0xff]
    %v1121 = vsel %vm160, %v1117, 0
    %1123 = vmatprep.subr.mxu0 0.0
    %1124 = vmatpush1.msra.mxu0 %v40
    %1125 = vmatprep.subr.mxu0 0.0
    %1126 = vmatpush1.msra.mxu0 %v41
    %1127 = vmatprep.subr.mxu0 0.0
    %1128 = vmatpush1.msra.mxu0 %v42
    %1129 = vmatprep.subr.mxu0 0.0
    %1130 = vmatpush1.msra.mxu0 %v43
    %1131 = vmatprep.subr.mxu0 0.0
    %1132 = vmatpush1.msra.mxu0 0.0
    %1133 = vmatprep.subr.mxu0 0.0
    %1134 = vmatpush1.msra.mxu0 0.0
    %1135 = vmatprep.subr.mxu0 0.0
    %1136 = vmatpush1.msra.mxu0 0.0
    %1137 = vmatprep.subr.mxu0 0.0
    %1138 = vmatpush1.msra.mxu0 0.0
    %1139 = vmatprep.subr.mxu0 0.0
    %1140 = vmatpush1.msra.mxu0 0.0
    %1141 = vmatprep.subr.mxu0 0.0
    %1142 = vmatpush1.msra.mxu0 0.0
    %1143 = vmatprep.subr.mxu0 0.0
    %1144 = vmatpush1.msra.mxu0 0.0
    %1145 = vmatprep.subr.mxu0 0.0
    %1146 = vmatpush1.msra.mxu0 0.0
    %1147 = vmatprep.subr.mxu0 0.0
    %1148 = vmatpush1.msra.mxu0 0.0
    %1149 = vmatprep.subr.mxu0 0.0
    %1150 = vmatpush1.msra.mxu0 0.0
    %1151 = vmatprep.subr.mxu0 0.0
    %1152 = vmatpush1.msra.mxu0 0.0
    %1153 = vmatprep.subr.mxu0 0.0
    %1154 = vmatpush1.msra.mxu0 0.0
    %1155 = vmatprep.subr.mxu0 0.0
    %1156 = vmatpush1.msra.mxu0 0.0
    %1157 = vmatprep.subr.mxu0 0.0
    %1158 = vmatpush1.msra.mxu0 0.0
    %1159 = vmatprep.subr.mxu0 0.0
    %1160 = vmatpush1.msra.mxu0 0.0
    %1161 = vmatprep.subr.mxu0 0.0
    %1162 = vmatpush1.msra.mxu0 0.0
    %1163 = vmatprep.subr.mxu0 0.0
    %1164 = vmatpush1.msra.mxu0 0.0
    %1165 = vmatprep.subr.mxu0 0.0
    %1166 = vmatpush1.msra.mxu0 0.0
    %1167 = vmatprep.subr.mxu0 0.0
    %1168 = vmatpush1.msra.mxu0 0.0
    %1169 = vmatprep.subr.mxu0 0.0
    %1170 = vmatpush1.msra.mxu0 0.0
    %1171 = vmatprep.subr.mxu0 0.0
    %1172 = vmatpush1.msra.mxu0 0.0
    %1173 = vmatprep.subr.mxu0 0.0
    %1174 = vmatpush1.msra.mxu0 0.0
    %1175 = vmatprep.subr.mxu0 0.0
    %1176 = vmatpush1.msra.mxu0 0.0
    %1177 = vmatprep.subr.mxu0 0.0
    %1178 = vmatpush1.msra.mxu0 0.0
    %1179 = vmatprep.subr.mxu0 0.0
    %1180 = vmatpush1.msra.mxu0 0.0
    %1181 = vmatprep.subr.mxu0 0.0
    %1182 = vmatpush1.msra.mxu0 0.0
    %1183 = vmatprep.subr.mxu0 0.0
    %1184 = vmatpush1.msra.mxu0 0.0
    %1185 = vmatprep.subr.mxu0 0.0
    %1186 = vmatpush1.msra.mxu0 0.0
    %1187 = vmatprep.mubr.f32.mxu0 0.0
    %1188 = vmatmul.mubr.f32.gmra.mrb[0].mxu0 %v1121
    %v1189 = vpop.f32.mrb[0].mxu0
    %v1190 = vadd.f32 0.0, %v1189
    %v1191 = vpop.f32.mrb[0].mxu0
    %1192 = vdwg.mxu0
    %v1193 = vadd.f32 %v1120, %v1190
    %v1194 = vmul.f32 %v814, %v1193
    %v1195 = vtanh.pop %v1194
    %v1196 = vmul.f32 %v814, %v1195
    %v1197 = vadd.f32 %v1196, %v815
    %v1198 = vmul.f32 %v1197, %v1108
    %1200 = vrot.lane.b32.xlu0 %v1197, 64
    %v1201 = vpop.permute.xlu0 %1200
    %v1203 = vmul.f32 %v1197, %v1201
    %1205 = vrot.lane.b32.xlu0 %v1203, 32
    %v1206 = vpop.permute.xlu0 %1205
    %v1208 = vadd.f32 %v1198, %v1206
    %v1209 = vtanh.pop %v1208
    %1211 = vrot.lane.b32.xlu0 %v1209, 64
    %v1212 = vpop.permute.xlu0 %1211
    %v1214 = vmul.f32 %v1197, %v1212
    %1216 = vrot.lane.b32.xlu0 %v1214, 32
    %v1217 = vpop.permute.xlu0 %1216
    %1219 = vst.msk [vmem:[#allocation2 + $0x18] sm:$0xff] %vm160, %v1217
    %v1220 = vld [vmem:[#allocation3 + $0x20] sm:$0xff]
    %v1221 = vsel %vm160, %v1217, 0
    %1223 = vmatprep.subr.mxu0 0.0
    %1224 = vmatpush1.msra.mxu0 %v40
    %1225 = vmatprep.subr.mxu0 0.0
    %1226 = vmatpush1.msra.mxu0 %v41
    %1227 = vmatprep.subr.mxu0 0.0
    %1228 = vmatpush1.msra.mxu0 %v42
    %1229 = vmatprep.subr.mxu0 0.0
    %1230 = vmatpush1.msra.mxu0 %v43
    %1231 = vmatprep.subr.mxu0 0.0
    %1232 = vmatpush1.msra.mxu0 0.0
    %1233 = vmatprep.subr.mxu0 0.0
    %1234 = vmatpush1.msra.mxu0 0.0
    %1235 = vmatprep.subr.mxu0 0.0
    %1236 = vmatpush1.msra.mxu0 0.0
    %1237 = vmatprep.subr.mxu0 0.0
    %1238 = vmatpush1.msra.mxu0 0.0
    %1239 = vmatprep.subr.mxu0 0.0
    %1240 = vmatpush1.msra.mxu0 0.0
    %1241 = vmatprep.subr.mxu0 0.0
    %1242 = vmatpush1.msra.mxu0 0.0
    %1243 = vmatprep.subr.mxu0 0.0
    %1244 = vmatpush1.msra.mxu0 0.0
    %1245 = vmatprep.subr.mxu0 0.0
    %1246 = vmatpush1.msra.mxu0 0.0
    %1247 = vmatprep.subr.mxu0 0.0
    %1248 = vmatpush1.msra.mxu0 0.0
    %1249 = vmatprep.subr.mxu0 0.0
    %1250 = vmatpush1.msra.mxu0 0.0
    %1251 = vmatprep.subr.mxu0 0.0
    %1252 = vmatpush1.msra.mxu0 0.0
    %1253 = vmatprep.subr.mxu0 0.0
    %1254 = vmatpush1.msra.mxu0 0.0
    %1255 = vmatprep.subr.mxu0 0.0
    %1256 = vmatpush1.msra.mxu0 0.0
    %1257 = vmatprep.subr.mxu0 0.0
    %1258 = vmatpush1.msra.mxu0 0.0
    %1259 = vmatprep.subr.mxu0 0.0
    %1260 = vmatpush1.msra.mxu0 0.0
    %1261 = vmatprep.subr.mxu0 0.0
    %1262 = vmatpush1.msra.mxu0 0.0
    %1263 = vmatprep.subr.mxu0 0.0
    %1264 = vmatpush1.msra.mxu0 0.0
    %1265 = vmatprep.subr.mxu0 0.0
    %1266 = vmatpush1.msra.mxu0 0.0
    %1267 = vmatprep.subr.mxu0 0.0
    %1268 = vmatpush1.msra.mxu0 0.0
    %1269 = vmatprep.subr.mxu0 0.0
    %1270 = vmatpush1.msra.mxu0 0.0
    %1271 = vmatprep.subr.mxu0 0.0
    %1272 = vmatpush1.msra.mxu0 0.0
    %1273 = vmatprep.subr.mxu0 0.0
    %1274 = vmatpush1.msra.mxu0 0.0
    %1275 = vmatprep.subr.mxu0 0.0
    %1276 = vmatpush1.msra.mxu0 0.0
    %1277 = vmatprep.subr.mxu0 0.0
    %1278 = vmatpush1.msra.mxu0 0.0
    %1279 = vmatprep.subr.mxu0 0.0
    %1280 = vmatpush1.msra.mxu0 0.0
    %1281 = vmatprep.subr.mxu0 0.0
    %1282 = vmatpush1.msra.mxu0 0.0
    %1283 = vmatprep.subr.mxu0 0.0
    %1284 = vmatpush1.msra.mxu0 0.0
    %1285 = vmatprep.subr.mxu0 0.0
    %1286 = vmatpush1.msra.mxu0 0.0
    %1287 = vmatprep.mubr.f32.mxu0 0.0
    %1288 = vmatmul.mubr.f32.gmra.mrb[0].mxu0 %v1221
    %v1289 = vpop.f32.mrb[0].mxu0
    %v1290 = vadd.f32 0.0, %v1289
    %v1291 = vpop.f32.mrb[0].mxu0
    %1292 = vdwg.mxu0
    %v1293 = vadd.f32 %v1220, %v1290
    %v1294 = vmul.f32 %v814, %v1293
    %v1295 = vtanh.pop %v1294
    %v1296 = vmul.f32 %v814, %v1295
    %v1297 = vadd.f32 %v1296, %v815
    %v1298 = vmul.f32 %v1297, %v1208
    %1300 = vrot.lane.b32.xlu0 %v1297, 64
    %v1301 = vpop.permute.xlu0 %1300
    %v1303 = vmul.f32 %v1297, %v1301
    %1305 = vrot.lane.b32.xlu0 %v1303, 32
    %v1306 = vpop.permute.xlu0 %1305
    %v1308 = vadd.f32 %v1298, %v1306
    %v1309 = vtanh.pop %v1308
    %1311 = vrot.lane.b32.xlu0 %v1309, 64
    %v1312 = vpop.permute.xlu0 %1311
    %v1314 = vmul.f32 %v1297, %v1312
    %1316 = vrot.lane.b32.xlu0 %v1314, 32
    %v1317 = vpop.permute.xlu0 %1316
    %1319 = vst.msk [vmem:[#allocation2 + $0x20] sm:$0xff] %vm160, %v1317
    %v1320 = vld [vmem:[#allocation3 + $0x28] sm:$0xff]
    %v1321 = vsel %vm160, %v1317, 0
    %1323 = vmatprep.subr.mxu0 0.0
    %1324 = vmatpush1.msra.mxu0 %v40
    %1325 = vmatprep.subr.mxu0 0.0
    %1326 = vmatpush1.msra.mxu0 %v41
    %1327 = vmatprep.subr.mxu0 0.0
    %1328 = vmatpush1.msra.mxu0 %v42
    %1329 = vmatprep.subr.mxu0 0.0
    %1330 = vmatpush1.msra.mxu0 %v43
    %1331 = vmatprep.subr.mxu0 0.0
    %1332 = vmatpush1.msra.mxu0 0.0
    %1333 = vmatprep.subr.mxu0 0.0
    %1334 = vmatpush1.msra.mxu0 0.0
    %1335 = vmatprep.subr.mxu0 0.0
    %1336 = vmatpush1.msra.mxu0 0.0
    %1337 = vmatprep.subr.mxu0 0.0
    %1338 = vmatpush1.msra.mxu0 0.0
    %1339 = vmatprep.subr.mxu0 0.0
    %1340 = vmatpush1.msra.mxu0 0.0
    %1341 = vmatprep.subr.mxu0 0.0
    %1342 = vmatpush1.msra.mxu0 0.0
    %1343 = vmatprep.subr.mxu0 0.0
    %1344 = vmatpush1.msra.mxu0 0.0
    %1345 = vmatprep.subr.mxu0 0.0
    %1346 = vmatpush1.msra.mxu0 0.0
    %1347 = vmatprep.subr.mxu0 0.0
    %1348 = vmatpush1.msra.mxu0 0.0
    %1349 = vmatprep.subr.mxu0 0.0
    %1350 = vmatpush1.msra.mxu0 0.0
    %1351 = vmatprep.subr.mxu0 0.0
    %1352 = vmatpush1.msra.mxu0 0.0
    %1353 = vmatprep.subr.mxu0 0.0
    %1354 = vmatpush1.msra.mxu0 0.0
    %1355 = vmatprep.subr.mxu0 0.0
    %1356 = vmatpush1.msra.mxu0 0.0
    %1357 = vmatprep.subr.mxu0 0.0
    %1358 = vmatpush1.msra.mxu0 0.0
    %1359 = vmatprep.subr.mxu0 0.0
    %1360 = vmatpush1.msra.mxu0 0.0
    %1361 = vmatprep.subr.mxu0 0.0
    %1362 = vmatpush1.msra.mxu0 0.0
    %1363 = vmatprep.subr.mxu0 0.0
    %1364 = vmatpush1.msra.mxu0 0.0
    %1365 = vmatprep.subr.mxu0 0.0
    %1366 = vmatpush1.msra.mxu0 0.0
    %1367 = vmatprep.subr.mxu0 0.0
    %1368 = vmatpush1.msra.mxu0 0.0
    %1369 = vmatprep.subr.mxu0 0.0
    %1370 = vmatpush1.msra.mxu0 0.0
    %1371 = vmatprep.subr.mxu0 0.0
    %1372 = vmatpush1.msra.mxu0 0.0
    %1373 = vmatprep.subr.mxu0 0.0
    %1374 = vmatpush1.msra.mxu0 0.0
    %1375 = vmatprep.subr.mxu0 0.0
    %1376 = vmatpush1.msra.mxu0 0.0
    %1377 = vmatprep.subr.mxu0 0.0
    %1378 = vmatpush1.msra.mxu0 0.0
    %1379 = vmatprep.subr.mxu0 0.0
    %1380 = vmatpush1.msra.mxu0 0.0
    %1381 = vmatprep.subr.mxu0 0.0
    %1382 = vmatpush1.msra.mxu0 0.0
    %1383 = vmatprep.subr.mxu0 0.0
    %1384 = vmatpush1.msra.mxu0 0.0
    %1385 = vmatprep.subr.mxu0 0.0
    %1386 = vmatpush1.msra.mxu0 0.0
    %1387 = vmatprep.mubr.f32.mxu0 0.0
    %1388 = vmatmul.mubr.f32.gmra.mrb[0].mxu0 %v1321
    %v1389 = vpop.f32.mrb[0].mxu0
    %v1390 = vadd.f32 0.0, %v1389
    %v1391 = vpop.f32.mrb[0].mxu0
    %1392 = vdwg.mxu0
    %v1393 = vadd.f32 %v1320, %v1390
    %v1394 = vmul.f32 %v814, %v1393
    %v1395 = vtanh.pop %v1394
    %v1396 = vmul.f32 %v814, %v1395
    %v1397 = vadd.f32 %v1396, %v815
    %v1398 = vmul.f32 %v1397, %v1308
    %1400 = vrot.lane.b32.xlu0 %v1397, 64
    %v1401 = vpop.permute.xlu0 %1400
    %v1403 = vmul.f32 %v1397, %v1401
    %1405 = vrot.lane.b32.xlu0 %v1403, 32
    %v1406 = vpop.permute.xlu0 %1405
    %v1408 = vadd.f32 %v1398, %v1406
    %v1409 = vtanh.pop %v1408
    %1411 = vrot.lane.b32.xlu0 %v1409, 64
    %v1412 = vpop.permute.xlu0 %1411
    %v1414 = vmul.f32 %v1397, %v1412
    %1416 = vrot.lane.b32.xlu0 %v1414, 32
    %v1417 = vpop.permute.xlu0 %1416
    %1419 = vst.msk [vmem:[#allocation2 + $0x28] sm:$0xff] %vm160, %v1417
    %v1420 = vld [vmem:[#allocation3 + $0x30] sm:$0xff]
    %v1421 = vsel %vm160, %v1417, 0
    %1423 = vmatprep.subr.mxu0 0.0
    %1424 = vmatpush1.msra.mxu0 %v40
    %1425 = vmatprep.subr.mxu0 0.0
    %1426 = vmatpush1.msra.mxu0 %v41
    %1427 = vmatprep.subr.mxu0 0.0
    %1428 = vmatpush1.msra.mxu0 %v42
    %1429 = vmatprep.subr.mxu0 0.0
    %1430 = vmatpush1.msra.mxu0 %v43
    %1431 = vmatprep.subr.mxu0 0.0
    %1432 = vmatpush1.msra.mxu0 0.0
    %1433 = vmatprep.subr.mxu0 0.0
    %1434 = vmatpush1.msra.mxu0 0.0
    %1435 = vmatprep.subr.mxu0 0.0
    %1436 = vmatpush1.msra.mxu0 0.0
    %1437 = vmatprep.subr.mxu0 0.0
    %1438 = vmatpush1.msra.mxu0 0.0
    %1439 = vmatprep.subr.mxu0 0.0
    %1440 = vmatpush1.msra.mxu0 0.0
    %1441 = vmatprep.subr.mxu0 0.0
    %1442 = vmatpush1.msra.mxu0 0.0
    %1443 = vmatprep.subr.mxu0 0.0
    %1444 = vmatpush1.msra.mxu0 0.0
    %1445 = vmatprep.subr.mxu0 0.0
    %1446 = vmatpush1.msra.mxu0 0.0
    %1447 = vmatprep.subr.mxu0 0.0
    %1448 = vmatpush1.msra.mxu0 0.0
    %1449 = vmatprep.subr.mxu0 0.0
    %1450 = vmatpush1.msra.mxu0 0.0
    %1451 = vmatprep.subr.mxu0 0.0
    %1452 = vmatpush1.msra.mxu0 0.0
    %1453 = vmatprep.subr.mxu0 0.0
    %1454 = vmatpush1.msra.mxu0 0.0
    %1455 = vmatprep.subr.mxu0 0.0
    %1456 = vmatpush1.msra.mxu0 0.0
    %1457 = vmatprep.subr.mxu0 0.0
    %1458 = vmatpush1.msra.mxu0 0.0
    %1459 = vmatprep.subr.mxu0 0.0
    %1460 = vmatpush1.msra.mxu0 0.0
    %1461 = vmatprep.subr.mxu0 0.0
    %1462 = vmatpush1.msra.mxu0 0.0
    %1463 = vmatprep.subr.mxu0 0.0
    %1464 = vmatpush1.msra.mxu0 0.0
    %1465 = vmatprep.subr.mxu0 0.0
    %1466 = vmatpush1.msra.mxu0 0.0
    %1467 = vmatprep.subr.mxu0 0.0
    %1468 = vmatpush1.msra.mxu0 0.0
    %1469 = vmatprep.subr.mxu0 0.0
    %1470 = vmatpush1.msra.mxu0 0.0
    %1471 = vmatprep.subr.mxu0 0.0
    %1472 = vmatpush1.msra.mxu0 0.0
    %1473 = vmatprep.subr.mxu0 0.0
    %1474 = vmatpush1.msra.mxu0 0.0
    %1475 = vmatprep.subr.mxu0 0.0
    %1476 = vmatpush1.msra.mxu0 0.0
    %1477 = vmatprep.subr.mxu0 0.0
    %1478 = vmatpush1.msra.mxu0 0.0
    %1479 = vmatprep.subr.mxu0 0.0
    %1480 = vmatpush1.msra.mxu0 0.0
    %1481 = vmatprep.subr.mxu0 0.0
    %1482 = vmatpush1.msra.mxu0 0.0
    %1483 = vmatprep.subr.mxu0 0.0
    %1484 = vmatpush1.msra.mxu0 0.0
    %1485 = vmatprep.subr.mxu0 0.0
    %1486 = vmatpush1.msra.mxu0 0.0
    %1487 = vmatprep.mubr.f32.mxu0 0.0
    %1488 = vmatmul.mubr.f32.gmra.mrb[0].mxu0 %v1421
    %v1489 = vpop.f32.mrb[0].mxu0
    %v1490 = vadd.f32 0.0, %v1489
    %v1491 = vpop.f32.mrb[0].mxu0
    %1492 = vdwg.mxu0
    %v1493 = vadd.f32 %v1420, %v1490
    %v1494 = vmul.f32 %v814, %v1493
    %v1495 = vtanh.pop %v1494
    %v1496 = vmul.f32 %v814, %v1495
    %v1497 = vadd.f32 %v1496, %v815
    %v1498 = vmul.f32 %v1497, %v1408
    %1500 = vrot.lane.b32.xlu0 %v1497, 64
    %v1501 = vpop.permute.xlu0 %1500
    %v1503 = vmul.f32 %v1497, %v1501
    %1505 = vrot.lane.b32.xlu0 %v1503, 32
    %v1506 = vpop.permute.xlu0 %1505
    %v1508 = vadd.f32 %v1498, %v1506
    %v1509 = vtanh.pop %v1508
    %1511 = vrot.lane.b32.xlu0 %v1509, 64
    %v1512 = vpop.permute.xlu0 %1511
    %v1514 = vmul.f32 %v1497, %v1512
    %1516 = vrot.lane.b32.xlu0 %v1514, 32
    %v1517 = vpop.permute.xlu0 %1516
    %1519 = vst.msk [vmem:[#allocation2 + $0x30] sm:$0xff] %vm160, %v1517
    %v1520 = vld [vmem:[#allocation3 + $0x38] sm:$0xff]
    %v1521 = vsel %vm160, %v1517, 0
    %1523 = vmatprep.subr.mxu0 0.0
    %1524 = vmatpush1.msra.mxu0 %v40
    %1525 = vmatprep.subr.mxu0 0.0
    %1526 = vmatpush1.msra.mxu0 %v41
    %1527 = vmatprep.subr.mxu0 0.0
    %1528 = vmatpush1.msra.mxu0 %v42
    %1529 = vmatprep.subr.mxu0 0.0
    %1530 = vmatpush1.msra.mxu0 %v43
    %1531 = vmatprep.subr.mxu0 0.0
    %1532 = vmatpush1.msra.mxu0 0.0
    %1533 = vmatprep.subr.mxu0 0.0
    %1534 = vmatpush1.msra.mxu0 0.0
    %1535 = vmatprep.subr.mxu0 0.0
    %1536 = vmatpush1.msra.mxu0 0.0
    %1537 = vmatprep.subr.mxu0 0.0
    %1538 = vmatpush1.msra.mxu0 0.0
    %1539 = vmatprep.subr.mxu0 0.0
    %1540 = vmatpush1.msra.mxu0 0.0
    %1541 = vmatprep.subr.mxu0 0.0
    %1542 = vmatpush1.msra.mxu0 0.0
    %1543 = vmatprep.subr.mxu0 0.0
    %1544 = vmatpush1.msra.mxu0 0.0
    %1545 = vmatprep.subr.mxu0 0.0
    %1546 = vmatpush1.msra.mxu0 0.0
    %1547 = vmatprep.subr.mxu0 0.0
    %1548 = vmatpush1.msra.mxu0 0.0
    %1549 = vmatprep.subr.mxu0 0.0
    %1550 = vmatpush1.msra.mxu0 0.0
    %1551 = vmatprep.subr.mxu0 0.0
    %1552 = vmatpush1.msra.mxu0 0.0
    %1553 = vmatprep.subr.mxu0 0.0
    %1554 = vmatpush1.msra.mxu0 0.0
    %1555 = vmatprep.subr.mxu0 0.0
    %1556 = vmatpush1.msra.mxu0 0.0
    %1557 = vmatprep.subr.mxu0 0.0
    %1558 = vmatpush1.msra.mxu0 0.0
    %1559 = vmatprep.subr.mxu0 0.0
    %1560 = vmatpush1.msra.mxu0 0.0
    %1561 = vmatprep.subr.mxu0 0.0
    %1562 = vmatpush1.msra.mxu0 0.0
    %1563 = vmatprep.subr.mxu0 0.0
    %1564 = vmatpush1.msra.mxu0 0.0
    %1565 = vmatprep.subr.mxu0 0.0
    %1566 = vmatpush1.msra.mxu0 0.0
    %1567 = vmatprep.subr.mxu0 0.0
    %1568 = vmatpush1.msra.mxu0 0.0
    %1569 = vmatprep.subr.mxu0 0.0
    %1570 = vmatpush1.msra.mxu0 0.0
    %1571 = vmatprep.subr.mxu0 0.0
    %1572 = vmatpush1.msra.mxu0 0.0
    %1573 = vmatprep.subr.mxu0 0.0
    %1574 = vmatpush1.msra.mxu0 0.0
    %1575 = vmatprep.subr.mxu0 0.0
    %1576 = vmatpush1.msra.mxu0 0.0
    %1577 = vmatprep.subr.mxu0 0.0
    %1578 = vmatpush1.msra.mxu0 0.0
    %1579 = vmatprep.subr.mxu0 0.0
    %1580 = vmatpush1.msra.mxu0 0.0
    %1581 = vmatprep.subr.mxu0 0.0
    %1582 = vmatpush1.msra.mxu0 0.0
    %1583 = vmatprep.subr.mxu0 0.0
    %1584 = vmatpush1.msra.mxu0 0.0
    %1585 = vmatprep.subr.mxu0 0.0
    %1586 = vmatpush1.msra.mxu0 0.0
    %1587 = vmatprep.mubr.f32.mxu0 0.0
    %1588 = vmatmul.mubr.f32.gmra.mrb[0].mxu0 %v1521
    %v1589 = vpop.f32.mrb[0].mxu0
    %v1590 = vadd.f32 0.0, %v1589
    %v1591 = vpop.f32.mrb[0].mxu0
    %1592 = vdwg.mxu0
    %v1593 = vadd.f32 %v1520, %v1590
    %v1594 = vmul.f32 %v814, %v1593
    %v1595 = vtanh.pop %v1594
    %v1596 = vmul.f32 %v814, %v1595
    %v1597 = vadd.f32 %v1596, %v815
    %v1598 = vmul.f32 %v1597, %v1508
    %1600 = vrot.lane.b32.xlu0 %v1597, 64
    %v1601 = vpop.permute.xlu0 %1600
    %v1603 = vmul.f32 %v1597, %v1601
    %1605 = vrot.lane.b32.xlu0 %v1603, 32
    %v1606 = vpop.permute.xlu0 %1605
    %v1608 = vadd.f32 %v1598, %v1606
    %v1609 = vtanh.pop %v1608
    %1611 = vrot.lane.b32.xlu0 %v1609, 64
    %v1612 = vpop.permute.xlu0 %1611
    %v1614 = vmul.f32 %v1597, %v1612
    %1616 = vrot.lane.b32.xlu0 %v1614, 32
    %v1617 = vpop.permute.xlu0 %1616
    %1619 = vst.msk [vmem:[#allocation2 + $0x38] sm:$0xff] %vm160, %v1617
    %v1620 = vld [vmem:[#allocation2] sm:$0xff]
    %v1621 = vld [vmem:[#allocation2 + $0x8] sm:$0xff]
    %v1622 = vld [vmem:[#allocation2 + $0x10] sm:$0xff]
    %v1623 = vld [vmem:[#allocation2 + $0x18] sm:$0xff]
    %v1624 = vld [vmem:[#allocation2 + $0x20] sm:$0xff]
    %v1625 = vld [vmem:[#allocation2 + $0x28] sm:$0xff]
    %v1626 = vld [vmem:[#allocation2 + $0x30] sm:$0xff]
    %v1627 = vld [vmem:[#allocation2 + $0x38] sm:$0xff]
    %v1628 = vlaneseq
    %v1629 = vshrl.u32 %v1628, 7
    %v1630 = vsub.s32 0, %v1629
    %v1631 = vrot.slane %v53, %v1630
    %v1633 = vsel %vm160, %v1620, 0
    %v1636 = vsel %vm160, %v1621, 0
    %v1639 = vsel %vm160, %v1622, 0
    %v1642 = vsel %vm160, %v1623, 0
    %v1645 = vsel %vm160, %v1624, 0
    %v1648 = vsel %vm160, %v1625, 0
    %v1651 = vsel %vm160, %v1626, 0
    %v1654 = vsel %vm160, %v1627, 0
    %1656 = vmatprep.subr.mxu0 0.0
    %1657 = vmatpush1.msra.mxu0 %v45
    %1658 = vmatprep.subr.mxu0 0.0
    %1659 = vmatpush1.msra.mxu0 %v46
    %1660 = vmatprep.subr.mxu0 0.0
    %1661 = vmatpush1.msra.mxu0 %v47
    %1662 = vmatprep.subr.mxu0 0.0
    %1663 = vmatpush1.msra.mxu0 %v48
    %1664 = vmatprep.subr.mxu0 0.0
    %1665 = vmatpush1.msra.mxu0 0.0
    %1666 = vmatprep.subr.mxu0 0.0
    %1667 = vmatpush1.msra.mxu0 0.0
    %1668 = vmatprep.subr.mxu0 0.0
    %1669 = vmatpush1.msra.mxu0 0.0
    %1670 = vmatprep.subr.mxu0 0.0
    %1671 = vmatpush1.msra.mxu0 0.0
    %1672 = vmatprep.subr.mxu0 0.0
    %1673 = vmatpush1.msra.mxu0 0.0
    %1674 = vmatprep.subr.mxu0 0.0
    %1675 = vmatpush1.msra.mxu0 0.0
    %1676 = vmatprep.subr.mxu0 0.0
    %1677 = vmatpush1.msra.mxu0 0.0
    %1678 = vmatprep.subr.mxu0 0.0
    %1679 = vmatpush1.msra.mxu0 0.0
    %1680 = vmatprep.subr.mxu0 0.0
    %1681 = vmatpush1.msra.mxu0 0.0
    %1682 = vmatprep.subr.mxu0 0.0
    %1683 = vmatpush1.msra.mxu0 0.0
    %1684 = vmatprep.subr.mxu0 0.0
    %1685 = vmatpush1.msra.mxu0 0.0
    %1686 = vmatprep.subr.mxu0 0.0
    %1687 = vmatpush1.msra.mxu0 0.0
    %1688 = vmatprep.subr.mxu0 0.0
    %1689 = vmatpush1.msra.mxu0 0.0
    %1690 = vmatprep.subr.mxu0 0.0
    %1691 = vmatpush1.msra.mxu0 0.0
    %1692 = vmatprep.subr.mxu0 0.0
    %1693 = vmatpush1.msra.mxu0 0.0
    %1694 = vmatprep.subr.mxu0 0.0
    %1695 = vmatpush1.msra.mxu0 0.0
    %1696 = vmatprep.subr.mxu0 0.0
    %1697 = vmatpush1.msra.mxu0 0.0
    %1698 = vmatprep.subr.mxu0 0.0
    %1699 = vmatpush1.msra.mxu0 0.0
    %1700 = vmatprep.subr.mxu0 0.0
    %1701 = vmatpush1.msra.mxu0 0.0
    %1702 = vmatprep.subr.mxu0 0.0
    %1703 = vmatpush1.msra.mxu0 0.0
    %1704 = vmatprep.subr.mxu0 0.0
    %1705 = vmatpush1.msra.mxu0 0.0
    %1706 = vmatprep.subr.mxu0 0.0
    %1707 = vmatpush1.msra.mxu0 0.0
    %1708 = vmatprep.subr.mxu0 0.0
    %1709 = vmatpush1.msra.mxu0 0.0
    %1710 = vmatprep.subr.mxu0 0.0
    %1711 = vmatpush1.msra.mxu0 0.0
    %1712 = vmatprep.subr.mxu0 0.0
    %1713 = vmatpush1.msra.mxu0 0.0
    %1714 = vmatprep.subr.mxu0 0.0
    %1715 = vmatpush1.msra.mxu0 0.0
    %1716 = vmatprep.subr.mxu0 0.0
    %1717 = vmatpush1.msra.mxu0 0.0
    %1718 = vmatprep.subr.mxu0 0.0
    %1719 = vmatpush1.msra.mxu0 0.0
    %1720 = vmatprep.mubr.f32.mxu0 0.0
    %1721 = vmatmul.mubr.f32.gmra.mrb[0].mxu0 %v1633
    %v1722 = vpop.f32.mrb[0].mxu0
    %v1723 = vadd.f32 %v1631, %v1722
    %v1724 = vpop.f32.mrb[0].mxu0
    %1725 = vmatprep.mubr.f32.mxu0 0.0
    %1726 = vmatmul.mubr.f32.gmra.mrb[0].mxu0 %v1636
    %v1727 = vpop.f32.mrb[0].mxu0
    %v1728 = vadd.f32 %v1631, %v1727
    %v1729 = vpop.f32.mrb[0].mxu0
    %1730 = vmatprep.mubr.f32.mxu0 0.0
    %1731 = vmatmul.mubr.f32.gmra.mrb[0].mxu0 %v1639
    %v1732 = vpop.f32.mrb[0].mxu0
    %v1733 = vadd.f32 %v1631, %v1732
    %v1734 = vpop.f32.mrb[0].mxu0
    %1735 = vmatprep.mubr.f32.mxu0 0.0
    %1736 = vmatmul.mubr.f32.gmra.mrb[0].mxu0 %v1642
    %v1737 = vpop.f32.mrb[0].mxu0
    %v1738 = vadd.f32 %v1631, %v1737
    %v1739 = vpop.f32.mrb[0].mxu0
    %1740 = vmatprep.mubr.f32.mxu0 0.0
    %1741 = vmatmul.mubr.f32.gmra.mrb[0].mxu0 %v1645
    %v1742 = vpop.f32.mrb[0].mxu0
    %v1743 = vadd.f32 %v1631, %v1742
    %v1744 = vpop.f32.mrb[0].mxu0
    %1745 = vmatprep.mubr.f32.mxu0 0.0
    %1746 = vmatmul.mubr.f32.gmra.mrb[0].mxu0 %v1648
    %v1747 = vpop.f32.mrb[0].mxu0
    %v1748 = vadd.f32 %v1631, %v1747
    %v1749 = vpop.f32.mrb[0].mxu0
    %1750 = vmatprep.mubr.f32.mxu0 0.0
    %1751 = vmatmul.mubr.f32.gmra.mrb[0].mxu0 %v1651
    %v1752 = vpop.f32.mrb[0].mxu0
    %v1753 = vadd.f32 %v1631, %v1752
    %v1754 = vpop.f32.mrb[0].mxu0
    %1755 = vmatprep.mubr.f32.mxu0 0.0
    %1756 = vmatmul.mubr.f32.gmra.mrb[0].mxu0 %v1654
    %v1757 = vpop.f32.mrb[0].mxu0
    %v1758 = vadd.f32 %v1631, %v1757
    %v1759 = vpop.f32.mrb[0].mxu0
    %1760 = vdwg.mxu0
    %1761 = vst [vmem:[#allocation3] sm:$0xff] %v1723
    %1762 = vst [vmem:[#allocation3 + $0x8] sm:$0xff] %v1728
    %1763 = vst [vmem:[#allocation3 + $0x10] sm:$0xff] %v1733
    %1764 = vst [vmem:[#allocation3 + $0x18] sm:$0xff] %v1738
    %1765 = vst [vmem:[#allocation3 + $0x20] sm:$0xff] %v1743
    %1766 = vst [vmem:[#allocation3 + $0x28] sm:$0xff] %v1748
    %1767 = vst [vmem:[#allocation3 + $0x30] sm:$0xff] %v1753
    %1768 = vst [vmem:[#allocation3 + $0x38] sm:$0xff] %v1758
    %v1769 = vld [vmem:[#allocation3] sm:$0xff]
    %1770 = vmatprep.subr.mxu0 0.0
    %1771 = vmatpush1.msra.mxu0 %v49
    %1772 = vmatprep.subr.mxu0 0.0
    %1773 = vmatpush1.msra.mxu0 %v50
    %1774 = vmatprep.subr.mxu0 0.0
    %1775 = vmatpush1.msra.mxu0 %v51
    %1776 = vmatprep.subr.mxu0 0.0
    %1777 = vmatpush1.msra.mxu0 %v52
    %1778 = vmatprep.subr.mxu0 0.0
    %1779 = vmatpush1.msra.mxu0 0.0
    %1780 = vmatprep.subr.mxu0 0.0
    %1781 = vmatpush1.msra.mxu0 0.0
    %1782 = vmatprep.subr.mxu0 0.0
    %1783 = vmatpush1.msra.mxu0 0.0
    %1784 = vmatprep.subr.mxu0 0.0
    %1785 = vmatpush1.msra.mxu0 0.0
    %1786 = vmatprep.subr.mxu0 0.0
    %1787 = vmatpush1.msra.mxu0 0.0
    %1788 = vmatprep.subr.mxu0 0.0
    %1789 = vmatpush1.msra.mxu0 0.0
    %1790 = vmatprep.subr.mxu0 0.0
    %1791 = vmatpush1.msra.mxu0 0.0
    %1792 = vmatprep.subr.mxu0 0.0
    %1793 = vmatpush1.msra.mxu0 0.0
    %1794 = vmatprep.subr.mxu0 0.0
    %1795 = vmatpush1.msra.mxu0 0.0
    %1796 = vmatprep.subr.mxu0 0.0
    %1797 = vmatpush1.msra.mxu0 0.0
    %1798 = vmatprep.subr.mxu0 0.0
    %1799 = vmatpush1.msra.mxu0 0.0
    %1800 = vmatprep.subr.mxu0 0.0
    %1801 = vmatpush1.msra.mxu0 0.0
    %1802 = vmatprep.subr.mxu0 0.0
    %1803 = vmatpush1.msra.mxu0 0.0
    %1804 = vmatprep.subr.mxu0 0.0
    %1805 = vmatpush1.msra.mxu0 0.0
    %1806 = vmatprep.subr.mxu0 0.0
    %1807 = vmatpush1.msra.mxu0 0.0
    %1808 = vmatprep.subr.mxu0 0.0
    %1809 = vmatpush1.msra.mxu0 0.0
    %1810 = vmatprep.subr.mxu0 0.0
    %1811 = vmatpush1.msra.mxu0 0.0
    %1812 = vmatprep.subr.mxu0 0.0
    %1813 = vmatpush1.msra.mxu0 0.0
    %1814 = vmatprep.subr.mxu0 0.0
    %1815 = vmatpush1.msra.mxu0 0.0
    %1816 = vmatprep.subr.mxu0 0.0
    %1817 = vmatpush1.msra.mxu0 0.0
    %1818 = vmatprep.subr.mxu0 0.0
    %1819 = vmatpush1.msra.mxu0 0.0
    %1820 = vmatprep.subr.mxu0 0.0
    %1821 = vmatpush1.msra.mxu0 0.0
    %1822 = vmatprep.subr.mxu0 0.0
    %1823 = vmatpush1.msra.mxu0 0.0
    %1824 = vmatprep.subr.mxu0 0.0
    %1825 = vmatpush1.msra.mxu0 0.0
    %1826 = vmatprep.subr.mxu0 0.0
    %1827 = vmatpush1.msra.mxu0 0.0
    %1828 = vmatprep.subr.mxu0 0.0
    %1829 = vmatpush1.msra.mxu0 0.0
    %1830 = vmatprep.subr.mxu0 0.0
    %1831 = vmatpush1.msra.mxu0 0.0
    %1832 = vmatprep.subr.mxu0 0.0
    %1833 = vmatpush1.msra.mxu0 0.0
    %1834 = vmatprep.mubr.f32.mxu0 0.0
    %1835 = vmatmul.mubr.f32.gmra.mrb[0].mxu0 %v818
    %v1836 = vpop.f32.mrb[0].mxu0
    %v1837 = vadd.f32 0.0, %v1836
    %v1838 = vpop.f32.mrb[0].mxu0
    %1839 = vdwg.mxu0
    %v1840 = vadd.f32 %v1769, %v1837
    %v1841 = vmul.f32 %v814, %v1840
    %v1842 = vtanh.pop %v1841
    %v1843 = vmul.f32 %v814, %v1842
    %v1844 = vadd.f32 %v1843, %v815
    %v1845 = vmul.f32 %v1844, %v896
    %1847 = vrot.lane.b32.xlu0 %v1844, 64
    %v1848 = vpop.permute.xlu0 %1847
    %v1850 = vmul.f32 %v1844, %v1848
    %1852 = vrot.lane.b32.xlu0 %v1850, 32
    %v1853 = vpop.permute.xlu0 %1852
    %v1855 = vadd.f32 %v1845, %v1853
    %v1856 = vtanh.pop %v1855
    %1858 = vrot.lane.b32.xlu0 %v1856, 64
    %v1859 = vpop.permute.xlu0 %1858
    %v1861 = vmul.f32 %v1844, %v1859
    %1863 = vrot.lane.b32.xlu0 %v1861, 32
    %v1864 = vpop.permute.xlu0 %1863
    %1866 = vst.msk [vmem:[#allocation2] sm:$0xff] %vm160, %v1864
    %v1867 = vld [vmem:[#allocation3 + $0x8] sm:$0xff]
    %v1868 = vsel %vm160, %v1864, 0
    %1870 = vmatprep.subr.mxu0 0.0
    %1871 = vmatpush1.msra.mxu0 %v49
    %1872 = vmatprep.subr.mxu0 0.0
    %1873 = vmatpush1.msra.mxu0 %v50
    %1874 = vmatprep.subr.mxu0 0.0
    %1875 = vmatpush1.msra.mxu0 %v51
    %1876 = vmatprep.subr.mxu0 0.0
    %1877 = vmatpush1.msra.mxu0 %v52
    %1878 = vmatprep.subr.mxu0 0.0
    %1879 = vmatpush1.msra.mxu0 0.0
    %1880 = vmatprep.subr.mxu0 0.0
    %1881 = vmatpush1.msra.mxu0 0.0
    %1882 = vmatprep.subr.mxu0 0.0
    %1883 = vmatpush1.msra.mxu0 0.0
    %1884 = vmatprep.subr.mxu0 0.0
    %1885 = vmatpush1.msra.mxu0 0.0
    %1886 = vmatprep.subr.mxu0 0.0
    %1887 = vmatpush1.msra.mxu0 0.0
    %1888 = vmatprep.subr.mxu0 0.0
    %1889 = vmatpush1.msra.mxu0 0.0
    %1890 = vmatprep.subr.mxu0 0.0
    %1891 = vmatpush1.msra.mxu0 0.0
    %1892 = vmatprep.subr.mxu0 0.0
    %1893 = vmatpush1.msra.mxu0 0.0
    %1894 = vmatprep.subr.mxu0 0.0
    %1895 = vmatpush1.msra.mxu0 0.0
    %1896 = vmatprep.subr.mxu0 0.0
    %1897 = vmatpush1.msra.mxu0 0.0
    %1898 = vmatprep.subr.mxu0 0.0
    %1899 = vmatpush1.msra.mxu0 0.0
    %1900 = vmatprep.subr.mxu0 0.0
    %1901 = vmatpush1.msra.mxu0 0.0
    %1902 = vmatprep.subr.mxu0 0.0
    %1903 = vmatpush1.msra.mxu0 0.0
    %1904 = vmatprep.subr.mxu0 0.0
    %1905 = vmatpush1.msra.mxu0 0.0
    %1906 = vmatprep.subr.mxu0 0.0
    %1907 = vmatpush1.msra.mxu0 0.0
    %1908 = vmatprep.subr.mxu0 0.0
    %1909 = vmatpush1.msra.mxu0 0.0
    %1910 = vmatprep.subr.mxu0 0.0
    %1911 = vmatpush1.msra.mxu0 0.0
    %1912 = vmatprep.subr.mxu0 0.0
    %1913 = vmatpush1.msra.mxu0 0.0
    %1914 = vmatprep.subr.mxu0 0.0
    %1915 = vmatpush1.msra.mxu0 0.0
    %1916 = vmatprep.subr.mxu0 0.0
    %1917 = vmatpush1.msra.mxu0 0.0
    %1918 = vmatprep.subr.mxu0 0.0
    %1919 = vmatpush1.msra.mxu0 0.0
    %1920 = vmatprep.subr.mxu0 0.0
    %1921 = vmatpush1.msra.mxu0 0.0
    %1922 = vmatprep.subr.mxu0 0.0
    %1923 = vmatpush1.msra.mxu0 0.0
    %1924 = vmatprep.subr.mxu0 0.0
    %1925 = vmatpush1.msra.mxu0 0.0
    %1926 = vmatprep.subr.mxu0 0.0
    %1927 = vmatpush1.msra.mxu0 0.0
    %1928 = vmatprep.subr.mxu0 0.0
    %1929 = vmatpush1.msra.mxu0 0.0
    %1930 = vmatprep.subr.mxu0 0.0
    %1931 = vmatpush1.msra.mxu0 0.0
    %1932 = vmatprep.subr.mxu0 0.0
    %1933 = vmatpush1.msra.mxu0 0.0
    %1934 = vmatprep.mubr.f32.mxu0 0.0
    %1935 = vmatmul.mubr.f32.gmra.mrb[0].mxu0 %v1868
    %v1936 = vpop.f32.mrb[0].mxu0
    %v1937 = vadd.f32 0.0, %v1936
    %v1938 = vpop.f32.mrb[0].mxu0
    %1939 = vdwg.mxu0
    %v1940 = vadd.f32 %v1867, %v1937
    %v1941 = vmul.f32 %v814, %v1940
    %v1942 = vtanh.pop %v1941
    %v1943 = vmul.f32 %v814, %v1942
    %v1944 = vadd.f32 %v1943, %v815
    %v1945 = vmul.f32 %v1944, %v1855
    %1947 = vrot.lane.b32.xlu0 %v1944, 64
    %v1948 = vpop.permute.xlu0 %1947
    %v1950 = vmul.f32 %v1944, %v1948
    %1952 = vrot.lane.b32.xlu0 %v1950, 32
    %v1953 = vpop.permute.xlu0 %1952
    %v1955 = vadd.f32 %v1945, %v1953
    %v1956 = vtanh.pop %v1955
    %1958 = vrot.lane.b32.xlu0 %v1956, 64
    %v1959 = vpop.permute.xlu0 %1958
    %v1961 = vmul.f32 %v1944, %v1959
    %1963 = vrot.lane.b32.xlu0 %v1961, 32
    %v1964 = vpop.permute.xlu0 %1963
    %1966 = vst.msk [vmem:[#allocation2 + $0x8] sm:$0xff] %vm160, %v1964
    %v1967 = vld [vmem:[#allocation3 + $0x10] sm:$0xff]
    %v1968 = vsel %vm160, %v1964, 0
    %1970 = vmatprep.subr.mxu0 0.0
    %1971 = vmatpush1.msra.mxu0 %v49
    %1972 = vmatprep.subr.mxu0 0.0
    %1973 = vmatpush1.msra.mxu0 %v50
    %1974 = vmatprep.subr.mxu0 0.0
    %1975 = vmatpush1.msra.mxu0 %v51
    %1976 = vmatprep.subr.mxu0 0.0
    %1977 = vmatpush1.msra.mxu0 %v52
    %1978 = vmatprep.subr.mxu0 0.0
    %1979 = vmatpush1.msra.mxu0 0.0
    %1980 = vmatprep.subr.mxu0 0.0
    %1981 = vmatpush1.msra.mxu0 0.0
    %1982 = vmatprep.subr.mxu0 0.0
    %1983 = vmatpush1.msra.mxu0 0.0
    %1984 = vmatprep.subr.mxu0 0.0
    %1985 = vmatpush1.msra.mxu0 0.0
    %1986 = vmatprep.subr.mxu0 0.0
    %1987 = vmatpush1.msra.mxu0 0.0
    %1988 = vmatprep.subr.mxu0 0.0
    %1989 = vmatpush1.msra.mxu0 0.0
    %1990 = vmatprep.subr.mxu0 0.0
    %1991 = vmatpush1.msra.mxu0 0.0
    %1992 = vmatprep.subr.mxu0 0.0
    %1993 = vmatpush1.msra.mxu0 0.0
    %1994 = vmatprep.subr.mxu0 0.0
    %1995 = vmatpush1.msra.mxu0 0.0
    %1996 = vmatprep.subr.mxu0 0.0
    %1997 = vmatpush1.msra.mxu0 0.0
    %1998 = vmatprep.subr.mxu0 0.0
    %1999 = vmatpush1.msra.mxu0 0.0
    %2000 = vmatprep.subr.mxu0 0.0
    %2001 = vmatpush1.msra.mxu0 0.0
    %2002 = vmatprep.subr.mxu0 0.0
    %2003 = vmatpush1.msra.mxu0 0.0
    %2004 = vmatprep.subr.mxu0 0.0
    %2005 = vmatpush1.msra.mxu0 0.0
    %2006 = vmatprep.subr.mxu0 0.0
    %2007 = vmatpush1.msra.mxu0 0.0
    %2008 = vmatprep.subr.mxu0 0.0
    %2009 = vmatpush1.msra.mxu0 0.0
    %2010 = vmatprep.subr.mxu0 0.0
    %2011 = vmatpush1.msra.mxu0 0.0
    %2012 = vmatprep.subr.mxu0 0.0
    %2013 = vmatpush1.msra.mxu0 0.0
    %2014 = vmatprep.subr.mxu0 0.0
    %2015 = vmatpush1.msra.mxu0 0.0
    %2016 = vmatprep.subr.mxu0 0.0
    %2017 = vmatpush1.msra.mxu0 0.0
    %2018 = vmatprep.subr.mxu0 0.0
    %2019 = vmatpush1.msra.mxu0 0.0
    %2020 = vmatprep.subr.mxu0 0.0
    %2021 = vmatpush1.msra.mxu0 0.0
    %2022 = vmatprep.subr.mxu0 0.0
    %2023 = vmatpush1.msra.mxu0 0.0
    %2024 = vmatprep.subr.mxu0 0.0
    %2025 = vmatpush1.msra.mxu0 0.0
    %2026 = vmatprep.subr.mxu0 0.0
    %2027 = vmatpush1.msra.mxu0 0.0
    %2028 = vmatprep.subr.mxu0 0.0
    %2029 = vmatpush1.msra.mxu0 0.0
    %2030 = vmatprep.subr.mxu0 0.0
    %2031 = vmatpush1.msra.mxu0 0.0
    %2032 = vmatprep.subr.mxu0 0.0
    %2033 = vmatpush1.msra.mxu0 0.0
    %2034 = vmatprep.mubr.f32.mxu0 0.0
    %2035 = vmatmul.mubr.f32.gmra.mrb[0].mxu0 %v1968
    %v2036 = vpop.f32.mrb[0].mxu0
    %v2037 = vadd.f32 0.0, %v2036
    %v2038 = vpop.f32.mrb[0].mxu0
    %2039 = vdwg.mxu0
    %v2040 = vadd.f32 %v1967, %v2037
    %v2041 = vmul.f32 %v814, %v2040
    %v2042 = vtanh.pop %v2041
    %v2043 = vmul.f32 %v814, %v2042
    %v2044 = vadd.f32 %v2043, %v815
    %v2045 = vmul.f32 %v2044, %v1955
    %2047 = vrot.lane.b32.xlu0 %v2044, 64
    %v2048 = vpop.permute.xlu0 %2047
    %v2050 = vmul.f32 %v2044, %v2048
    %2052 = vrot.lane.b32.xlu0 %v2050, 32
    %v2053 = vpop.permute.xlu0 %2052
    %v2055 = vadd.f32 %v2045, %v2053
    %v2056 = vtanh.pop %v2055
    %2058 = vrot.lane.b32.xlu0 %v2056, 64
    %v2059 = vpop.permute.xlu0 %2058
    %v2061 = vmul.f32 %v2044, %v2059
    %2063 = vrot.lane.b32.xlu0 %v2061, 32
    %v2064 = vpop.permute.xlu0 %2063
    %2066 = vst.msk [vmem:[#allocation2 + $0x10] sm:$0xff] %vm160, %v2064
    %v2067 = vld [vmem:[#allocation3 + $0x18] sm:$0xff]
    %v2068 = vsel %vm160, %v2064, 0
    %2070 = vmatprep.subr.mxu0 0.0
    %2071 = vmatpush1.msra.mxu0 %v49
    %2072 = vmatprep.subr.mxu0 0.0
    %2073 = vmatpush1.msra.mxu0 %v50
    %2074 = vmatprep.subr.mxu0 0.0
    %2075 = vmatpush1.msra.mxu0 %v51
    %2076 = vmatprep.subr.mxu0 0.0
    %2077 = vmatpush1.msra.mxu0 %v52
    %2078 = vmatprep.subr.mxu0 0.0
    %2079 = vmatpush1.msra.mxu0 0.0
    %2080 = vmatprep.subr.mxu0 0.0
    %2081 = vmatpush1.msra.mxu0 0.0
    %2082 = vmatprep.subr.mxu0 0.0
    %2083 = vmatpush1.msra.mxu0 0.0
    %2084 = vmatprep.subr.mxu0 0.0
    %2085 = vmatpush1.msra.mxu0 0.0
    %2086 = vmatprep.subr.mxu0 0.0
    %2087 = vmatpush1.msra.mxu0 0.0
    %2088 = vmatprep.subr.mxu0 0.0
    %2089 = vmatpush1.msra.mxu0 0.0
    %2090 = vmatprep.subr.mxu0 0.0
    %2091 = vmatpush1.msra.mxu0 0.0
    %2092 = vmatprep.subr.mxu0 0.0
    %2093 = vmatpush1.msra.mxu0 0.0
    %2094 = vmatprep.subr.mxu0 0.0
    %2095 = vmatpush1.msra.mxu0 0.0
    %2096 = vmatprep.subr.mxu0 0.0
    %2097 = vmatpush1.msra.mxu0 0.0
    %2098 = vmatprep.subr.mxu0 0.0
    %2099 = vmatpush1.msra.mxu0 0.0
    %2100 = vmatprep.subr.mxu0 0.0
    %2101 = vmatpush1.msra.mxu0 0.0
    %2102 = vmatprep.subr.mxu0 0.0
    %2103 = vmatpush1.msra.mxu0 0.0
    %2104 = vmatprep.subr.mxu0 0.0
    %2105 = vmatpush1.msra.mxu0 0.0
    %2106 = vmatprep.subr.mxu0 0.0
    %2107 = vmatpush1.msra.mxu0 0.0
    %2108 = vmatprep.subr.mxu0 0.0
    %2109 = vmatpush1.msra.mxu0 0.0
    %2110 = vmatprep.subr.mxu0 0.0
    %2111 = vmatpush1.msra.mxu0 0.0
    %2112 = vmatprep.subr.mxu0 0.0
    %2113 = vmatpush1.msra.mxu0 0.0
    %2114 = vmatprep.subr.mxu0 0.0
    %2115 = vmatpush1.msra.mxu0 0.0
    %2116 = vmatprep.subr.mxu0 0.0
    %2117 = vmatpush1.msra.mxu0 0.0
    %2118 = vmatprep.subr.mxu0 0.0
    %2119 = vmatpush1.msra.mxu0 0.0
    %2120 = vmatprep.subr.mxu0 0.0
    %2121 = vmatpush1.msra.mxu0 0.0
    %2122 = vmatprep.subr.mxu0 0.0
    %2123 = vmatpush1.msra.mxu0 0.0
    %2124 = vmatprep.subr.mxu0 0.0
    %2125 = vmatpush1.msra.mxu0 0.0
    %2126 = vmatprep.subr.mxu0 0.0
    %2127 = vmatpush1.msra.mxu0 0.0
    %2128 = vmatprep.subr.mxu0 0.0
    %2129 = vmatpush1.msra.mxu0 0.0
    %2130 = vmatprep.subr.mxu0 0.0
    %2131 = vmatpush1.msra.mxu0 0.0
    %2132 = vmatprep.subr.mxu0 0.0
    %2133 = vmatpush1.msra.mxu0 0.0
    %2134 = vmatprep.mubr.f32.mxu0 0.0
    %2135 = vmatmul.mubr.f32.gmra.mrb[0].mxu0 %v2068
    %v2136 = vpop.f32.mrb[0].mxu0
    %v2137 = vadd.f32 0.0, %v2136
    %v2138 = vpop.f32.mrb[0].mxu0
    %2139 = vdwg.mxu0
    %v2140 = vadd.f32 %v2067, %v2137
    %v2141 = vmul.f32 %v814, %v2140
    %v2142 = vtanh.pop %v2141
    %v2143 = vmul.f32 %v814, %v2142
    %v2144 = vadd.f32 %v2143, %v815
    %v2145 = vmul.f32 %v2144, %v2055
    %2147 = vrot.lane.b32.xlu0 %v2144, 64
    %v2148 = vpop.permute.xlu0 %2147
    %v2150 = vmul.f32 %v2144, %v2148
    %2152 = vrot.lane.b32.xlu0 %v2150, 32
    %v2153 = vpop.permute.xlu0 %2152
    %v2155 = vadd.f32 %v2145, %v2153
    %v2156 = vtanh.pop %v2155
    %2158 = vrot.lane.b32.xlu0 %v2156, 64
    %v2159 = vpop.permute.xlu0 %2158
    %v2161 = vmul.f32 %v2144, %v2159
    %2163 = vrot.lane.b32.xlu0 %v2161, 32
    %v2164 = vpop.permute.xlu0 %2163
    %2166 = vst.msk [vmem:[#allocation2 + $0x18] sm:$0xff] %vm160, %v2164
    %v2167 = vld [vmem:[#allocation3 + $0x20] sm:$0xff]
    %v2168 = vsel %vm160, %v2164, 0
    %2170 = vmatprep.subr.mxu0 0.0
    %2171 = vmatpush1.msra.mxu0 %v49
    %2172 = vmatprep.subr.mxu0 0.0
    %2173 = vmatpush1.msra.mxu0 %v50
    %2174 = vmatprep.subr.mxu0 0.0
    %2175 = vmatpush1.msra.mxu0 %v51
    %2176 = vmatprep.subr.mxu0 0.0
    %2177 = vmatpush1.msra.mxu0 %v52
    %2178 = vmatprep.subr.mxu0 0.0
    %2179 = vmatpush1.msra.mxu0 0.0
    %2180 = vmatprep.subr.mxu0 0.0
    %2181 = vmatpush1.msra.mxu0 0.0
    %2182 = vmatprep.subr.mxu0 0.0
    %2183 = vmatpush1.msra.mxu0 0.0
    %2184 = vmatprep.subr.mxu0 0.0
    %2185 = vmatpush1.msra.mxu0 0.0
    %2186 = vmatprep.subr.mxu0 0.0
    %2187 = vmatpush1.msra.mxu0 0.0
    %2188 = vmatprep.subr.mxu0 0.0
    %2189 = vmatpush1.msra.mxu0 0.0
    %2190 = vmatprep.subr.mxu0 0.0
    %2191 = vmatpush1.msra.mxu0 0.0
    %2192 = vmatprep.subr.mxu0 0.0
    %2193 = vmatpush1.msra.mxu0 0.0
    %2194 = vmatprep.subr.mxu0 0.0
    %2195 = vmatpush1.msra.mxu0 0.0
    %2196 = vmatprep.subr.mxu0 0.0
    %2197 = vmatpush1.msra.mxu0 0.0
    %2198 = vmatprep.subr.mxu0 0.0
    %2199 = vmatpush1.msra.mxu0 0.0
    %2200 = vmatprep.subr.mxu0 0.0
    %2201 = vmatpush1.msra.mxu0 0.0
    %2202 = vmatprep.subr.mxu0 0.0
    %2203 = vmatpush1.msra.mxu0 0.0
    %2204 = vmatprep.subr.mxu0 0.0
    %2205 = vmatpush1.msra.mxu0 0.0
    %2206 = vmatprep.subr.mxu0 0.0
    %2207 = vmatpush1.msra.mxu0 0.0
    %2208 = vmatprep.subr.mxu0 0.0
    %2209 = vmatpush1.msra.mxu0 0.0
    %2210 = vmatprep.subr.mxu0 0.0
    %2211 = vmatpush1.msra.mxu0 0.0
    %2212 = vmatprep.subr.mxu0 0.0
    %2213 = vmatpush1.msra.mxu0 0.0
    %2214 = vmatprep.subr.mxu0 0.0
    %2215 = vmatpush1.msra.mxu0 0.0
    %2216 = vmatprep.subr.mxu0 0.0
    %2217 = vmatpush1.msra.mxu0 0.0
    %2218 = vmatprep.subr.mxu0 0.0
    %2219 = vmatpush1.msra.mxu0 0.0
    %2220 = vmatprep.subr.mxu0 0.0
    %2221 = vmatpush1.msra.mxu0 0.0
    %2222 = vmatprep.subr.mxu0 0.0
    %2223 = vmatpush1.msra.mxu0 0.0
    %2224 = vmatprep.subr.mxu0 0.0
    %2225 = vmatpush1.msra.mxu0 0.0
    %2226 = vmatprep.subr.mxu0 0.0
    %2227 = vmatpush1.msra.mxu0 0.0
    %2228 = vmatprep.subr.mxu0 0.0
    %2229 = vmatpush1.msra.mxu0 0.0
    %2230 = vmatprep.subr.mxu0 0.0
    %2231 = vmatpush1.msra.mxu0 0.0
    %2232 = vmatprep.subr.mxu0 0.0
    %2233 = vmatpush1.msra.mxu0 0.0
    %2234 = vmatprep.mubr.f32.mxu0 0.0
    %2235 = vmatmul.mubr.f32.gmra.mrb[0].mxu0 %v2168
    %v2236 = vpop.f32.mrb[0].mxu0
    %v2237 = vadd.f32 0.0, %v2236
    %v2238 = vpop.f32.mrb[0].mxu0
    %2239 = vdwg.mxu0
    %v2240 = vadd.f32 %v2167, %v2237
    %v2241 = vmul.f32 %v814, %v2240
    %v2242 = vtanh.pop %v2241
    %v2243 = vmul.f32 %v814, %v2242
    %v2244 = vadd.f32 %v2243, %v815
    %v2245 = vmul.f32 %v2244, %v2155
    %2247 = vrot.lane.b32.xlu0 %v2244, 64
    %v2248 = vpop.permute.xlu0 %2247
    %v2250 = vmul.f32 %v2244, %v2248
    %2252 = vrot.lane.b32.xlu0 %v2250, 32
    %v2253 = vpop.permute.xlu0 %2252
    %v2255 = vadd.f32 %v2245, %v2253
    %v2256 = vtanh.pop %v2255
    %2258 = vrot.lane.b32.xlu0 %v2256, 64
    %v2259 = vpop.permute.xlu0 %2258
    %v2261 = vmul.f32 %v2244, %v2259
    %2263 = vrot.lane.b32.xlu0 %v2261, 32
    %v2264 = vpop.permute.xlu0 %2263
    %2266 = vst.msk [vmem:[#allocation2 + $0x20] sm:$0xff] %vm160, %v2264
    %v2267 = vld [vmem:[#allocation3 + $0x28] sm:$0xff]
    %v2268 = vsel %vm160, %v2264, 0
    %2270 = vmatprep.subr.mxu0 0.0
    %2271 = vmatpush1.msra.mxu0 %v49
    %2272 = vmatprep.subr.mxu0 0.0
    %2273 = vmatpush1.msra.mxu0 %v50
    %2274 = vmatprep.subr.mxu0 0.0
    %2275 = vmatpush1.msra.mxu0 %v51
    %2276 = vmatprep.subr.mxu0 0.0
    %2277 = vmatpush1.msra.mxu0 %v52
    %2278 = vmatprep.subr.mxu0 0.0
    %2279 = vmatpush1.msra.mxu0 0.0
    %2280 = vmatprep.subr.mxu0 0.0
    %2281 = vmatpush1.msra.mxu0 0.0
    %2282 = vmatprep.subr.mxu0 0.0
    %2283 = vmatpush1.msra.mxu0 0.0
    %2284 = vmatprep.subr.mxu0 0.0
    %2285 = vmatpush1.msra.mxu0 0.0
    %2286 = vmatprep.subr.mxu0 0.0
    %2287 = vmatpush1.msra.mxu0 0.0
    %2288 = vmatprep.subr.mxu0 0.0
    %2289 = vmatpush1.msra.mxu0 0.0
    %2290 = vmatprep.subr.mxu0 0.0
    %2291 = vmatpush1.msra.mxu0 0.0
    %2292 = vmatprep.subr.mxu0 0.0
    %2293 = vmatpush1.msra.mxu0 0.0
    %2294 = vmatprep.subr.mxu0 0.0
    %2295 = vmatpush1.msra.mxu0 0.0
    %2296 = vmatprep.subr.mxu0 0.0
    %2297 = vmatpush1.msra.mxu0 0.0
    %2298 = vmatprep.subr.mxu0 0.0
    %2299 = vmatpush1.msra.mxu0 0.0
    %2300 = vmatprep.subr.mxu0 0.0
    %2301 = vmatpush1.msra.mxu0 0.0
    %2302 = vmatprep.subr.mxu0 0.0
    %2303 = vmatpush1.msra.mxu0 0.0
    %2304 = vmatprep.subr.mxu0 0.0
    %2305 = vmatpush1.msra.mxu0 0.0
    %2306 = vmatprep.subr.mxu0 0.0
    %2307 = vmatpush1.msra.mxu0 0.0
    %2308 = vmatprep.subr.mxu0 0.0
    %2309 = vmatpush1.msra.mxu0 0.0
    %2310 = vmatprep.subr.mxu0 0.0
    %2311 = vmatpush1.msra.mxu0 0.0
    %2312 = vmatprep.subr.mxu0 0.0
    %2313 = vmatpush1.msra.mxu0 0.0
    %2314 = vmatprep.subr.mxu0 0.0
    %2315 = vmatpush1.msra.mxu0 0.0
    %2316 = vmatprep.subr.mxu0 0.0
    %2317 = vmatpush1.msra.mxu0 0.0
    %2318 = vmatprep.subr.mxu0 0.0
    %2319 = vmatpush1.msra.mxu0 0.0
    %2320 = vmatprep.subr.mxu0 0.0
    %2321 = vmatpush1.msra.mxu0 0.0
    %2322 = vmatprep.subr.mxu0 0.0
    %2323 = vmatpush1.msra.mxu0 0.0
    %2324 = vmatprep.subr.mxu0 0.0
    %2325 = vmatpush1.msra.mxu0 0.0
    %2326 = vmatprep.subr.mxu0 0.0
    %2327 = vmatpush1.msra.mxu0 0.0
    %2328 = vmatprep.subr.mxu0 0.0
    %2329 = vmatpush1.msra.mxu0 0.0
    %2330 = vmatprep.subr.mxu0 0.0
    %2331 = vmatpush1.msra.mxu0 0.0
    %2332 = vmatprep.subr.mxu0 0.0
    %2333 = vmatpush1.msra.mxu0 0.0
    %2334 = vmatprep.mubr.f32.mxu0 0.0
    %2335 = vmatmul.mubr.f32.gmra.mrb[0].mxu0 %v2268
    %v2336 = vpop.f32.mrb[0].mxu0
    %v2337 = vadd.f32 0.0, %v2336
    %v2338 = vpop.f32.mrb[0].mxu0
    %2339 = vdwg.mxu0
    %v2340 = vadd.f32 %v2267, %v2337
    %v2341 = vmul.f32 %v814, %v2340
    %v2342 = vtanh.pop %v2341
    %v2343 = vmul.f32 %v814, %v2342
    %v2344 = vadd.f32 %v2343, %v815
    %v2345 = vmul.f32 %v2344, %v2255
    %2347 = vrot.lane.b32.xlu0 %v2344, 64
    %v2348 = vpop.permute.xlu0 %2347
    %v2350 = vmul.f32 %v2344, %v2348
    %2352 = vrot.lane.b32.xlu0 %v2350, 32
    %v2353 = vpop.permute.xlu0 %2352
    %v2355 = vadd.f32 %v2345, %v2353
    %v2356 = vtanh.pop %v2355
    %2358 = vrot.lane.b32.xlu0 %v2356, 64
    %v2359 = vpop.permute.xlu0 %2358
    %v2361 = vmul.f32 %v2344, %v2359
    %2363 = vrot.lane.b32.xlu0 %v2361, 32
    %v2364 = vpop.permute.xlu0 %2363
    %2366 = vst.msk [vmem:[#allocation2 + $0x28] sm:$0xff] %vm160, %v2364
    %v2367 = vld [vmem:[#allocation3 + $0x30] sm:$0xff]
    %v2368 = vsel %vm160, %v2364, 0
    %2370 = vmatprep.subr.mxu0 0.0
    %2371 = vmatpush1.msra.mxu0 %v49
    %2372 = vmatprep.subr.mxu0 0.0
    %2373 = vmatpush1.msra.mxu0 %v50
    %2374 = vmatprep.subr.mxu0 0.0
    %2375 = vmatpush1.msra.mxu0 %v51
    %2376 = vmatprep.subr.mxu0 0.0
    %2377 = vmatpush1.msra.mxu0 %v52
    %2378 = vmatprep.subr.mxu0 0.0
    %2379 = vmatpush1.msra.mxu0 0.0
    %2380 = vmatprep.subr.mxu0 0.0
    %2381 = vmatpush1.msra.mxu0 0.0
    %2382 = vmatprep.subr.mxu0 0.0
    %2383 = vmatpush1.msra.mxu0 0.0
    %2384 = vmatprep.subr.mxu0 0.0
    %2385 = vmatpush1.msra.mxu0 0.0
    %2386 = vmatprep.subr.mxu0 0.0
    %2387 = vmatpush1.msra.mxu0 0.0
    %2388 = vmatprep.subr.mxu0 0.0
    %2389 = vmatpush1.msra.mxu0 0.0
    %2390 = vmatprep.subr.mxu0 0.0
    %2391 = vmatpush1.msra.mxu0 0.0
    %2392 = vmatprep.subr.mxu0 0.0
    %2393 = vmatpush1.msra.mxu0 0.0
    %2394 = vmatprep.subr.mxu0 0.0
    %2395 = vmatpush1.msra.mxu0 0.0
    %2396 = vmatprep.subr.mxu0 0.0
    %2397 = vmatpush1.msra.mxu0 0.0
    %2398 = vmatprep.subr.mxu0 0.0
    %2399 = vmatpush1.msra.mxu0 0.0
    %2400 = vmatprep.subr.mxu0 0.0
    %2401 = vmatpush1.msra.mxu0 0.0
    %2402 = vmatprep.subr.mxu0 0.0
    %2403 = vmatpush1.msra.mxu0 0.0
    %2404 = vmatprep.subr.mxu0 0.0
    %2405 = vmatpush1.msra.mxu0 0.0
    %2406 = vmatprep.subr.mxu0 0.0
    %2407 = vmatpush1.msra.mxu0 0.0
    %2408 = vmatprep.subr.mxu0 0.0
    %2409 = vmatpush1.msra.mxu0 0.0
    %2410 = vmatprep.subr.mxu0 0.0
    %2411 = vmatpush1.msra.mxu0 0.0
    %2412 = vmatprep.subr.mxu0 0.0
    %2413 = vmatpush1.msra.mxu0 0.0
    %2414 = vmatprep.subr.mxu0 0.0
    %2415 = vmatpush1.msra.mxu0 0.0
    %2416 = vmatprep.subr.mxu0 0.0
    %2417 = vmatpush1.msra.mxu0 0.0
    %2418 = vmatprep.subr.mxu0 0.0
    %2419 = vmatpush1.msra.mxu0 0.0
    %2420 = vmatprep.subr.mxu0 0.0
    %2421 = vmatpush1.msra.mxu0 0.0
    %2422 = vmatprep.subr.mxu0 0.0
    %2423 = vmatpush1.msra.mxu0 0.0
    %2424 = vmatprep.subr.mxu0 0.0
    %2425 = vmatpush1.msra.mxu0 0.0
    %2426 = vmatprep.subr.mxu0 0.0
    %2427 = vmatpush1.msra.mxu0 0.0
    %2428 = vmatprep.subr.mxu0 0.0
    %2429 = vmatpush1.msra.mxu0 0.0
    %2430 = vmatprep.subr.mxu0 0.0
    %2431 = vmatpush1.msra.mxu0 0.0
    %2432 = vmatprep.subr.mxu0 0.0
    %2433 = vmatpush1.msra.mxu0 0.0
    %2434 = vmatprep.mubr.f32.mxu0 0.0
    %2435 = vmatmul.mubr.f32.gmra.mrb[0].mxu0 %v2368
    %v2436 = vpop.f32.mrb[0].mxu0
    %v2437 = vadd.f32 0.0, %v2436
    %v2438 = vpop.f32.mrb[0].mxu0
    %2439 = vdwg.mxu0
    %v2440 = vadd.f32 %v2367, %v2437
    %v2441 = vmul.f32 %v814, %v2440
    %v2442 = vtanh.pop %v2441
    %v2443 = vmul.f32 %v814, %v2442
    %v2444 = vadd.f32 %v2443, %v815
    %v2445 = vmul.f32 %v2444, %v2355
    %2447 = vrot.lane.b32.xlu0 %v2444, 64
    %v2448 = vpop.permute.xlu0 %2447
    %v2450 = vmul.f32 %v2444, %v2448
    %2452 = vrot.lane.b32.xlu0 %v2450, 32
    %v2453 = vpop.permute.xlu0 %2452
    %v2455 = vadd.f32 %v2445, %v2453
    %v2456 = vtanh.pop %v2455
    %2458 = vrot.lane.b32.xlu0 %v2456, 64
    %v2459 = vpop.permute.xlu0 %2458
    %v2461 = vmul.f32 %v2444, %v2459
    %2463 = vrot.lane.b32.xlu0 %v2461, 32
    %v2464 = vpop.permute.xlu0 %2463
    %2466 = vst.msk [vmem:[#allocation2 + $0x30] sm:$0xff] %vm160, %v2464
    %v2467 = vld [vmem:[#allocation3 + $0x38] sm:$0xff]
    %v2468 = vsel %vm160, %v2464, 0
    %2470 = vmatprep.subr.mxu0 0.0
    %2471 = vmatpush1.msra.mxu0 %v49
    %2472 = vmatprep.subr.mxu0 0.0
    %2473 = vmatpush1.msra.mxu0 %v50
    %2474 = vmatprep.subr.mxu0 0.0
    %2475 = vmatpush1.msra.mxu0 %v51
    %2476 = vmatprep.subr.mxu0 0.0
    %2477 = vmatpush1.msra.mxu0 %v52
    %2478 = vmatprep.subr.mxu0 0.0
    %2479 = vmatpush1.msra.mxu0 0.0
    %2480 = vmatprep.subr.mxu0 0.0
    %2481 = vmatpush1.msra.mxu0 0.0
    %2482 = vmatprep.subr.mxu0 0.0
    %2483 = vmatpush1.msra.mxu0 0.0
    %2484 = vmatprep.subr.mxu0 0.0
    %2485 = vmatpush1.msra.mxu0 0.0
    %2486 = vmatprep.subr.mxu0 0.0
    %2487 = vmatpush1.msra.mxu0 0.0
    %2488 = vmatprep.subr.mxu0 0.0
    %2489 = vmatpush1.msra.mxu0 0.0
    %2490 = vmatprep.subr.mxu0 0.0
    %2491 = vmatpush1.msra.mxu0 0.0
    %2492 = vmatprep.subr.mxu0 0.0
    %2493 = vmatpush1.msra.mxu0 0.0
    %2494 = vmatprep.subr.mxu0 0.0
    %2495 = vmatpush1.msra.mxu0 0.0
    %2496 = vmatprep.subr.mxu0 0.0
    %2497 = vmatpush1.msra.mxu0 0.0
    %2498 = vmatprep.subr.mxu0 0.0
    %2499 = vmatpush1.msra.mxu0 0.0
    %2500 = vmatprep.subr.mxu0 0.0
    %2501 = vmatpush1.msra.mxu0 0.0
    %2502 = vmatprep.subr.mxu0 0.0
    %2503 = vmatpush1.msra.mxu0 0.0
    %2504 = vmatprep.subr.mxu0 0.0
    %2505 = vmatpush1.msra.mxu0 0.0
    %2506 = vmatprep.subr.mxu0 0.0
    %2507 = vmatpush1.msra.mxu0 0.0
    %2508 = vmatprep.subr.mxu0 0.0
    %2509 = vmatpush1.msra.mxu0 0.0
    %2510 = vmatprep.subr.mxu0 0.0
    %2511 = vmatpush1.msra.mxu0 0.0
    %2512 = vmatprep.subr.mxu0 0.0
    %2513 = vmatpush1.msra.mxu0 0.0
    %2514 = vmatprep.subr.mxu0 0.0
    %2515 = vmatpush1.msra.mxu0 0.0
    %2516 = vmatprep.subr.mxu0 0.0
    %2517 = vmatpush1.msra.mxu0 0.0
    %2518 = vmatprep.subr.mxu0 0.0
    %2519 = vmatpush1.msra.mxu0 0.0
    %2520 = vmatprep.subr.mxu0 0.0
    %2521 = vmatpush1.msra.mxu0 0.0
    %2522 = vmatprep.subr.mxu0 0.0
    %2523 = vmatpush1.msra.mxu0 0.0
    %2524 = vmatprep.subr.mxu0 0.0
    %2525 = vmatpush1.msra.mxu0 0.0
    %2526 = vmatprep.subr.mxu0 0.0
    %2527 = vmatpush1.msra.mxu0 0.0
    %2528 = vmatprep.subr.mxu0 0.0
    %2529 = vmatpush1.msra.mxu0 0.0
    %2530 = vmatprep.subr.mxu0 0.0
    %2531 = vmatpush1.msra.mxu0 0.0
    %2532 = vmatprep.subr.mxu0 0.0
    %2533 = vmatpush1.msra.mxu0 0.0
    %2534 = vmatprep.mubr.f32.mxu0 0.0
    %2535 = vmatmul.mubr.f32.gmra.mrb[0].mxu0 %v2468
    %v2536 = vpop.f32.mrb[0].mxu0
    %v2537 = vadd.f32 0.0, %v2536
    %v2538 = vpop.f32.mrb[0].mxu0
    %2539 = vdwg.mxu0
    %v2540 = vadd.f32 %v2467, %v2537
    %v2541 = vmul.f32 %v814, %v2540
    %v2542 = vtanh.pop %v2541
    %v2543 = vmul.f32 %v814, %v2542
    %v2544 = vadd.f32 %v2543, %v815
    %v2545 = vmul.f32 %v2544, %v2455
    %2547 = vrot.lane.b32.xlu0 %v2544, 64
    %v2548 = vpop.permute.xlu0 %2547
    %v2550 = vmul.f32 %v2544, %v2548
    %2552 = vrot.lane.b32.xlu0 %v2550, 32
    %v2553 = vpop.permute.xlu0 %2552
    %v2555 = vadd.f32 %v2545, %v2553
    %v2556 = vtanh.pop %v2555
    %2558 = vrot.lane.b32.xlu0 %v2556, 64
    %v2559 = vpop.permute.xlu0 %2558
    %v2561 = vmul.f32 %v2544, %v2559
    %2563 = vrot.lane.b32.xlu0 %v2561, 32
    %v2564 = vpop.permute.xlu0 %2563
    %2566 = vst.msk [vmem:[#allocation2 + $0x38] sm:$0xff] %vm160, %v2564
    %v2567 = vld [vmem:[#allocation2] sm:$0xff]
    %v2568 = vld [vmem:[#allocation2 + $0x8] sm:$0xff]
    %v2569 = vld [vmem:[#allocation2 + $0x10] sm:$0xff]
    %v2570 = vld [vmem:[#allocation2 + $0x18] sm:$0xff]
    %v2571 = vld [vmem:[#allocation2 + $0x20] sm:$0xff]
    %v2572 = vld [vmem:[#allocation2 + $0x28] sm:$0xff]
    %v2573 = vld [vmem:[#allocation2 + $0x30] sm:$0xff]
    %v2574 = vld [vmem:[#allocation2 + $0x38] sm:$0xff]
    %v2575 = vlaneseq
    %v2576 = vshrl.u32 %v2575, 7
    %v2577 = vsub.s32 0, %v2576
    %v2578 = vrot.slane %v66, %v2577
    %v2580 = vsel %vm160, %v2567, 0
    %v2583 = vsel %vm160, %v2568, 0
    %v2586 = vsel %vm160, %v2569, 0
    %v2589 = vsel %vm160, %v2570, 0
    %v2592 = vsel %vm160, %v2571, 0
    %v2595 = vsel %vm160, %v2572, 0
    %v2598 = vsel %vm160, %v2573, 0
    %v2601 = vsel %vm160, %v2574, 0
    %2603 = vmatprep.subr.mxu0 0.0
    %2604 = vmatpush1.msra.mxu0 %v62
    %2605 = vmatprep.subr.mxu0 0.0
    %2606 = vmatpush1.msra.mxu0 %v63
    %2607 = vmatprep.subr.mxu0 0.0
    %2608 = vmatpush1.msra.mxu0 %v64
    %2609 = vmatprep.subr.mxu0 0.0
    %2610 = vmatpush1.msra.mxu0 %v65
    %2611 = vmatprep.subr.mxu0 0.0
    %2612 = vmatpush1.msra.mxu0 0.0
    %2613 = vmatprep.subr.mxu0 0.0
    %2614 = vmatpush1.msra.mxu0 0.0
    %2615 = vmatprep.subr.mxu0 0.0
    %2616 = vmatpush1.msra.mxu0 0.0
    %2617 = vmatprep.subr.mxu0 0.0
    %2618 = vmatpush1.msra.mxu0 0.0
    %2619 = vmatprep.subr.mxu0 0.0
    %2620 = vmatpush1.msra.mxu0 0.0
    %2621 = vmatprep.subr.mxu0 0.0
    %2622 = vmatpush1.msra.mxu0 0.0
    %2623 = vmatprep.subr.mxu0 0.0
    %2624 = vmatpush1.msra.mxu0 0.0
    %2625 = vmatprep.subr.mxu0 0.0
    %2626 = vmatpush1.msra.mxu0 0.0
    %2627 = vmatprep.subr.mxu0 0.0
    %2628 = vmatpush1.msra.mxu0 0.0
    %2629 = vmatprep.subr.mxu0 0.0
    %2630 = vmatpush1.msra.mxu0 0.0
    %2631 = vmatprep.subr.mxu0 0.0
    %2632 = vmatpush1.msra.mxu0 0.0
    %2633 = vmatprep.subr.mxu0 0.0
    %2634 = vmatpush1.msra.mxu0 0.0
    %2635 = vmatprep.subr.mxu0 0.0
    %2636 = vmatpush1.msra.mxu0 0.0
    %2637 = vmatprep.subr.mxu0 0.0
    %2638 = vmatpush1.msra.mxu0 0.0
    %2639 = vmatprep.subr.mxu0 0.0
    %2640 = vmatpush1.msra.mxu0 0.0
    %2641 = vmatprep.subr.mxu0 0.0
    %2642 = vmatpush1.msra.mxu0 0.0
    %2643 = vmatprep.subr.mxu0 0.0
    %2644 = vmatpush1.msra.mxu0 0.0
    %2645 = vmatprep.subr.mxu0 0.0
    %2646 = vmatpush1.msra.mxu0 0.0
    %2647 = vmatprep.subr.mxu0 0.0
    %2648 = vmatpush1.msra.mxu0 0.0
    %2649 = vmatprep.subr.mxu0 0.0
    %2650 = vmatpush1.msra.mxu0 0.0
    %2651 = vmatprep.subr.mxu0 0.0
    %2652 = vmatpush1.msra.mxu0 0.0
    %2653 = vmatprep.subr.mxu0 0.0
    %2654 = vmatpush1.msra.mxu0 0.0
    %2655 = vmatprep.subr.mxu0 0.0
    %2656 = vmatpush1.msra.mxu0 0.0
    %2657 = vmatprep.subr.mxu0 0.0
    %2658 = vmatpush1.msra.mxu0 0.0
    %2659 = vmatprep.subr.mxu0 0.0
    %2660 = vmatpush1.msra.mxu0 0.0
    %2661 = vmatprep.subr.mxu0 0.0
    %2662 = vmatpush1.msra.mxu0 0.0
    %2663 = vmatprep.subr.mxu0 0.0
    %2664 = vmatpush1.msra.mxu0 0.0
    %2665 = vmatprep.subr.mxu0 0.0
    %2666 = vmatpush1.msra.mxu0 0.0
    %2667 = vmatprep.mubr.f32.mxu0 0.0
    %2668 = vmatmul.mubr.f32.gmra.mrb[0].mxu0 %v2580
    %v2669 = vpop.f32.mrb[0].mxu0
    %v2670 = vadd.f32 %v2578, %v2669
    %v2671 = vpop.f32.mrb[0].mxu0
    %2672 = vmatprep.mubr.f32.mxu0 0.0
    %2673 = vmatmul.mubr.f32.gmra.mrb[0].mxu0 %v2583
    %v2674 = vpop.f32.mrb[0].mxu0
    %v2675 = vadd.f32 %v2578, %v2674
    %v2676 = vpop.f32.mrb[0].mxu0
    %2677 = vmatprep.mubr.f32.mxu0 0.0
    %2678 = vmatmul.mubr.f32.gmra.mrb[0].mxu0 %v2586
    %v2679 = vpop.f32.mrb[0].mxu0
    %v2680 = vadd.f32 %v2578, %v2679
    %v2681 = vpop.f32.mrb[0].mxu0
    %2682 = vmatprep.mubr.f32.mxu0 0.0
    %2683 = vmatmul.mubr.f32.gmra.mrb[0].mxu0 %v2589
    %v2684 = vpop.f32.mrb[0].mxu0
    %v2685 = vadd.f32 %v2578, %v2684
    %v2686 = vpop.f32.mrb[0].mxu0
    %2687 = vmatprep.mubr.f32.mxu0 0.0
    %2688 = vmatmul.mubr.f32.gmra.mrb[0].mxu0 %v2592
    %v2689 = vpop.f32.mrb[0].mxu0
    %v2690 = vadd.f32 %v2578, %v2689
    %v2691 = vpop.f32.mrb[0].mxu0
    %2692 = vmatprep.mubr.f32.mxu0 0.0
    %2693 = vmatmul.mubr.f32.gmra.mrb[0].mxu0 %v2595
    %v2694 = vpop.f32.mrb[0].mxu0
    %v2695 = vadd.f32 %v2578, %v2694
    %v2696 = vpop.f32.mrb[0].mxu0
    %2697 = vmatprep.mubr.f32.mxu0 0.0
    %2698 = vmatmul.mubr.f32.gmra.mrb[0].mxu0 %v2598
    %v2699 = vpop.f32.mrb[0].mxu0
    %v2700 = vadd.f32 %v2578, %v2699
    %v2701 = vpop.f32.mrb[0].mxu0
    %2702 = vmatprep.mubr.f32.mxu0 0.0
    %2703 = vmatmul.mubr.f32.gmra.mrb[0].mxu0 %v2601
    %v2704 = vpop.f32.mrb[0].mxu0
    %v2705 = vadd.f32 %v2578, %v2704
    %v2706 = vpop.f32.mrb[0].mxu0
    %2707 = vdwg.mxu0
    %v2708 = vxor.u32 %v2670, 2147483648
    %v2709 = vxor.u32 %v2675, 2147483648
    %v2710 = vxor.u32 %v2680, 2147483648
    %v2711 = vxor.u32 %v2685, 2147483648
    %v2712 = vxor.u32 %v2690, 2147483648
    %v2713 = vxor.u32 %v2695, 2147483648
    %v2714 = vxor.u32 %v2700, 2147483648
    %v2715 = vxor.u32 %v2705, 2147483648
    %v2716 = vmul.f32 %v2708, 1.442695
    %v2717 = vpow.pop %v2716
    %v2718 = vmul.f32 %v2709, 1.442695
    %v2719 = vpow.pop %v2718
    %v2720 = vmul.f32 %v2710, 1.442695
    %v2721 = vpow.pop %v2720
    %v2722 = vmul.f32 %v2711, 1.442695
    %v2723 = vpow.pop %v2722
    %v2724 = vmul.f32 %v2712, 1.442695
    %v2725 = vpow.pop %v2724
    %v2726 = vmul.f32 %v2713, 1.442695
    %v2727 = vpow.pop %v2726
    %v2728 = vmul.f32 %v2714, 1.442695
    %v2729 = vpow.pop %v2728
    %v2730 = vmul.f32 %v2715, 1.442695
    %v2731 = vpow.pop %v2730
    %v2732 = vadd.f32 %v2717, 1.0
    %v2733 = vadd.f32 %v2719, 1.0
    %v2734 = vadd.f32 %v2721, 1.0
    %v2735 = vadd.f32 %v2723, 1.0
    %v2736 = vadd.f32 %v2725, 1.0
    %v2737 = vadd.f32 %v2727, 1.0
    %v2738 = vadd.f32 %v2729, 1.0
    %v2739 = vadd.f32 %v2731, 1.0
    %v2740 = vrcp.pop %v2732
    %v2741 = vmul.f32 1.0, %v2740
    %v2742 = vrcp.pop %v2733
    %v2743 = vmul.f32 1.0, %v2742
    %v2744 = vrcp.pop %v2734
    %v2745 = vmul.f32 1.0, %v2744
    %v2746 = vrcp.pop %v2735
    %v2747 = vmul.f32 1.0, %v2746
    %v2748 = vrcp.pop %v2736
    %v2749 = vmul.f32 1.0, %v2748
    %v2750 = vrcp.pop %v2737
    %v2751 = vmul.f32 1.0, %v2750
    %v2752 = vrcp.pop %v2738
    %v2753 = vmul.f32 1.0, %v2752
    %v2754 = vrcp.pop %v2739
    %v2755 = vmul.f32 1.0, %v2754
    %v2756 = vlaneseq
    %v2757 = vshrl.u32 %v2756, 7
    %v2758 = vsub.s32 0, %v2757
    %v2759 = vrot.slane %v71, %v2758
    %v2761 = vsel %vm160, %v2741, 0
    %v2764 = vsel %vm160, %v2743, 0
    %v2767 = vsel %vm160, %v2745, 0
    %v2770 = vsel %vm160, %v2747, 0
    %v2773 = vsel %vm160, %v2749, 0
    %v2776 = vsel %vm160, %v2751, 0
    %v2779 = vsel %vm160, %v2753, 0
    %v2782 = vsel %vm160, %v2755, 0
    %2784 = vmatprep.subr.mxu0 0.0
    %2785 = vmatpush1.msra.mxu0 %v67
    %2786 = vmatprep.subr.mxu0 0.0
    %2787 = vmatpush1.msra.mxu0 %v68
    %2788 = vmatprep.subr.mxu0 0.0
    %2789 = vmatpush1.msra.mxu0 %v69
    %2790 = vmatprep.subr.mxu0 0.0
    %2791 = vmatpush1.msra.mxu0 %v70
    %2792 = vmatprep.subr.mxu0 0.0
    %2793 = vmatpush1.msra.mxu0 0.0
    %2794 = vmatprep.subr.mxu0 0.0
    %2795 = vmatpush1.msra.mxu0 0.0
    %2796 = vmatprep.subr.mxu0 0.0
    %2797 = vmatpush1.msra.mxu0 0.0
    %2798 = vmatprep.subr.mxu0 0.0
    %2799 = vmatpush1.msra.mxu0 0.0
    %2800 = vmatprep.subr.mxu0 0.0
    %2801 = vmatpush1.msra.mxu0 0.0
    %2802 = vmatprep.subr.mxu0 0.0
    %2803 = vmatpush1.msra.mxu0 0.0
    %2804 = vmatprep.subr.mxu0 0.0
    %2805 = vmatpush1.msra.mxu0 0.0
    %2806 = vmatprep.subr.mxu0 0.0
    %2807 = vmatpush1.msra.mxu0 0.0
    %2808 = vmatprep.subr.mxu0 0.0
    %2809 = vmatpush1.msra.mxu0 0.0
    %2810 = vmatprep.subr.mxu0 0.0
    %2811 = vmatpush1.msra.mxu0 0.0
    %2812 = vmatprep.subr.mxu0 0.0
    %2813 = vmatpush1.msra.mxu0 0.0
    %2814 = vmatprep.subr.mxu0 0.0
    %2815 = vmatpush1.msra.mxu0 0.0
    %2816 = vmatprep.subr.mxu0 0.0
    %2817 = vmatpush1.msra.mxu0 0.0
    %2818 = vmatprep.subr.mxu0 0.0
    %2819 = vmatpush1.msra.mxu0 0.0
    %2820 = vmatprep.subr.mxu0 0.0
    %2821 = vmatpush1.msra.mxu0 0.0
    %2822 = vmatprep.subr.mxu0 0.0
    %2823 = vmatpush1.msra.mxu0 0.0
    %2824 = vmatprep.subr.mxu0 0.0
    %2825 = vmatpush1.msra.mxu0 0.0
    %2826 = vmatprep.subr.mxu0 0.0
    %2827 = vmatpush1.msra.mxu0 0.0
    %2828 = vmatprep.subr.mxu0 0.0
    %2829 = vmatpush1.msra.mxu0 0.0
    %2830 = vmatprep.subr.mxu0 0.0
    %2831 = vmatpush1.msra.mxu0 0.0
    %2832 = vmatprep.subr.mxu0 0.0
    %2833 = vmatpush1.msra.mxu0 0.0
    %2834 = vmatprep.subr.mxu0 0.0
    %2835 = vmatpush1.msra.mxu0 0.0
    %2836 = vmatprep.subr.mxu0 0.0
    %2837 = vmatpush1.msra.mxu0 0.0
    %2838 = vmatprep.subr.mxu0 0.0
    %2839 = vmatpush1.msra.mxu0 0.0
    %2840 = vmatprep.subr.mxu0 0.0
    %2841 = vmatpush1.msra.mxu0 0.0
    %2842 = vmatprep.subr.mxu0 0.0
    %2843 = vmatpush1.msra.mxu0 0.0
    %2844 = vmatprep.subr.mxu0 0.0
    %2845 = vmatpush1.msra.mxu0 0.0
    %2846 = vmatprep.subr.mxu0 0.0
    %2847 = vmatpush1.msra.mxu0 0.0
    %2848 = vmatprep.mubr.f32.mxu0 0.0
    %2849 = vmatmul.mubr.f32.gmra.mrb[0].mxu0 %v2761
    %v2850 = vpop.f32.mrb[0].mxu0
    %v2851 = vadd.f32 %v2759, %v2850
    %v2852 = vpop.f32.mrb[0].mxu0
    %2853 = vmatprep.mubr.f32.mxu0 0.0
    %2854 = vmatmul.mubr.f32.gmra.mrb[0].mxu0 %v2764
    %v2855 = vpop.f32.mrb[0].mxu0
    %v2856 = vadd.f32 %v2759, %v2855
    %v2857 = vpop.f32.mrb[0].mxu0
    %2858 = vmatprep.mubr.f32.mxu0 0.0
    %2859 = vmatmul.mubr.f32.gmra.mrb[0].mxu0 %v2767
    %v2860 = vpop.f32.mrb[0].mxu0
    %v2861 = vadd.f32 %v2759, %v2860
    %v2862 = vpop.f32.mrb[0].mxu0
    %2863 = vmatprep.mubr.f32.mxu0 0.0
    %2864 = vmatmul.mubr.f32.gmra.mrb[0].mxu0 %v2770
    %v2865 = vpop.f32.mrb[0].mxu0
    %v2866 = vadd.f32 %v2759, %v2865
    %v2867 = vpop.f32.mrb[0].mxu0
    %2868 = vmatprep.mubr.f32.mxu0 0.0
    %2869 = vmatmul.mubr.f32.gmra.mrb[0].mxu0 %v2773
    %v2870 = vpop.f32.mrb[0].mxu0
    %v2871 = vadd.f32 %v2759, %v2870
    %v2872 = vpop.f32.mrb[0].mxu0
    %2873 = vmatprep.mubr.f32.mxu0 0.0
    %2874 = vmatmul.mubr.f32.gmra.mrb[0].mxu0 %v2776
    %v2875 = vpop.f32.mrb[0].mxu0
    %v2876 = vadd.f32 %v2759, %v2875
    %v2877 = vpop.f32.mrb[0].mxu0
    %2878 = vmatprep.mubr.f32.mxu0 0.0
    %2879 = vmatmul.mubr.f32.gmra.mrb[0].mxu0 %v2779
    %v2880 = vpop.f32.mrb[0].mxu0
    %v2881 = vadd.f32 %v2759, %v2880
    %v2882 = vpop.f32.mrb[0].mxu0
    %2883 = vmatprep.mubr.f32.mxu0 0.0
    %2884 = vmatmul.mubr.f32.gmra.mrb[0].mxu0 %v2782
    %v2885 = vpop.f32.mrb[0].mxu0
    %v2886 = vadd.f32 %v2759, %v2885
    %v2887 = vpop.f32.mrb[0].mxu0
    %2888 = vdwg.mxu0
    %v2889 = vxor.u32 %v2851, 2147483648
    %v2890 = vxor.u32 %v2856, 2147483648
    %v2891 = vxor.u32 %v2861, 2147483648
    %v2892 = vxor.u32 %v2866, 2147483648
    %v2893 = vxor.u32 %v2871, 2147483648
    %v2894 = vxor.u32 %v2876, 2147483648
    %v2895 = vxor.u32 %v2881, 2147483648
    %v2896 = vxor.u32 %v2886, 2147483648
    %v2897 = vmul.f32 %v2889, 1.442695
    %v2898 = vpow.pop %v2897
    %v2899 = vmul.f32 %v2890, 1.442695
    %v2900 = vpow.pop %v2899
    %v2901 = vmul.f32 %v2891, 1.442695
    %v2902 = vpow.pop %v2901
    %v2903 = vmul.f32 %v2892, 1.442695
    %v2904 = vpow.pop %v2903
    %v2905 = vmul.f32 %v2893, 1.442695
    %v2906 = vpow.pop %v2905
    %v2907 = vmul.f32 %v2894, 1.442695
    %v2908 = vpow.pop %v2907
    %v2909 = vmul.f32 %v2895, 1.442695
    %v2910 = vpow.pop %v2909
    %v2911 = vmul.f32 %v2896, 1.442695
    %v2912 = vpow.pop %v2911
    %v2913 = vadd.f32 %v2898, 1.0
    %v2914 = vadd.f32 %v2900, 1.0
    %v2915 = vadd.f32 %v2902, 1.0
    %v2916 = vadd.f32 %v2904, 1.0
    %v2917 = vadd.f32 %v2906, 1.0
    %v2918 = vadd.f32 %v2908, 1.0
    %v2919 = vadd.f32 %v2910, 1.0
    %v2920 = vadd.f32 %v2912, 1.0
    %v2921 = vrcp.pop %v2913
    %v2922 = vmul.f32 1.0, %v2921
    %v2923 = vrcp.pop %v2914
    %v2924 = vmul.f32 1.0, %v2923
    %v2925 = vrcp.pop %v2915
    %v2926 = vmul.f32 1.0, %v2925
    %v2927 = vrcp.pop %v2916
    %v2928 = vmul.f32 1.0, %v2927
    %v2929 = vrcp.pop %v2917
    %v2930 = vmul.f32 1.0, %v2929
    %v2931 = vrcp.pop %v2918
    %v2932 = vmul.f32 1.0, %v2931
    %v2933 = vrcp.pop %v2919
    %v2934 = vmul.f32 1.0, %v2933
    %v2935 = vrcp.pop %v2920
    %v2936 = vmul.f32 1.0, %v2935
    %v2937 = vlaneseq
    %v2938 = vshrl.u32 %v2937, 7
    %v2939 = vsub.s32 0, %v2938
    %v2940 = vrot.slane %v74, %v2939
    %v2942 = vsel %vm81, %v2922, 0
    %v2945 = vsel %vm81, %v2924, 0
    %v2948 = vsel %vm81, %v2926, 0
    %v2951 = vsel %vm81, %v2928, 0
    %v2954 = vsel %vm81, %v2930, 0
    %v2957 = vsel %vm81, %v2932, 0
    %v2960 = vsel %vm81, %v2934, 0
    %v2963 = vsel %vm81, %v2936, 0
    %2965 = vmatprep.subr.mxu0 0.0
    %2966 = vmatpush1.msra.mxu0 %v72
    %2967 = vmatprep.subr.mxu0 0.0
    %2968 = vmatpush1.msra.mxu0 %v73
    %2969 = vmatprep.subr.mxu0 0.0
    %2970 = vmatpush1.msra.mxu0 0.0
    %2971 = vmatprep.subr.mxu0 0.0
    %2972 = vmatpush1.msra.mxu0 0.0
    %2973 = vmatprep.subr.mxu0 0.0
    %2974 = vmatpush1.msra.mxu0 0.0
    %2975 = vmatprep.subr.mxu0 0.0
    %2976 = vmatpush1.msra.mxu0 0.0
    %2977 = vmatprep.subr.mxu0 0.0
    %2978 = vmatpush1.msra.mxu0 0.0
    %2979 = vmatprep.subr.mxu0 0.0
    %2980 = vmatpush1.msra.mxu0 0.0
    %2981 = vmatprep.subr.mxu0 0.0
    %2982 = vmatpush1.msra.mxu0 0.0
    %2983 = vmatprep.subr.mxu0 0.0
    %2984 = vmatpush1.msra.mxu0 0.0
    %2985 = vmatprep.subr.mxu0 0.0
    %2986 = vmatpush1.msra.mxu0 0.0
    %2987 = vmatprep.subr.mxu0 0.0
    %2988 = vmatpush1.msra.mxu0 0.0
    %2989 = vmatprep.subr.mxu0 0.0
    %2990 = vmatpush1.msra.mxu0 0.0
    %2991 = vmatprep.subr.mxu0 0.0
    %2992 = vmatpush1.msra.mxu0 0.0
    %2993 = vmatprep.subr.mxu0 0.0
    %2994 = vmatpush1.msra.mxu0 0.0
    %2995 = vmatprep.subr.mxu0 0.0
    %2996 = vmatpush1.msra.mxu0 0.0
    %2997 = vmatprep.subr.mxu0 0.0
    %2998 = vmatpush1.msra.mxu0 0.0
    %2999 = vmatprep.subr.mxu0 0.0
    %3000 = vmatpush1.msra.mxu0 0.0
    %3001 = vmatprep.subr.mxu0 0.0
    %3002 = vmatpush1.msra.mxu0 0.0
    %3003 = vmatprep.subr.mxu0 0.0
    %3004 = vmatpush1.msra.mxu0 0.0
    %3005 = vmatprep.subr.mxu0 0.0
    %3006 = vmatpush1.msra.mxu0 0.0
    %3007 = vmatprep.subr.mxu0 0.0
    %3008 = vmatpush1.msra.mxu0 0.0
    %3009 = vmatprep.subr.mxu0 0.0
    %3010 = vmatpush1.msra.mxu0 0.0
    %3011 = vmatprep.subr.mxu0 0.0
    %3012 = vmatpush1.msra.mxu0 0.0
    %3013 = vmatprep.subr.mxu0 0.0
    %3014 = vmatpush1.msra.mxu0 0.0
    %3015 = vmatprep.subr.mxu0 0.0
    %3016 = vmatpush1.msra.mxu0 0.0
    %3017 = vmatprep.subr.mxu0 0.0
    %3018 = vmatpush1.msra.mxu0 0.0
    %3019 = vmatprep.subr.mxu0 0.0
    %3020 = vmatpush1.msra.mxu0 0.0
    %3021 = vmatprep.subr.mxu0 0.0
    %3022 = vmatpush1.msra.mxu0 0.0
    %3023 = vmatprep.subr.mxu0 0.0
    %3024 = vmatpush1.msra.mxu0 0.0
    %3025 = vmatprep.subr.mxu0 0.0
    %3026 = vmatpush1.msra.mxu0 0.0
    %3027 = vmatprep.subr.mxu0 0.0
    %3028 = vmatpush1.msra.mxu0 0.0
    %3029 = vmatprep.mubr.f32.mxu0 0.0
    %3030 = vmatmul.mubr.f32.gmra.mrb[0].mxu0 %v2942
    %v3031 = vpop.f32.mrb[0].mxu0
    %v3032 = vadd.f32 %v2940, %v3031
    %v3033 = vpop.f32.mrb[0].mxu0
    %3034 = vmatprep.mubr.f32.mxu0 0.0
    %3035 = vmatmul.mubr.f32.gmra.mrb[0].mxu0 %v2945
    %v3036 = vpop.f32.mrb[0].mxu0
    %v3037 = vadd.f32 %v2940, %v3036
    %v3038 = vpop.f32.mrb[0].mxu0
    %3039 = vmatprep.mubr.f32.mxu0 0.0
    %3040 = vmatmul.mubr.f32.gmra.mrb[0].mxu0 %v2948
    %v3041 = vpop.f32.mrb[0].mxu0
    %v3042 = vadd.f32 %v2940, %v3041
    %v3043 = vpop.f32.mrb[0].mxu0
    %3044 = vmatprep.mubr.f32.mxu0 0.0
    %3045 = vmatmul.mubr.f32.gmra.mrb[0].mxu0 %v2951
    %v3046 = vpop.f32.mrb[0].mxu0
    %v3047 = vadd.f32 %v2940, %v3046
    %v3048 = vpop.f32.mrb[0].mxu0
    %3049 = vmatprep.mubr.f32.mxu0 0.0
    %3050 = vmatmul.mubr.f32.gmra.mrb[0].mxu0 %v2954
    %v3051 = vpop.f32.mrb[0].mxu0
    %v3052 = vadd.f32 %v2940, %v3051
    %v3053 = vpop.f32.mrb[0].mxu0
    %3054 = vmatprep.mubr.f32.mxu0 0.0
    %3055 = vmatmul.mubr.f32.gmra.mrb[0].mxu0 %v2957
    %v3056 = vpop.f32.mrb[0].mxu0
    %v3057 = vadd.f32 %v2940, %v3056
    %v3058 = vpop.f32.mrb[0].mxu0
    %3059 = vmatprep.mubr.f32.mxu0 0.0
    %3060 = vmatmul.mubr.f32.gmra.mrb[0].mxu0 %v2960
    %v3061 = vpop.f32.mrb[0].mxu0
    %v3062 = vadd.f32 %v2940, %v3061
    %v3063 = vpop.f32.mrb[0].mxu0
    %3064 = vmatprep.mubr.f32.mxu0 0.0
    %3065 = vmatmul.mubr.f32.gmra.mrb[0].mxu0 %v2963
    %v3066 = vpop.f32.mrb[0].mxu0
    %v3067 = vadd.f32 %v2940, %v3066
    %v3068 = vpop.f32.mrb[0].mxu0
    %3069 = vdwg.mxu0
    %3070 = vst [vmem:[%s6] sm:$0xff] %v3032
    %3071 = vst [vmem:[%s6 + $0x8] sm:$0xff] %v3037
    %3072 = vst [vmem:[%s6 + $0x10] sm:$0xff] %v3042
    %3073 = vst [vmem:[%s6 + $0x18] sm:$0xff] %v3047
    %3074 = vst [vmem:[%s6 + $0x20] sm:$0xff] %v3052
    %3075 = vst [vmem:[%s6 + $0x28] sm:$0xff] %v3057
    %3076 = vst [vmem:[%s6 + $0x30] sm:$0xff] %v3062
    %3077 = vst [vmem:[%s6 + $0x38] sm:$0xff] %v3067
    %3078 = vrot.lane.b32.xlu0 %v2561, 64
    %v3079 = vpop.permute.xlu0 %3078
    %3082 = vrot.lane.b32.xlu0 %v1608, 32
    %v3083 = vpop.permute.xlu0 %3082
    %3086 = vrot.lane.b32.xlu0 %v2555, 64
    %v3087 = vpop.permute.xlu0 %3086
    %v3089 = vsel %vm160, %v1617, %v3079
    %v3090 = vsel %vm471, %v3089, %v3083
    %vm3091 = vcmask 785408
    %v3092 = vsel %vm3091, %v3090, %v3087
    %3093 = vst [vmem:[%s6 + $0x40] sm:$0xff] %v3092
    // Predicated region
    $region30: #{model_forward.1} parent=1 // pred_check
      _
    $region31: #{model_forward.1} parent=1 // pred_check_branch
      %3095 = sbr.rel (0) target = $region33
    $region32: #{model_forward.1} parent=1 // pred_region
      _
    $region33: #{model_forward.1} parent=1 // pred_fallthru
      _
    // Predicated region
    $region34: #{model_forward.1} parent=1 // pred_check
      _
    $region35: #{model_forward.1} parent=1 // pred_check_branch
      %3097 = sbr.rel (0) target = $region37
    $region36: #{model_forward.1} parent=1 // pred_region
      _
    $region37: #{model_forward.1} parent=1 // pred_fallthru
      _
    %3098 = vsyncpa [#allocation5], 1

</llo_original>
